<compile_context>
chip_gen: v5e
topology: v5e:2x2
jax: 0.10.0
libtpu: 0.0.40
codegen_flags: <defaults>
</compile_context>

<pallas_src>
import functools
import math

import jax
import jax.numpy as jnp
from jax.experimental import pallas as pl
from jax.experimental.pallas import tpu as pltpu


def _round_up(x, m):
    return -(-x // m) * m


# ----------------------------------------------------------------------------
# Fused multi-layer LSTM (+ final FC) kernel.
# Grid = (batch_split [parallel], time_chunk [arbitrary], layer [arbitrary]).
# ----------------------------------------------------------------------------
def _lstm_stack_kernel(x_ref, wih0_ref, wih_ref, b_ref, whh_ref,
                       h0_ref, c0_ref, wfc_ref, bfc_ref,
                       hT_ref, cT_ref, out_ref,
                       gx_scr, act_scr, h_carry, c_carry,
                       *, t_valid, mask_tail, unroll):
    """One grid step = one LSTM layer over one time chunk for one batch split.

    x_ref    : (1, Tc*Bsub, E)   time-major input chunk (read at layer 0 only)
    wih0_ref : (E, 4Hp)          layer-0 input weights, gate order (i,f,o,g)
    wih_ref  : (1, Hp, 4Hp)      input weights for layers >= 1 (clamped index)
    b_ref    : (1, 1, 4Hp)       fused bias (b_ih + b_hh), gate-reordered/padded
    whh_ref  : (1, Hp, 4Hp)      recurrent weights
    h0/c0    : (1, Bsub, Hp)     per-layer initial state (this batch split)
    wfc/bfc  : (Hp, Op)/(1, Op)  lane-padded FC params
    hT/cT    : (1, Bsub, Hp)     running final state (last chunk's flush wins)
    out_ref  : (Bsub, Op)        fc(h_T of last layer), lane-dense
    gx_scr   : (Tc*Bsub, 4Hp) f32   hoisted input projection for this chunk
    act_scr  : (Tc*Bsub, Hp) bf16   inter-layer activations (VMEM resident)
    h_carry  : (L, Bsub, Hp) f32    per-layer hidden carried across chunks
    c_carry  : (L, Bsub, Hp) f32    per-layer cell carried across chunks
    """
    chunk = pl.program_id(1)
    layer = pl.program_id(2)
    n_chunks = pl.num_programs(1)
    n_layers = pl.num_programs(2)

    Bsub = h_carry.shape[1]
    Hp = act_scr.shape[1]
    Tc = act_scr.shape[0] // Bsub

    bias = b_ref[0]                                       # (1, 4Hp)

    # ---- hoisted input projection: one batched MXU matmul per chunk/layer --
    @pl.when(layer == 0)
    def _():
        gx_scr[...] = jnp.dot(x_ref[0], wih0_ref[...],
                              preferred_element_type=jnp.float32) + bias

    @pl.when(layer > 0)
    def _():
        gx_scr[...] = jnp.dot(act_scr[...].astype(jnp.float32), wih_ref[0],
                              preferred_element_type=jnp.float32) + bias

    # ---- initialize per-layer carry from the provided initial state --------
    @pl.when(chunk == 0)
    def _():
        h_carry[layer] = h0_ref[0].astype(jnp.float32)
        c_carry[layer] = c0_ref[0].astype(jnp.float32)

    whh = whh_ref[0]                                      # (Hp, 4Hp), hoisted

    # ---- serial recurrence: h @ W_hh + gate math per step -------------------
    def step(t, carry):
        h, c = carry
        rows = pl.ds(pl.multiple_of(t * Bsub, Bsub), Bsub)
        z = gx_scr[rows, :] + jnp.dot(h, whh, preferred_element_type=jnp.float32)
        # Gate order (i, f, o, g): sigmoid over 3Hp lanes, tanh over Hp lanes.
        s = jax.nn.sigmoid(z[:, :3 * Hp])
        g_g = jnp.tanh(z[:, 3 * Hp:])
        i_g = s[:, 0 * Hp:1 * Hp]
        f_g = s[:, 1 * Hp:2 * Hp]
        o_g = s[:, 2 * Hp:3 * Hp]
        c_new = f_g * c + i_g * g_g
        h_new = o_g * jnp.tanh(c_new)
        if mask_tail:  # only traced when T was padded up to a chunk multiple
            valid = (chunk * Tc + t) < t_valid
            h_new = jnp.where(valid, h_new, h)
            c_new = jnp.where(valid, c_new, c)
        act_scr[rows, :] = h_new.astype(act_scr.dtype)    # next layer's input
        return h_new, c_new

    h_T, c_T = jax.lax.fori_loop(0, Tc, step,
                                 (h_carry[layer], c_carry[layer]),
                                 unroll=unroll)

    h_carry[layer] = h_T
    c_carry[layer] = c_T

    # Running final state; the last chunk's HBM flush is the one that sticks.
    hT_ref[0] = h_T.astype(hT_ref.dtype)
    cT_ref[0] = c_T.astype(cT_ref.dtype)

    # Fused FC on the last layer's final hidden (== fc(lstm_out[:, -1]), eval).
    @pl.when(jnp.logical_and(chunk == n_chunks - 1, layer == n_layers - 1))
    def _():
        out_ref[...] = (jnp.dot(h_T, wfc_ref[...],
                                preferred_element_type=jnp.float32)
                        + bfc_ref[...]).astype(out_ref.dtype)


# ----------------------------------------------------------------------------
# Parameter init (PyTorch-equivalent layout: gate order i,f,g,o; U(-1/√H,1/√H))
# ----------------------------------------------------------------------------
def init_params(key, output_size, embedding_dim, hidden_dim, n_layers):
    stdv = 1.0 / math.sqrt(hidden_dim)
    params = {"w_ih": [], "w_hh": [], "b_ih": [], "b_hh": []}
    for layer in range(n_layers):
        in_dim = embedding_dim if layer == 0 else hidden_dim
        key, k1, k2, k3, k4 = jax.random.split(key, 5)
        # Stored pre-transposed: (in_dim, 4H) / (H, 4H); gate order i,f,g,o.
        params["w_ih"].append(jax.random.uniform(
            k1, (in_dim, 4 * hidden_dim), jnp.float32, -stdv, stdv))
        params["w_hh"].append(jax.random.uniform(
            k2, (hidden_dim, 4 * hidden_dim), jnp.float32, -stdv, stdv))
        params["b_ih"].append(jax.random.uniform(
            k3, (4 * hidden_dim,), jnp.float32, -stdv, stdv))
        params["b_hh"].append(jax.random.uniform(
            k4, (4 * hidden_dim,), jnp.float32, -stdv, stdv))
    key, k5, k6 = jax.random.split(key, 3)
    params["fc_w"] = jax.random.uniform(
        k5, (hidden_dim, output_size), jnp.float32, -stdv, stdv)
    params["fc_b"] = jax.random.uniform(
        k6, (output_size,), jnp.float32, -stdv, stdv)
    return params


def _reorder_pad_gates(w, H, Hp):
    """(..., 4H) cols in PyTorch order (i,f,g,o) -> (..., 4Hp) in (i,f,o,g),
    each gate zero-padded from H to Hp lanes."""
    wi, wf, wg, wo = jnp.split(w, 4, axis=-1)
    pad = [(0, 0)] * (w.ndim - 1) + [(0, Hp - H)]
    return jnp.concatenate([jnp.pad(g, pad) for g in (wi, wf, wo, wg)], axis=-1)


# ----------------------------------------------------------------------------
# Forward
# ----------------------------------------------------------------------------
def lstm_multiclassifier_forward(params, x, hidden):
    """x: (B, T, E) batch_first; hidden = (h0, c0), each (n_layers, B, H)."""
    h0, c0 = hidden
    n_layers, B, H = h0.shape
    _, T, E = x.shape
    O = params["fc_w"].shape[-1]

    # ---- padding / splitting decisions -------------------------------------
    NB = 2 if B >= 16 else 1                   # megacore batch split (v7x)
    B_pad = _round_up(max(B, 8), 8 * NB)
    Bsub = B_pad // NB
    Hp = _round_up(max(H, 128), 128)           # lane-dense gates / states
    Op = _round_up(max(O, 128), 128)           # lane-dense FC output store

    # Time chunking: bound VMEM independent of sequence length.
    chunk_budget = 20 * 2**20                  # bytes for chunk-scaled buffers
    per_t = Bsub * (4 * Hp * 4 + Hp * 2 + 2 * E * 4)   # gx f32 + act bf16 + 2x x
    Tc = int(max(1, min(T, chunk_budget // per_t, 256)))
    n_chunks = -(-T // Tc)
    T_pad = n_chunks * Tc
    mask_tail = (T_pad != T)
    unroll = int(min(Tc, 8))

    # ---- input: time-major, batch/time padded, split by batch --------------
    x_tm = jnp.transpose(x, (1, 0, 2))                               # (T, B, E)
    x_tm = jnp.pad(x_tm, ((0, T_pad - T), (0, B_pad - B), (0, 0)))
    x3d = (x_tm.reshape(T_pad, NB, Bsub, E)
               .transpose(1, 0, 2, 3)
               .reshape(NB, T_pad * Bsub, E))                        # (NB, T*Bs, E)

    def prep_state(s):
        s = jnp.pad(s, ((0, 0), (0, B_pad - B), (0, Hp - H))).astype(jnp.float32)
        return s.reshape(n_layers * NB, Bsub, Hp)
    h0_p = prep_state(h0)
    c0_p = prep_state(c0)

    # ---- weights: gate-reordered (i,f,o,g), H padded to Hp ------------------
    wih0 = _reorder_pad_gates(params["w_ih"][0], H, Hp)              # (E, 4Hp)

    def prep_rec(w):                                                 # (H,4H)->(Hp,4Hp)
        w = jnp.pad(w, ((0, Hp - H), (0, 0)))
        return _reorder_pad_gates(w, H, Hp)

    whh_all = jnp.stack([prep_rec(w) for w in params["w_hh"]], axis=0)
    if n_layers > 1:
        wih_rest = jnp.stack([prep_rec(w) for w in params["w_ih"][1:]], axis=0)
    else:
        wih_rest = jnp.zeros((1, Hp, 4 * Hp), jnp.float32)           # never read
    b_all = jnp.stack(
        [_reorder_pad_gates((bi + bh)[None, :], H, Hp)
         for bi, bh in zip(params["b_ih"], params["b_hh"])], axis=0)  # (L,1,4Hp)

    wfc = jnp.pad(params["fc_w"], ((0, Hp - H), (0, Op - O)))        # (Hp, Op)
    bfc = jnp.pad(params["fc_b"][None, :], ((0, 0), (0, Op - O)))    # (1, Op)

    state_dtype = h0.dtype
    out_shapes = (
        jax.ShapeDtypeStruct((n_layers * NB, Bsub, Hp), state_dtype),  # h_T
        jax.ShapeDtypeStruct((n_layers * NB, Bsub, Hp), state_dtype),  # c_T
        jax.ShapeDtypeStruct((B_pad, Op), x.dtype),                    # fc(h_T[-1])
    )

    grid_spec = pltpu.PrefetchScalarGridSpec(
        num_scalar_prefetch=0,
        grid=(NB, n_chunks, n_layers),
        in_specs=[
            pl.BlockSpec((1, Tc * Bsub, E), lambda b, c, l: (b, c, 0)),       # x chunk
            pl.BlockSpec((E, 4 * Hp), lambda b, c, l: (0, 0)),                # W_ih l=0
            pl.BlockSpec((1, Hp, 4 * Hp),
                         lambda b, c, l: (jnp.maximum(l - 1, 0), 0, 0)),      # W_ih l>=1
            pl.BlockSpec((1, 1, 4 * Hp), lambda b, c, l: (l, 0, 0)),          # fused bias
            pl.BlockSpec((1, Hp, 4 * Hp), lambda b, c, l: (l, 0, 0)),         # W_hh
            pl.BlockSpec((1, Bsub, Hp), lambda b, c, l: (l * NB + b, 0, 0)),  # h0
            pl.BlockSpec((1, Bsub, Hp), lambda b, c, l: (l * NB + b, 0, 0)),  # c0
            pl.BlockSpec((Hp, Op), lambda b, c, l: (0, 0)),                   # W_fc
            pl.BlockSpec((1, Op), lambda b, c, l: (0, 0)),                    # b_fc
        ],
        out_specs=[
            pl.BlockSpec((1, Bsub, Hp), lambda b, c, l: (l * NB + b, 0, 0)),  # h_T
            pl.BlockSpec((1, Bsub, Hp), lambda b, c, l: (l * NB + b, 0, 0)),  # c_T
            pl.BlockSpec((Bsub, Op), lambda b, c, l: (b, 0)),                 # out
        ],
        scratch_shapes=[
            pltpu.VMEM((Tc * Bsub, 4 * Hp), jnp.float32),    # hoisted gates_x
            pltpu.VMEM((Tc * Bsub, Hp), jnp.bfloat16),       # inter-layer acts
            pltpu.VMEM((n_layers, Bsub, Hp), jnp.float32),   # h carry across chunks
            pltpu.VMEM((n_layers, Bsub, Hp), jnp.float32),   # c carry across chunks
        ],
    )

    # Explicit VMEM budget (default scoped limit is well below physical).
    est = (Tc * Bsub * 4 * Hp * 4 + Tc * Bsub * Hp * 2
           + 2 * n_layers * Bsub * Hp * 4
           + 2 * Tc * Bsub * E * 4
           + 2 * E * 4 * Hp * 4
           + 2 * 2 * Hp * 4 * Hp * 4
           + 2 * 8 * 4 * Hp * 4
           + 2 * 2 * 2 * Bsub * Hp * 4
           + 2 * Hp * Op * 4 + 2 * 8 * Op * 4
           + 2 * 2 * Bsub * Hp * 4 + 2 * Bsub * Op * 4)
    vmem_limit = int(min(48 * 2**20, max(16 * 2**20, 2 * est)))

    kernel = functools.partial(_lstm_stack_kernel,
                               t_valid=T, mask_tail=mask_tail, unroll=unroll)

    h_T, c_T, out_pad = pl.pallas_call(
        kernel,
        out_shape=out_shapes,
        grid_spec=grid_spec,
        compiler_params=pltpu.CompilerParams(
            dimension_semantics=("parallel", "arbitrary", "arbitrary"),
            vmem_limit_bytes=vmem_limit),
    )(x3d, wih0, wih_rest, b_all, whh_all, h0_p, c0_p, wfc, bfc)

    out = out_pad[:B, :O]
    h_n = h_T.reshape(n_layers, B_pad, Hp)[:, :B, :H]
    c_n = c_T.reshape(n_layers, B_pad, Hp)[:, :B, :H]
    return out, (h_n, c_n)


# ----------------------------------------------------------------------------
# Demo
# ----------------------------------------------------------------------------
if __name__ == "__main__":
    output_size = 3
    embedding_dim = 32
    hidden_dim = 32
    n_layers = 2
    batch = 2
    seq = 8

    key = jax.random.PRNGKey(0)
    k_params, k_x, k_h, k_c = jax.random.split(key, 4)

    params = init_params(k_params, output_size, embedding_dim, hidden_dim, n_layers)

    x = jax.random.normal(k_x, (batch, seq, embedding_dim), jnp.float32)
    # init_hidden uses torch.rand -> U[0,1)
    h0 = jax.random.uniform(k_h, (n_layers, batch, hidden_dim), jnp.float32)
    c0 = jax.random.uniform(k_c, (n_layers, batch, hidden_dim), jnp.float32)

    fwd = jax.jit(functools.partial(lstm_multiclassifier_forward, params))
    out, (h_n, c_n) = fwd(x, (h0, c0))
    jax.block_until_ready((out, h_n, c_n))

    assert out.shape == (batch, output_size)
    assert h_n.shape == (n_layers, batch, hidden_dim)
    assert c_n.shape == (n_layers, batch, hidden_dim)
    assert bool(jnp.all(jnp.isfinite(out)))
    assert bool(jnp.all(jnp.isfinite(h_n))) and bool(jnp.all(jnp.isfinite(c_n)))
    print("KERNEL_OK")
</pallas_src>

<mosaic_0001>
module attributes {stable_mosaic.version = 11 : i64} {
  func.func @_lstm_stack_kernel(%arg0: i32, %arg1: i32, %arg2: i32, %arg3: memref<1x64x32xf32, #tpu.memory_space<vmem>>, %arg4: memref<32x512xf32, #tpu.memory_space<vmem>>, %arg5: memref<1x128x512xf32, #tpu.memory_space<vmem>>, %arg6: memref<1x1x512xf32, #tpu.memory_space<vmem>>, %arg7: memref<1x128x512xf32, #tpu.memory_space<vmem>>, %arg8: memref<1x8x128xf32, #tpu.memory_space<vmem>>, %arg9: memref<1x8x128xf32, #tpu.memory_space<vmem>>, %arg10: memref<128x128xf32, #tpu.memory_space<vmem>>, %arg11: memref<1x128xf32, #tpu.memory_space<vmem>>, %arg12: memref<1x8x128xf32, #tpu.memory_space<vmem>>, %arg13: memref<1x8x128xf32, #tpu.memory_space<vmem>>, %arg14: memref<8x128xf32, #tpu.memory_space<vmem>>, %arg15: memref<64x512xf32, #tpu.memory_space<vmem>>, %arg16: memref<64x128xbf16, #tpu.memory_space<vmem>>, %arg17: memref<2x8x128xf32, #tpu.memory_space<vmem>>, %arg18: memref<2x8x128xf32, #tpu.memory_space<vmem>>) attributes {dimension_semantics = [#tpu.dimension_semantics<parallel>, #tpu.dimension_semantics<arbitrary>, #tpu.dimension_semantics<arbitrary>], iteration_bounds = array<i64: 1, 1, 2>, scalar_prefetch = 0 : i64, scratch_operands = 4 : i64, tpu.core_type = #tpu.core_type<tc>, window_params = [{transform_indices = @transform_0, window_bounds = array<i64: 1, 64, 32>}, {pipeline_mode = #tpu.pipeline_mode<synchronous>, transform_indices = @transform_1, window_bounds = array<i64: 32, 512>}, {transform_indices = @transform_2, window_bounds = array<i64: 1, 128, 512>}, {transform_indices = @transform_3, window_bounds = array<i64: 1, 1, 512>}, {transform_indices = @transform_4, window_bounds = array<i64: 1, 128, 512>}, {transform_indices = @transform_5, window_bounds = array<i64: 1, 8, 128>}, {transform_indices = @transform_6, window_bounds = array<i64: 1, 8, 128>}, {pipeline_mode = #tpu.pipeline_mode<synchronous>, transform_indices = @transform_7, window_bounds = array<i64: 128, 128>}, {pipeline_mode = #tpu.pipeline_mode<synchronous>, transform_indices = @transform_8, window_bounds = array<i64: 1, 128>}, {transform_indices = @transform_9, window_bounds = array<i64: 1, 8, 128>}, {transform_indices = @transform_10, window_bounds = array<i64: 1, 8, 128>}, {transform_indices = @transform_11, window_bounds = array<i64: 8, 128>}]} {
    %c0 = arith.constant 0 : index
    %c0_0 = arith.constant 0 : index
    %c0_1 = arith.constant 0 : index
    %0 = vector.load %arg6[%c0, %c0_0, %c0_1] : memref<1x1x512xf32, #tpu.memory_space<vmem>>, vector<1x1x512xf32>
    %1 = vector.shape_cast %0 : vector<1x1x512xf32> to vector<1x512xf32>
    %c0_i32 = arith.constant 0 : i32
    %2 = arith.cmpi eq, %arg2, %c0_i32 : i32
    %3 = arith.extui %2 : i1 to i32
    %c0_i32_2 = arith.constant 0 : i32
    %4 = arith.cmpi ne, %3, %c0_i32_2 : i32
    scf.if %4 {
      %c0_67 = arith.constant 0 : index
      %c0_68 = arith.constant 0 : index
      %c0_69 = arith.constant 0 : index
      %238 = vector.load %arg3[%c0_67, %c0_68, %c0_69] : memref<1x64x32xf32, #tpu.memory_space<vmem>>, vector<1x64x32xf32>
      %239 = vector.shape_cast %238 : vector<1x64x32xf32> to vector<64x32xf32>
      %c0_70 = arith.constant 0 : index
      %c0_71 = arith.constant 0 : index
      %240 = vector.load %arg4[%c0_70, %c0_71] : memref<32x512xf32, #tpu.memory_space<vmem>>, vector<32x512xf32>
      %cst_72 = arith.constant dense<0.000000e+00> : vector<64x512xf32>
      %241 = tpu.matmul %239, %240, %cst_72 {dimension_numbers = #tpu.dot_dimension_numbers<[1], [0], [0], [1], [0, 0, 1, 1], [], []>} : vector<64x32xf32>, vector<32x512xf32>, vector<64x512xf32> -> vector<64x512xf32>
      %242 = vector.broadcast %1 : vector<1x512xf32> to vector<64x512xf32>
      %243 = arith.addf %241, %242 : vector<64x512xf32>
      %c0_73 = arith.constant 0 : index
      %c0_74 = arith.constant 0 : index
      %244 = vector.load %arg15[%c0_73, %c0_74] : memref<64x512xf32, #tpu.memory_space<vmem>>, vector<64x512xf32>
      tpu.vector_store %arg15[%c0_73, %c0_74], %243 {strides = array<i32>} : memref<64x512xf32, #tpu.memory_space<vmem>>, vector<64x512xf32>,
    } else {
    }
    %c0_i32_3 = arith.constant 0 : i32
    %5 = arith.cmpi sgt, %arg2, %c0_i32_3 : i32
    %6 = arith.extui %5 : i1 to i32
    %c0_i32_4 = arith.constant 0 : i32
    %7 = arith.cmpi ne, %6, %c0_i32_4 : i32
    scf.if %7 {
      %c0_67 = arith.constant 0 : index
      %c0_68 = arith.constant 0 : index
      %238 = vector.load %arg16[%c0_67, %c0_68] : memref<64x128xbf16, #tpu.memory_space<vmem>>, vector<64x128xbf16>
      %239 = arith.extf %238 : vector<64x128xbf16> to vector<64x128xf32>
      %c0_69 = arith.constant 0 : index
      %c0_70 = arith.constant 0 : index
      %c0_71 = arith.constant 0 : index
      %240 = vector.load %arg5[%c0_69, %c0_70, %c0_71] : memref<1x128x512xf32, #tpu.memory_space<vmem>>, vector<1x128x512xf32>
      %241 = vector.shape_cast %240 : vector<1x128x512xf32> to vector<128x512xf32>
      %cst_72 = arith.constant dense<0.000000e+00> : vector<64x512xf32>
      %242 = tpu.matmul %239, %241, %cst_72 {dimension_numbers = #tpu.dot_dimension_numbers<[1], [0], [0], [1], [0, 0, 1, 1], [], []>} : vector<64x128xf32>, vector<128x512xf32>, vector<64x512xf32> -> vector<64x512xf32>
      %243 = vector.broadcast %1 : vector<1x512xf32> to vector<64x512xf32>
      %244 = arith.addf %242, %243 : vector<64x512xf32>
      %c0_73 = arith.constant 0 : index
      %c0_74 = arith.constant 0 : index
      %245 = vector.load %arg15[%c0_73, %c0_74] : memref<64x512xf32, #tpu.memory_space<vmem>>, vector<64x512xf32>
      tpu.vector_store %arg15[%c0_73, %c0_74], %244 {strides = array<i32>} : memref<64x512xf32, #tpu.memory_space<vmem>>, vector<64x512xf32>,
    } else {
    }
    %c0_i32_5 = arith.constant 0 : i32
    %8 = arith.cmpi eq, %arg1, %c0_i32_5 : i32
    %9 = arith.extui %8 : i1 to i32
    %c0_i32_6 = arith.constant 0 : i32
    %10 = arith.cmpi ne, %9, %c0_i32_6 : i32
    scf.if %10 {
      %c0_67 = arith.constant 0 : index
      %c0_68 = arith.constant 0 : index
      %c0_69 = arith.constant 0 : index
      %238 = vector.load %arg8[%c0_67, %c0_68, %c0_69] : memref<1x8x128xf32, #tpu.memory_space<vmem>>, vector<1x8x128xf32>
      %239 = vector.shape_cast %238 : vector<1x8x128xf32> to vector<8x128xf32>
      %240 = arith.index_cast %arg2 : i32 to index
      %c0_70 = arith.constant 0 : index
      %c0_71 = arith.constant 0 : index
      %241 = vector.load %arg17[%240, %c0_70, %c0_71] : memref<2x8x128xf32, #tpu.memory_space<vmem>>, vector<1x8x128xf32>
      %242 = vector.shape_cast %241 : vector<1x8x128xf32> to vector<8x128xf32>
      %243 = vector.shape_cast %239 : vector<8x128xf32> to vector<1x8x128xf32>
      tpu.vector_store %arg17[%240, %c0_70, %c0_71], %243 {strides = array<i32>} : memref<2x8x128xf32, #tpu.memory_space<vmem>>, vector<1x8x128xf32>,
      %c0_72 = arith.constant 0 : index
      %c0_73 = arith.constant 0 : index
      %c0_74 = arith.constant 0 : index
      %244 = vector.load %arg9[%c0_72, %c0_73, %c0_74] : memref<1x8x128xf32, #tpu.memory_space<vmem>>, vector<1x8x128xf32>
      %245 = vector.shape_cast %244 : vector<1x8x128xf32> to vector<8x128xf32>
      %246 = arith.index_cast %arg2 : i32 to index
      %c0_75 = arith.constant 0 : index
      %c0_76 = arith.constant 0 : index
      %247 = vector.load %arg18[%246, %c0_75, %c0_76] : memref<2x8x128xf32, #tpu.memory_space<vmem>>, vector<1x8x128xf32>
      %248 = vector.shape_cast %247 : vector<1x8x128xf32> to vector<8x128xf32>
      %249 = vector.shape_cast %245 : vector<8x128xf32> to vector<1x8x128xf32>
      tpu.vector_store %arg18[%246, %c0_75, %c0_76], %249 {strides = array<i32>} : memref<2x8x128xf32, #tpu.memory_space<vmem>>, vector<1x8x128xf32>,
    } else {
    }
    %c0_7 = arith.constant 0 : index
    %c0_8 = arith.constant 0 : index
    %c0_9 = arith.constant 0 : index
    %11 = vector.load %arg7[%c0_7, %c0_8, %c0_9] : memref<1x128x512xf32, #tpu.memory_space<vmem>>, vector<1x128x512xf32>
    %12 = vector.shape_cast %11 : vector<1x128x512xf32> to vector<128x512xf32>
    %13 = arith.index_cast %arg2 : i32 to index
    %c0_10 = arith.constant 0 : index
    %c0_11 = arith.constant 0 : index
    %14 = vector.load %arg17[%13, %c0_10, %c0_11] : memref<2x8x128xf32, #tpu.memory_space<vmem>>, vector<1x8x128xf32>
    %15 = vector.shape_cast %14 : vector<1x8x128xf32> to vector<8x128xf32>
    %16 = arith.index_cast %arg2 : i32 to index
    %c0_12 = arith.constant 0 : index
    %c0_13 = arith.constant 0 : index
    %17 = vector.load %arg18[%16, %c0_12, %c0_13] : memref<2x8x128xf32, #tpu.memory_space<vmem>>, vector<1x8x128xf32>
    %18 = vector.shape_cast %17 : vector<1x8x128xf32> to vector<8x128xf32>
    %c0_i32_14 = arith.constant 0 : i32
    %c8_i32 = arith.constant 8 : i32
    %19 = arith.muli %c0_i32_14, %c8_i32 : i32
    %20 = tpu.assume_multiple %19, 8 : i32
    %21 = arith.index_cast %20 : i32 to index
    %c0_15 = arith.constant 0 : index
    %22 = vector.load %arg15[%21, %c0_15] : memref<64x512xf32, #tpu.memory_space<vmem>>, vector<8x512xf32>
    %cst = arith.constant dense<0.000000e+00> : vector<8x512xf32>
    %23 = tpu.matmul %15, %12, %cst {dimension_numbers = #tpu.dot_dimension_numbers<[1], [0], [0], [1], [0, 0, 1, 1], [], []>} : vector<8x128xf32>, vector<128x512xf32>, vector<8x512xf32> -> vector<8x512xf32>
    %24 = arith.addf %22, %23 : vector<8x512xf32>
    %25 = vector.extract_strided_slice %24 {offsets = [0, 0], sizes = [8, 384], strides = [1, 1]} : vector<8x512xf32> to vector<8x384xf32>
    %26 = arith.negf %25 : vector<8x384xf32>
    %27 = math.exp %26 : vector<8x384xf32>
    %cst_16 = arith.constant 1.000000e+00 : f32
    %28 = vector.broadcast %cst_16 : f32 to vector<8x384xf32>
    %29 = arith.addf %28, %27 : vector<8x384xf32>
    %30 = arith.divf %28, %29 : vector<8x384xf32>
    %31 = vector.extract_strided_slice %24 {offsets = [0, 384], sizes = [8, 128], strides = [1, 1]} : vector<8x512xf32> to vector<8x128xf32>
    %32 = math.tanh %31 : vector<8x128xf32>
    %33 = vector.extract_strided_slice %30 {offsets = [0, 0], sizes = [8, 128], strides = [1, 1]} : vector<8x384xf32> to vector<8x128xf32>
    %34 = vector.extract_strided_slice %30 {offsets = [0, 128], sizes = [8, 128], strides = [1, 1]} : vector<8x384xf32> to vector<8x128xf32>
    %35 = vector.extract_strided_slice %30 {offsets = [0, 256], sizes = [8, 128], strides = [1, 1]} : vector<8x384xf32> to vector<8x128xf32>
    %36 = arith.mulf %34, %18 : vector<8x128xf32>
    %37 = arith.mulf %33, %32 : vector<8x128xf32>
    %38 = arith.addf %36, %37 : vector<8x128xf32>
    %39 = math.tanh %38 : vector<8x128xf32>
    %40 = arith.mulf %35, %39 : vector<8x128xf32>
    %41 = arith.truncf %40 : vector<8x128xf32> to vector<8x128xbf16>
    %42 = arith.index_cast %20 : i32 to index
    %c0_17 = arith.constant 0 : index
    %43 = vector.load %arg16[%42, %c0_17] : memref<64x128xbf16, #tpu.memory_space<vmem>>, vector<8x128xbf16>
    tpu.vector_store %arg16[%42, %c0_17], %41 {strides = array<i32>} : memref<64x128xbf16, #tpu.memory_space<vmem>>, vector<8x128xbf16>,
    %c1_i32 = arith.constant 1 : i32
    %c8_i32_18 = arith.constant 8 : i32
    %44 = arith.muli %c1_i32, %c8_i32_18 : i32
    %45 = tpu.assume_multiple %44, 8 : i32
    %46 = arith.index_cast %45 : i32 to index
    %c0_19 = arith.constant 0 : index
    %47 = vector.load %arg15[%46, %c0_19] : memref<64x512xf32, #tpu.memory_space<vmem>>, vector<8x512xf32>
    %cst_20 = arith.constant dense<0.000000e+00> : vector<8x512xf32>
    %48 = tpu.matmul %40, %12, %cst_20 {dimension_numbers = #tpu.dot_dimension_numbers<[1], [0], [0], [1], [0, 0, 1, 1], [], []>} : vector<8x128xf32>, vector<128x512xf32>, vector<8x512xf32> -> vector<8x512xf32>
    %49 = arith.addf %47, %48 : vector<8x512xf32>
    %50 = vector.extract_strided_slice %49 {offsets = [0, 0], sizes = [8, 384], strides = [1, 1]} : vector<8x512xf32> to vector<8x384xf32>
    %51 = arith.negf %50 : vector<8x384xf32>
    %52 = math.exp %51 : vector<8x384xf32>
    %cst_21 = arith.constant 1.000000e+00 : f32
    %53 = vector.broadcast %cst_21 : f32 to vector<8x384xf32>
    %54 = arith.addf %53, %52 : vector<8x384xf32>
    %55 = arith.divf %53, %54 : vector<8x384xf32>
    %56 = vector.extract_strided_slice %49 {offsets = [0, 384], sizes = [8, 128], strides = [1, 1]} : vector<8x512xf32> to vector<8x128xf32>
    %57 = math.tanh %56 : vector<8x128xf32>
    %58 = vector.extract_strided_slice %55 {offsets = [0, 0], sizes = [8, 128], strides = [1, 1]} : vector<8x384xf32> to vector<8x128xf32>
    %59 = vector.extract_strided_slice %55 {offsets = [0, 128], sizes = [8, 128], strides = [1, 1]} : vector<8x384xf32> to vector<8x128xf32>
    %60 = vector.extract_strided_slice %55 {offsets = [0, 256], sizes = [8, 128], strides = [1, 1]} : vector<8x384xf32> to vector<8x128xf32>
    %61 = arith.mulf %59, %38 : vector<8x128xf32>
    %62 = arith.mulf %58, %57 : vector<8x128xf32>
    %63 = arith.addf %61, %62 : vector<8x128xf32>
    %64 = math.tanh %63 : vector<8x128xf32>
    %65 = arith.mulf %60, %64 : vector<8x128xf32>
    %66 = arith.truncf %65 : vector<8x128xf32> to vector<8x128xbf16>
    %67 = arith.index_cast %45 : i32 to index
    %c0_22 = arith.constant 0 : index
    %68 = vector.load %arg16[%67, %c0_22] : memref<64x128xbf16, #tpu.memory_space<vmem>>, vector<8x128xbf16>
    tpu.vector_store %arg16[%67, %c0_22], %66 {strides = array<i32>} : memref<64x128xbf16, #tpu.memory_space<vmem>>, vector<8x128xbf16>,
    %c2_i32 = arith.constant 2 : i32
    %c8_i32_23 = arith.constant 8 : i32
    %69 = arith.muli %c2_i32, %c8_i32_23 : i32
    %70 = tpu.assume_multiple %69, 8 : i32
    %71 = arith.index_cast %70 : i32 to index
    %c0_24 = arith.constant 0 : index
    %72 = vector.load %arg15[%71, %c0_24] : memref<64x512xf32, #tpu.memory_space<vmem>>, vector<8x512xf32>
    %cst_25 = arith.constant dense<0.000000e+00> : vector<8x512xf32>
    %73 = tpu.matmul %65, %12, %cst_25 {dimension_numbers = #tpu.dot_dimension_numbers<[1], [0], [0], [1], [0, 0, 1, 1], [], []>} : vector<8x128xf32>, vector<128x512xf32>, vector<8x512xf32> -> vector<8x512xf32>
    %74 = arith.addf %72, %73 : vector<8x512xf32>
    %75 = vector.extract_strided_slice %74 {offsets = [0, 0], sizes = [8, 384], strides = [1, 1]} : vector<8x512xf32> to vector<8x384xf32>
    %76 = arith.negf %75 : vector<8x384xf32>
    %77 = math.exp %76 : vector<8x384xf32>
    %cst_26 = arith.constant 1.000000e+00 : f32
    %78 = vector.broadcast %cst_26 : f32 to vector<8x384xf32>
    %79 = arith.addf %78, %77 : vector<8x384xf32>
    %80 = arith.divf %78, %79 : vector<8x384xf32>
    %81 = vector.extract_strided_slice %74 {offsets = [0, 384], sizes = [8, 128], strides = [1, 1]} : vector<8x512xf32> to vector<8x128xf32>
    %82 = math.tanh %81 : vector<8x128xf32>
    %83 = vector.extract_strided_slice %80 {offsets = [0, 0], sizes = [8, 128], strides = [1, 1]} : vector<8x384xf32> to vector<8x128xf32>
    %84 = vector.extract_strided_slice %80 {offsets = [0, 128], sizes = [8, 128], strides = [1, 1]} : vector<8x384xf32> to vector<8x128xf32>
    %85 = vector.extract_strided_slice %80 {offsets = [0, 256], sizes = [8, 128], strides = [1, 1]} : vector<8x384xf32> to vector<8x128xf32>
    %86 = arith.mulf %84, %63 : vector<8x128xf32>
    %87 = arith.mulf %83, %82 : vector<8x128xf32>
    %88 = arith.addf %86, %87 : vector<8x128xf32>
    %89 = math.tanh %88 : vector<8x128xf32>
    %90 = arith.mulf %85, %89 : vector<8x128xf32>
    %91 = arith.truncf %90 : vector<8x128xf32> to vector<8x128xbf16>
    %92 = arith.index_cast %70 : i32 to index
    %c0_27 = arith.constant 0 : index
    %93 = vector.load %arg16[%92, %c0_27] : memref<64x128xbf16, #tpu.memory_space<vmem>>, vector<8x128xbf16>
    tpu.vector_store %arg16[%92, %c0_27], %91 {strides = array<i32>} : memref<64x128xbf16, #tpu.memory_space<vmem>>, vector<8x128xbf16>,
    %c3_i32 = arith.constant 3 : i32
    %c8_i32_28 = arith.constant 8 : i32
    %94 = arith.muli %c3_i32, %c8_i32_28 : i32
    %95 = tpu.assume_multiple %94, 8 : i32
    %96 = arith.index_cast %95 : i32 to index
    %c0_29 = arith.constant 0 : index
    %97 = vector.load %arg15[%96, %c0_29] : memref<64x512xf32, #tpu.memory_space<vmem>>, vector<8x512xf32>
    %cst_30 = arith.constant dense<0.000000e+00> : vector<8x512xf32>
    %98 = tpu.matmul %90, %12, %cst_30 {dimension_numbers = #tpu.dot_dimension_numbers<[1], [0], [0], [1], [0, 0, 1, 1], [], []>} : vector<8x128xf32>, vector<128x512xf32>, vector<8x512xf32> -> vector<8x512xf32>
    %99 = arith.addf %97, %98 : vector<8x512xf32>
    %100 = vector.extract_strided_slice %99 {offsets = [0, 0], sizes = [8, 384], strides = [1, 1]} : vector<8x512xf32> to vector<8x384xf32>
    %101 = arith.negf %100 : vector<8x384xf32>
    %102 = math.exp %101 : vector<8x384xf32>
    %cst_31 = arith.constant 1.000000e+00 : f32
    %103 = vector.broadcast %cst_31 : f32 to vector<8x384xf32>
    %104 = arith.addf %103, %102 : vector<8x384xf32>
    %105 = arith.divf %103, %104 : vector<8x384xf32>
    %106 = vector.extract_strided_slice %99 {offsets = [0, 384], sizes = [8, 128], strides = [1, 1]} : vector<8x512xf32> to vector<8x128xf32>
    %107 = math.tanh %106 : vector<8x128xf32>
    %108 = vector.extract_strided_slice %105 {offsets = [0, 0], sizes = [8, 128], strides = [1, 1]} : vector<8x384xf32> to vector<8x128xf32>
    %109 = vector.extract_strided_slice %105 {offsets = [0, 128], sizes = [8, 128], strides = [1, 1]} : vector<8x384xf32> to vector<8x128xf32>
    %110 = vector.extract_strided_slice %105 {offsets = [0, 256], sizes = [8, 128], strides = [1, 1]} : vector<8x384xf32> to vector<8x128xf32>
    %111 = arith.mulf %109, %88 : vector<8x128xf32>
    %112 = arith.mulf %108, %107 : vector<8x128xf32>
    %113 = arith.addf %111, %112 : vector<8x128xf32>
    %114 = math.tanh %113 : vector<8x128xf32>
    %115 = arith.mulf %110, %114 : vector<8x128xf32>
    %116 = arith.truncf %115 : vector<8x128xf32> to vector<8x128xbf16>
    %117 = arith.index_cast %95 : i32 to index
    %c0_32 = arith.constant 0 : index
    %118 = vector.load %arg16[%117, %c0_32] : memref<64x128xbf16, #tpu.memory_space<vmem>>, vector<8x128xbf16>
    tpu.vector_store %arg16[%117, %c0_32], %116 {strides = array<i32>} : memref<64x128xbf16, #tpu.memory_space<vmem>>, vector<8x128xbf16>,
    %c4_i32 = arith.constant 4 : i32
    %c8_i32_33 = arith.constant 8 : i32
    %119 = arith.muli %c4_i32, %c8_i32_33 : i32
    %120 = tpu.assume_multiple %119, 8 : i32
    %121 = arith.index_cast %120 : i32 to index
    %c0_34 = arith.constant 0 : index
    %122 = vector.load %arg15[%121, %c0_34] : memref<64x512xf32, #tpu.memory_space<vmem>>, vector<8x512xf32>
    %cst_35 = arith.constant dense<0.000000e+00> : vector<8x512xf32>
    %123 = tpu.matmul %115, %12, %cst_35 {dimension_numbers = #tpu.dot_dimension_numbers<[1], [0], [0], [1], [0, 0, 1, 1], [], []>} : vector<8x128xf32>, vector<128x512xf32>, vector<8x512xf32> -> vector<8x512xf32>
    %124 = arith.addf %122, %123 : vector<8x512xf32>
    %125 = vector.extract_strided_slice %124 {offsets = [0, 0], sizes = [8, 384], strides = [1, 1]} : vector<8x512xf32> to vector<8x384xf32>
    %126 = arith.negf %125 : vector<8x384xf32>
    %127 = math.exp %126 : vector<8x384xf32>
    %cst_36 = arith.constant 1.000000e+00 : f32
    %128 = vector.broadcast %cst_36 : f32 to vector<8x384xf32>
    %129 = arith.addf %128, %127 : vector<8x384xf32>
    %130 = arith.divf %128, %129 : vector<8x384xf32>
    %131 = vector.extract_strided_slice %124 {offsets = [0, 384], sizes = [8, 128], strides = [1, 1]} : vector<8x512xf32> to vector<8x128xf32>
    %132 = math.tanh %131 : vector<8x128xf32>
    %133 = vector.extract_strided_slice %130 {offsets = [0, 0], sizes = [8, 128], strides = [1, 1]} : vector<8x384xf32> to vector<8x128xf32>
    %134 = vector.extract_strided_slice %130 {offsets = [0, 128], sizes = [8, 128], strides = [1, 1]} : vector<8x384xf32> to vector<8x128xf32>
    %135 = vector.extract_strided_slice %130 {offsets = [0, 256], sizes = [8, 128], strides = [1, 1]} : vector<8x384xf32> to vector<8x128xf32>
    %136 = arith.mulf %134, %113 : vector<8x128xf32>
    %137 = arith.mulf %133, %132 : vector<8x128xf32>
    %138 = arith.addf %136, %137 : vector<8x128xf32>
    %139 = math.tanh %138 : vector<8x128xf32>
    %140 = arith.mulf %135, %139 : vector<8x128xf32>
    %141 = arith.truncf %140 : vector<8x128xf32> to vector<8x128xbf16>
    %142 = arith.index_cast %120 : i32 to index
    %c0_37 = arith.constant 0 : index
    %143 = vector.load %arg16[%142, %c0_37] : memref<64x128xbf16, #tpu.memory_space<vmem>>, vector<8x128xbf16>
    tpu.vector_store %arg16[%142, %c0_37], %141 {strides = array<i32>} : memref<64x128xbf16, #tpu.memory_space<vmem>>, vector<8x128xbf16>,
    %c5_i32 = arith.constant 5 : i32
    %c8_i32_38 = arith.constant 8 : i32
    %144 = arith.muli %c5_i32, %c8_i32_38 : i32
    %145 = tpu.assume_multiple %144, 8 : i32
    %146 = arith.index_cast %145 : i32 to index
    %c0_39 = arith.constant 0 : index
    %147 = vector.load %arg15[%146, %c0_39] : memref<64x512xf32, #tpu.memory_space<vmem>>, vector<8x512xf32>
    %cst_40 = arith.constant dense<0.000000e+00> : vector<8x512xf32>
    %148 = tpu.matmul %140, %12, %cst_40 {dimension_numbers = #tpu.dot_dimension_numbers<[1], [0], [0], [1], [0, 0, 1, 1], [], []>} : vector<8x128xf32>, vector<128x512xf32>, vector<8x512xf32> -> vector<8x512xf32>
    %149 = arith.addf %147, %148 : vector<8x512xf32>
    %150 = vector.extract_strided_slice %149 {offsets = [0, 0], sizes = [8, 384], strides = [1, 1]} : vector<8x512xf32> to vector<8x384xf32>
    %151 = arith.negf %150 : vector<8x384xf32>
    %152 = math.exp %151 : vector<8x384xf32>
    %cst_41 = arith.constant 1.000000e+00 : f32
    %153 = vector.broadcast %cst_41 : f32 to vector<8x384xf32>
    %154 = arith.addf %153, %152 : vector<8x384xf32>
    %155 = arith.divf %153, %154 : vector<8x384xf32>
    %156 = vector.extract_strided_slice %149 {offsets = [0, 384], sizes = [8, 128], strides = [1, 1]} : vector<8x512xf32> to vector<8x128xf32>
    %157 = math.tanh %156 : vector<8x128xf32>
    %158 = vector.extract_strided_slice %155 {offsets = [0, 0], sizes = [8, 128], strides = [1, 1]} : vector<8x384xf32> to vector<8x128xf32>
    %159 = vector.extract_strided_slice %155 {offsets = [0, 128], sizes = [8, 128], strides = [1, 1]} : vector<8x384xf32> to vector<8x128xf32>
    %160 = vector.extract_strided_slice %155 {offsets = [0, 256], sizes = [8, 128], strides = [1, 1]} : vector<8x384xf32> to vector<8x128xf32>
    %161 = arith.mulf %159, %138 : vector<8x128xf32>
    %162 = arith.mulf %158, %157 : vector<8x128xf32>
    %163 = arith.addf %161, %162 : vector<8x128xf32>
    %164 = math.tanh %163 : vector<8x128xf32>
    %165 = arith.mulf %160, %164 : vector<8x128xf32>
    %166 = arith.truncf %165 : vector<8x128xf32> to vector<8x128xbf16>
    %167 = arith.index_cast %145 : i32 to index
    %c0_42 = arith.constant 0 : index
    %168 = vector.load %arg16[%167, %c0_42] : memref<64x128xbf16, #tpu.memory_space<vmem>>, vector<8x128xbf16>
    tpu.vector_store %arg16[%167, %c0_42], %166 {strides = array<i32>} : memref<64x128xbf16, #tpu.memory_space<vmem>>, vector<8x128xbf16>,
    %c6_i32 = arith.constant 6 : i32
    %c8_i32_43 = arith.constant 8 : i32
    %169 = arith.muli %c6_i32, %c8_i32_43 : i32
    %170 = tpu.assume_multiple %169, 8 : i32
    %171 = arith.index_cast %170 : i32 to index
    %c0_44 = arith.constant 0 : index
    %172 = vector.load %arg15[%171, %c0_44] : memref<64x512xf32, #tpu.memory_space<vmem>>, vector<8x512xf32>
    %cst_45 = arith.constant dense<0.000000e+00> : vector<8x512xf32>
    %173 = tpu.matmul %165, %12, %cst_45 {dimension_numbers = #tpu.dot_dimension_numbers<[1], [0], [0], [1], [0, 0, 1, 1], [], []>} : vector<8x128xf32>, vector<128x512xf32>, vector<8x512xf32> -> vector<8x512xf32>
    %174 = arith.addf %172, %173 : vector<8x512xf32>
    %175 = vector.extract_strided_slice %174 {offsets = [0, 0], sizes = [8, 384], strides = [1, 1]} : vector<8x512xf32> to vector<8x384xf32>
    %176 = arith.negf %175 : vector<8x384xf32>
    %177 = math.exp %176 : vector<8x384xf32>
    %cst_46 = arith.constant 1.000000e+00 : f32
    %178 = vector.broadcast %cst_46 : f32 to vector<8x384xf32>
    %179 = arith.addf %178, %177 : vector<8x384xf32>
    %180 = arith.divf %178, %179 : vector<8x384xf32>
    %181 = vector.extract_strided_slice %174 {offsets = [0, 384], sizes = [8, 128], strides = [1, 1]} : vector<8x512xf32> to vector<8x128xf32>
    %182 = math.tanh %181 : vector<8x128xf32>
    %183 = vector.extract_strided_slice %180 {offsets = [0, 0], sizes = [8, 128], strides = [1, 1]} : vector<8x384xf32> to vector<8x128xf32>
    %184 = vector.extract_strided_slice %180 {offsets = [0, 128], sizes = [8, 128], strides = [1, 1]} : vector<8x384xf32> to vector<8x128xf32>
    %185 = vector.extract_strided_slice %180 {offsets = [0, 256], sizes = [8, 128], strides = [1, 1]} : vector<8x384xf32> to vector<8x128xf32>
    %186 = arith.mulf %184, %163 : vector<8x128xf32>
    %187 = arith.mulf %183, %182 : vector<8x128xf32>
    %188 = arith.addf %186, %187 : vector<8x128xf32>
    %189 = math.tanh %188 : vector<8x128xf32>
    %190 = arith.mulf %185, %189 : vector<8x128xf32>
    %191 = arith.truncf %190 : vector<8x128xf32> to vector<8x128xbf16>
    %192 = arith.index_cast %170 : i32 to index
    %c0_47 = arith.constant 0 : index
    %193 = vector.load %arg16[%192, %c0_47] : memref<64x128xbf16, #tpu.memory_space<vmem>>, vector<8x128xbf16>
    tpu.vector_store %arg16[%192, %c0_47], %191 {strides = array<i32>} : memref<64x128xbf16, #tpu.memory_space<vmem>>, vector<8x128xbf16>,
    %c7_i32 = arith.constant 7 : i32
    %c8_i32_48 = arith.constant 8 : i32
    %194 = arith.muli %c7_i32, %c8_i32_48 : i32
    %195 = tpu.assume_multiple %194, 8 : i32
    %196 = arith.index_cast %195 : i32 to index
    %c0_49 = arith.constant 0 : index
    %197 = vector.load %arg15[%196, %c0_49] : memref<64x512xf32, #tpu.memory_space<vmem>>, vector<8x512xf32>
    %cst_50 = arith.constant dense<0.000000e+00> : vector<8x512xf32>
    %198 = tpu.matmul %190, %12, %cst_50 {dimension_numbers = #tpu.dot_dimension_numbers<[1], [0], [0], [1], [0, 0, 1, 1], [], []>} : vector<8x128xf32>, vector<128x512xf32>, vector<8x512xf32> -> vector<8x512xf32>
    %199 = arith.addf %197, %198 : vector<8x512xf32>
    %200 = vector.extract_strided_slice %199 {offsets = [0, 0], sizes = [8, 384], strides = [1, 1]} : vector<8x512xf32> to vector<8x384xf32>
    %201 = arith.negf %200 : vector<8x384xf32>
    %202 = math.exp %201 : vector<8x384xf32>
    %cst_51 = arith.constant 1.000000e+00 : f32
    %203 = vector.broadcast %cst_51 : f32 to vector<8x384xf32>
    %204 = arith.addf %203, %202 : vector<8x384xf32>
    %205 = arith.divf %203, %204 : vector<8x384xf32>
    %206 = vector.extract_strided_slice %199 {offsets = [0, 384], sizes = [8, 128], strides = [1, 1]} : vector<8x512xf32> to vector<8x128xf32>
    %207 = math.tanh %206 : vector<8x128xf32>
    %208 = vector.extract_strided_slice %205 {offsets = [0, 0], sizes = [8, 128], strides = [1, 1]} : vector<8x384xf32> to vector<8x128xf32>
    %209 = vector.extract_strided_slice %205 {offsets = [0, 128], sizes = [8, 128], strides = [1, 1]} : vector<8x384xf32> to vector<8x128xf32>
    %210 = vector.extract_strided_slice %205 {offsets = [0, 256], sizes = [8, 128], strides = [1, 1]} : vector<8x384xf32> to vector<8x128xf32>
    %211 = arith.mulf %209, %188 : vector<8x128xf32>
    %212 = arith.mulf %208, %207 : vector<8x128xf32>
    %213 = arith.addf %211, %212 : vector<8x128xf32>
    %214 = math.tanh %213 : vector<8x128xf32>
    %215 = arith.mulf %210, %214 : vector<8x128xf32>
    %216 = arith.truncf %215 : vector<8x128xf32> to vector<8x128xbf16>
    %217 = arith.index_cast %195 : i32 to index
    %c0_52 = arith.constant 0 : index
    %218 = vector.load %arg16[%217, %c0_52] : memref<64x128xbf16, #tpu.memory_space<vmem>>, vector<8x128xbf16>
    tpu.vector_store %arg16[%217, %c0_52], %216 {strides = array<i32>} : memref<64x128xbf16, #tpu.memory_space<vmem>>, vector<8x128xbf16>,
    %c8_i32_53 = arith.constant 8 : i32
    %219 = arith.index_cast %arg2 : i32 to index
    %c0_54 = arith.constant 0 : index
    %c0_55 = arith.constant 0 : index
    %220 = vector.load %arg17[%219, %c0_54, %c0_55] : memref<2x8x128xf32, #tpu.memory_space<vmem>>, vector<1x8x128xf32>
    %221 = vector.shape_cast %220 : vector<1x8x128xf32> to vector<8x128xf32>
    %222 = vector.shape_cast %215 : vector<8x128xf32> to vector<1x8x128xf32>
    tpu.vector_store %arg17[%219, %c0_54, %c0_55], %222 {strides = array<i32>} : memref<2x8x128xf32, #tpu.memory_space<vmem>>, vector<1x8x128xf32>,
    %223 = arith.index_cast %arg2 : i32 to index
    %c0_56 = arith.constant 0 : index
    %c0_57 = arith.constant 0 : index
    %224 = vector.load %arg18[%223, %c0_56, %c0_57] : memref<2x8x128xf32, #tpu.memory_space<vmem>>, vector<1x8x128xf32>
    %225 = vector.shape_cast %224 : vector<1x8x128xf32> to vector<8x128xf32>
    %226 = vector.shape_cast %213 : vector<8x128xf32> to vector<1x8x128xf32>
    tpu.vector_store %arg18[%223, %c0_56, %c0_57], %226 {strides = array<i32>} : memref<2x8x128xf32, #tpu.memory_space<vmem>>, vector<1x8x128xf32>,
    %c0_58 = arith.constant 0 : index
    %c0_59 = arith.constant 0 : index
    %c0_60 = arith.constant 0 : index
    %227 = vector.load %arg12[%c0_58, %c0_59, %c0_60] : memref<1x8x128xf32, #tpu.memory_space<vmem>>, vector<1x8x128xf32>
    %228 = vector.shape_cast %227 : vector<1x8x128xf32> to vector<8x128xf32>
    %229 = vector.shape_cast %215 : vector<8x128xf32> to vector<1x8x128xf32>
    tpu.vector_store %arg12[%c0_58, %c0_59, %c0_60], %229 {strides = array<i32>} : memref<1x8x128xf32, #tpu.memory_space<vmem>>, vector<1x8x128xf32>,
    %c0_61 = arith.constant 0 : index
    %c0_62 = arith.constant 0 : index
    %c0_63 = arith.constant 0 : index
    %230 = vector.load %arg13[%c0_61, %c0_62, %c0_63] : memref<1x8x128xf32, #tpu.memory_space<vmem>>, vector<1x8x128xf32>
    %231 = vector.shape_cast %230 : vector<1x8x128xf32> to vector<8x128xf32>
    %232 = vector.shape_cast %213 : vector<8x128xf32> to vector<1x8x128xf32>
    tpu.vector_store %arg13[%c0_61, %c0_62, %c0_63], %232 {strides = array<i32>} : memref<1x8x128xf32, #tpu.memory_space<vmem>>, vector<1x8x128xf32>,
    %c0_i32_64 = arith.constant 0 : i32
    %233 = arith.cmpi eq, %arg1, %c0_i32_64 : i32
    %c1_i32_65 = arith.constant 1 : i32
    %234 = arith.cmpi eq, %arg2, %c1_i32_65 : i32
    %235 = arith.andi %233, %234 : i1
    %236 = arith.extui %235 : i1 to i32
    %c0_i32_66 = arith.constant 0 : i32
    %237 = arith.cmpi ne, %236, %c0_i32_66 : i32
    scf.if %237 {
      %c0_67 = arith.constant 0 : index
      %c0_68 = arith.constant 0 : index
      %238 = vector.load %arg10[%c0_67, %c0_68] : memref<128x128xf32, #tpu.memory_space<vmem>>, vector<128x128xf32>
      %cst_69 = arith.constant dense<0.000000e+00> : vector<8x128xf32>
      %239 = tpu.matmul %215, %238, %cst_69 {dimension_numbers = #tpu.dot_dimension_numbers<[1], [0], [0], [1], [0, 0, 1, 1], [], []>} : vector<8x128xf32>, vector<128x128xf32>, vector<8x128xf32> -> vector<8x128xf32>
      %c0_70 = arith.constant 0 : index
      %c0_71 = arith.constant 0 : index
      %240 = vector.load %arg11[%c0_70, %c0_71] : memref<1x128xf32, #tpu.memory_space<vmem>>, vector<1x128xf32>
      %241 = vector.broadcast %240 : vector<1x128xf32> to vector<8x128xf32>
      %242 = arith.addf %239, %241 : vector<8x128xf32>
      %c0_72 = arith.constant 0 : index
      %c0_73 = arith.constant 0 : index
      %243 = vector.load %arg14[%c0_72, %c0_73] : memref<8x128xf32, #tpu.memory_space<vmem>>, vector<8x128xf32>
      tpu.vector_store %arg14[%c0_72, %c0_73], %242 {strides = array<i32>} : memref<8x128xf32, #tpu.memory_space<vmem>>, vector<8x128xf32>,
    } else {
    }
    return
  }
  func.func @transform_0(%arg0: i32, %arg1: i32, %arg2: i32) -> (i32, i32, i32) {
    %c0_i32 = arith.constant 0 : i32
    %c0_i32_0 = arith.constant 0 : i32
    return %arg0, %arg1, %c0_i32 : i32, i32, i32
  }
  func.func @transform_1(%arg0: i32, %arg1: i32, %arg2: i32) -> (i32, i32) {
    %c0_i32 = arith.constant 0 : i32
    %c0_i32_0 = arith.constant 0 : i32
    %c0_i32_1 = arith.constant 0 : i32
    return %c0_i32, %c0_i32_0 : i32, i32
  }
  func.func @transform_2(%arg0: i32, %arg1: i32, %arg2: i32) -> (i32, i32, i32) {
    %c1_i32 = arith.constant 1 : i32
    %0 = arith.subi %arg2, %c1_i32 : i32
    %c0_i32 = arith.constant 0 : i32
    %1 = arith.maxsi %0, %c0_i32 : i32
    %c0_i32_0 = arith.constant 0 : i32
    %c0_i32_1 = arith.constant 0 : i32
    %c0_i32_2 = arith.constant 0 : i32
    return %1, %c0_i32_0, %c0_i32_1 : i32, i32, i32
  }
  func.func @transform_3(%arg0: i32, %arg1: i32, %arg2: i32) -> (i32, i32, i32) {
    %c0_i32 = arith.constant 0 : i32
    %c0_i32_0 = arith.constant 0 : i32
    %c0_i32_1 = arith.constant 0 : i32
    return %arg2, %c0_i32, %c0_i32_0 : i32, i32, i32
  }
  func.func @transform_4(%arg0: i32, %arg1: i32, %arg2: i32) -> (i32, i32, i32) {
    %c0_i32 = arith.constant 0 : i32
    %c0_i32_0 = arith.constant 0 : i32
    %c0_i32_1 = arith.constant 0 : i32
    return %arg2, %c0_i32, %c0_i32_0 : i32, i32, i32
  }
  func.func @transform_5(%arg0: i32, %arg1: i32, %arg2: i32) -> (i32, i32, i32) {
    %c1_i32 = arith.constant 1 : i32
    %0 = arith.muli %arg2, %c1_i32 : i32
    %1 = arith.addi %0, %arg0 : i32
    %c0_i32 = arith.constant 0 : i32
    %c0_i32_0 = arith.constant 0 : i32
    %c0_i32_1 = arith.constant 0 : i32
    return %1, %c0_i32, %c0_i32_0 : i32, i32, i32
  }
  func.func @transform_6(%arg0: i32, %arg1: i32, %arg2: i32) -> (i32, i32, i32) {
    %c1_i32 = arith.constant 1 : i32
    %0 = arith.muli %arg2, %c1_i32 : i32
    %1 = arith.addi %0, %arg0 : i32
    %c0_i32 = arith.constant 0 : i32
    %c0_i32_0 = arith.constant 0 : i32
    %c0_i32_1 = arith.constant 0 : i32
    return %1, %c0_i32, %c0_i32_0 : i32, i32, i32
  }
  func.func @transform_7(%arg0: i32, %arg1: i32, %arg2: i32) -> (i32, i32) {
    %c0_i32 = arith.constant 0 : i32
    %c0_i32_0 = arith.constant 0 : i32
    %c0_i32_1 = arith.constant 0 : i32
    return %c0_i32, %c0_i32_0 : i32, i32
  }
  func.func @transform_8(%arg0: i32, %arg1: i32, %arg2: i32) -> (i32, i32) {
    %c0_i32 = arith.constant 0 : i32
    %c0_i32_0 = arith.constant 0 : i32
    %c0_i32_1 = arith.constant 0 : i32
    return %c0_i32, %c0_i32_0 : i32, i32
  }
  func.func @transform_9(%arg0: i32, %arg1: i32, %arg2: i32) -> (i32, i32, i32) {
    %c1_i32 = arith.constant 1 : i32
    %0 = arith.muli %arg2, %c1_i32 : i32
    %1 = arith.addi %0, %arg0 : i32
    %c0_i32 = arith.constant 0 : i32
    %c0_i32_0 = arith.constant 0 : i32
    %c0_i32_1 = arith.constant 0 : i32
    return %1, %c0_i32, %c0_i32_0 : i32, i32, i32
  }
  func.func @transform_10(%arg0: i32, %arg1: i32, %arg2: i32) -> (i32, i32, i32) {
    %c1_i32 = arith.constant 1 : i32
    %0 = arith.muli %arg2, %c1_i32 : i32
    %1 = arith.addi %0, %arg0 : i32
    %c0_i32 = arith.constant 0 : i32
    %c0_i32_0 = arith.constant 0 : i32
    %c0_i32_1 = arith.constant 0 : i32
    return %1, %c0_i32, %c0_i32_0 : i32, i32, i32
  }
  func.func @transform_11(%arg0: i32, %arg1: i32, %arg2: i32) -> (i32, i32) {
    %c0_i32 = arith.constant 0 : i32
    %c0_i32_0 = arith.constant 0 : i32
    return %arg0, %c0_i32 : i32, i32
  }
}

</mosaic_0001>

<llo_original>
// kernel: lstm_multiclassifier_forward.1
$region0: #{lstm_multiclassifier_forward.1}
  #allocation0 [shape = 'u32[]', space=smem, size = 0x4, offset = 0x4, fixed_abs, tag = 'smem constant byte address 0x4 - core index']
  #allocation1 [shape = 'u32[72,128]{1,0:T(1,128)}', space=vmem, size = 0x9000, scoped, tag = 'internal scratch']
  #allocation2 [shape = 'f32[64,512]{1,0:T(8,128)}', space=vmem, size = 0x20000, scoped, tag = 'scratch operand']
  #allocation3 [shape = 'bf16[64,128]{1,0:T(8,128)(2,1)}', space=vmem, size = 0x4000, scoped, tag = 'scratch operand']
  #allocation4 [shape = 'f32[2,8,128]{2,1,0:T(8,128)}', space=vmem, size = 0x2000, scoped, tag = 'scratch operand']
  #allocation5 [shape = 'f32[2,8,128]{2,1,0:T(8,128)}', space=vmem, size = 0x2000, scoped, tag = 'scratch operand']
  %s0 = inlined_call_operand.vmem [shape: f32[1,64,32], index: 0, kind: input, shape index: {}]
  %s1 = inlined_call_operand.hbm [shape: f32[32,512], index: 1, kind: input, shape index: {}]
  %s2 = inlined_call_operand.hbm [shape: f32[1,128,512], index: 2, kind: input, shape index: {}]
  %s3 = inlined_call_operand.vmem [shape: f32[2,1,512], index: 3, kind: input, shape index: {}]
  %s4 = inlined_call_operand.hbm [shape: f32[2,128,512], index: 4, kind: input, shape index: {}]
  %s5 = inlined_call_operand.vmem [shape: f32[2,8,128], index: 5, kind: input, shape index: {}]
  %s6 = inlined_call_operand.vmem [shape: f32[2,8,128], index: 6, kind: input, shape index: {}]
  %s7 = inlined_call_operand.hbm [shape: f32[128,128], index: 7, kind: input, shape index: {}]
  %s8 = inlined_call_operand.vmem [shape: f32[1,128], index: 8, kind: input, shape index: {}]
  %s9 = inlined_call_operand.vmem [shape: f32[2,8,128], index: 9, kind: output, shape index: {0}]
  %s10 = inlined_call_operand.vmem [shape: f32[2,8,128], index: 10, kind: output, shape index: {1}]
  %s11 = inlined_call_operand.vmem [shape: f32[8,128], index: 11, kind: output, shape index: {2}]
  %12 = xla_tuple %s9, %s10, %s11
  %s13 = sld [smem:[#allocation0]]
  $region117: #{lstm_multiclassifier_forward.1} parent=0
    _
  %s15 = ssub.s32 1, %s13
  %s16 = scalar_select 0, %s15, %s13
  $region1: #{lstm_multiclassifier_forward.1} parent=0
    #allocation6 [shape = 'u8[65536]{0}', space=vmem, size = 0x10000, scoped, tag = 'input window, operand 1, single buffered']
    #allocation7 [shape = 's32[2]{0}', space=sflag, size = 0x8, scoped, tag = 'scoped memory for lstm_multiclassifier_forward.1']
    #allocation8 [shape = 'u8[524288]{0}', space=vmem, size = 0x80000, scoped, tag = 'input window, operand 2']
    #allocation9 [shape = 's32[2]{0}', space=sflag, size = 0x8, scoped, tag = 'scoped memory for lstm_multiclassifier_forward.1']
    #allocation10 [shape = 'u8[524288]{0}', space=vmem, size = 0x80000, scoped, tag = 'input window, operand 4']
    #allocation11 [shape = 'u8[65536]{0}', space=vmem, size = 0x10000, scoped, tag = 'input window, operand 7, single buffered']
    #allocation12 [shape = 's32[1]{0}', space=sflag, size = 0x4, scoped, tag = 'scoped memory for lstm_multiclassifier_forward.1']
    %17 = vsyncpa [#allocation7], 0
    %18 = vsyncpa [#allocation9], 0
    %s19 = scalar_lea.sflag [#allocation9], 1
    %20 = vsyncpa %s19, 0
    %21 = vsyncpa [#allocation12], 0
    loop: start=0, step=1, limit=4
    $region2: #{lstm_multiclassifier_forward.1} parent=1 // loop_pre_header
      _
    $region3: #{lstm_multiclassifier_forward.1} parent=1 // loop_header
      %s23 = sphi 0, %s27
      %p24 = scmp.ge.s32.totalorder %s23, 4
      %s30 = sphi 0, %s49
      %s31 = sphi 0, %s45
      %s32 = sphi 0, %s41
      %s33 = sphi 0, %s30
      %s34 = sphi 0, %s31
      %s35 = sphi 0, %s32
      %s36 = sphi 0, %s33
      %s37 = sphi 0, %s34
      %s38 = sphi 0, %s35
      %s54 = sphi 0, %s56
      %s57 = sphi 0, %s54
      %s58 = sphi 0, %s57
      %s74 = sphi 0, %s58
      %s78 = sphi 0, %s78
      %s80 = sphi 0, %s78
      %s81 = sphi 0, %s80
      %s95 = sphi 0, %s81
      %s107 = sphi 0, %s109
      %s110 = sphi 0, %s107
      %s111 = sphi 0, %s110
      %s127 = sphi 0, %s111
      %s133 = sphi 0, %s135
      %s136 = sphi 0, %s133
      %s137 = sphi 0, %s136
      %s153 = sphi 0, %s137
      %s159 = sphi 0, %s161
      %s162 = sphi 0, %s159
      %s163 = sphi 0, %s162
      %s179 = sphi 0, %s163
      %s187 = sphi 0, %s189
      %s190 = sphi 0, %s187
      %s191 = sphi 0, %s190
      %s207 = sphi 0, %s191
      %s215 = sphi 0, %s217
      %s218 = sphi 0, %s215
      %s219 = sphi 0, %s218
      %s235 = sphi 0, %s219
      %s239 = sphi 0, %s239
      %s241 = sphi 0, %s239
      %s242 = sphi 0, %s241
      %s256 = sphi 0, %s242
      %s260 = sphi 0, %s260
      %s262 = sphi 0, %s260
      %s263 = sphi 0, %s262
      %s277 = sphi 0, %s263
      %s285 = sphi 0, %s287
      %s288 = sphi 0, %s285
      %s289 = sphi 0, %s288
      %s305 = sphi 0, %s289
      %s313 = sphi 0, %s315
      %s316 = sphi 0, %s313
      %s317 = sphi 0, %s316
      %s333 = sphi 0, %s317
      %s339 = sphi 0, %s341
      %s342 = sphi 0, %s339
      %s343 = sphi 0, %s342
      %s359 = sphi 0, %s343
    $region4: #{lstm_multiclassifier_forward.1} parent=1 // loop_header_branch
      %26 = sbr.rel (%p24) target = $region8
    $region5: #{lstm_multiclassifier_forward.1} parent=1 // loop_body
      %s28 = ssub.s32 %s23, 1
      %s29 = ssub.s32 %s23, 2
      %s39 = sadd.s32 1, %s32
      %p40 = scmp.ge.s32.totalorder %s39, 2
      %s41 = scalar_select %p40, 0, %s39
      %s42 = sadd.s32 1, %s31
      %s43 = scalar_select %p40, %s42, %s31
      %p44 = scmp.ge.s32.totalorder %s43, 1
      %s45 = scalar_select %p44, 0, %s43
      %s46 = sadd.s32 1, %s30
      %s47 = scalar_select %p44, %s46, %s30
      %p48 = scmp.ge.s32.totalorder %s47, 1
      %s49 = scalar_select %p48, 0, %s47
      %s50 = ssub.s32 %s30, %s49
      %s51 = ssub.s32 %s31, %s45
      %s52 = sor.u32 %s50, %s51
      %p53 = scmp.eq.s32.totalorder %s52, 0
      %s55 = sadd.s32 %s54, 1
      %s56 = scalar_select %p53, %s54, %s55
      %p59 = pneg %p53
      %p60 = scmp.eq.s32.totalorder %s23, 1
      %p61 = por %p59, %p60
      %p62 = scmp.ne.s32.totalorder %s54, %s57
      %p63 = scmp.eq.s32.totalorder %s23, 0
      %p64 = por %p62, %p63
      %p65 = scmp.ne.s32.totalorder %s54, %s57
      %p66 = scmp.eq.s32.totalorder %s28, 1
      %p67 = por %p65, %p66
      %p68 = scmp.ne.s32.totalorder %s57, %s58
      %p69 = scmp.eq.s32.totalorder %s28, 0
      %p70 = por %p68, %p69
      %p71 = scmp.ne.s32.totalorder %s57, %s58
      %p72 = scmp.eq.s32.totalorder %s29, 1
      %p73 = por %p71, %p72
      %p75 = scmp.ne.s32.totalorder %s58, %s74
      %p76 = scmp.eq.s32.totalorder %s29, 0
      %p77 = por %p75, %p76
      %s79 = sadd.s32 %s78, 1
      %p82 = scmp.eq.s32.totalorder %s23, 1
      %p83 = scmp.ne.s32.totalorder %s78, %s80
      %p84 = scmp.eq.s32.totalorder %s23, 0
      %p85 = por %p83, %p84
      %p86 = scmp.ne.s32.totalorder %s78, %s80
      %p87 = scmp.eq.s32.totalorder %s28, 1
      %p88 = por %p86, %p87
      %p89 = scmp.ne.s32.totalorder %s80, %s81
      %p90 = scmp.eq.s32.totalorder %s28, 0
      %p91 = por %p89, %p90
      %p92 = scmp.ne.s32.totalorder %s80, %s81
      %p93 = scmp.eq.s32.totalorder %s29, 1
      %p94 = por %p92, %p93
      %p96 = scmp.ne.s32.totalorder %s81, %s95
      %p97 = scmp.eq.s32.totalorder %s29, 0
      %p98 = por %p96, %p97
      %s99 = ssub.s32 %s32, 1
      %p100 = scmp.gt.s32.totalorder %s99, 0
      %s101 = scalar_select %p100, %s99, 0
      %s102 = ssub.s32 %s41, 1
      %p103 = scmp.gt.s32.totalorder %s102, 0
      %s104 = scalar_select %p103, %s102, 0
      %s105 = ssub.s32 %s101, %s104
      %p106 = scmp.eq.s32.totalorder %s105, 0
      %s108 = sadd.s32 %s107, 1
      %s109 = scalar_select %p106, %s107, %s108
      %p112 = pneg %p106
      %p113 = scmp.eq.s32.totalorder %s23, 1
      %p114 = por %p112, %p113
      %p115 = scmp.ne.s32.totalorder %s107, %s110
      %p116 = scmp.eq.s32.totalorder %s23, 0
      %p117 = por %p115, %p116
      %p118 = scmp.ne.s32.totalorder %s107, %s110
      %p119 = scmp.eq.s32.totalorder %s28, 1
      %p120 = por %p118, %p119
      %p121 = scmp.ne.s32.totalorder %s110, %s111
      %p122 = scmp.eq.s32.totalorder %s28, 0
      %p123 = por %p121, %p122
      %p124 = scmp.ne.s32.totalorder %s110, %s111
      %p125 = scmp.eq.s32.totalorder %s29, 1
      %p126 = por %p124, %p125
      %p128 = scmp.ne.s32.totalorder %s111, %s127
      %p129 = scmp.eq.s32.totalorder %s29, 0
      %p130 = por %p128, %p129
      %s131 = ssub.s32 %s32, %s41
      %p132 = scmp.eq.s32.totalorder %s131, 0
      %s134 = sadd.s32 %s133, 1
      %s135 = scalar_select %p132, %s133, %s134
      %p138 = pneg %p132
      %p139 = scmp.eq.s32.totalorder %s23, 1
      %p140 = por %p138, %p139
      %p141 = scmp.ne.s32.totalorder %s133, %s136
      %p142 = scmp.eq.s32.totalorder %s23, 0
      %p143 = por %p141, %p142
      %p144 = scmp.ne.s32.totalorder %s133, %s136
      %p145 = scmp.eq.s32.totalorder %s28, 1
      %p146 = por %p144, %p145
      %p147 = scmp.ne.s32.totalorder %s136, %s137
      %p148 = scmp.eq.s32.totalorder %s28, 0
      %p149 = por %p147, %p148
      %p150 = scmp.ne.s32.totalorder %s136, %s137
      %p151 = scmp.eq.s32.totalorder %s29, 1
      %p152 = por %p150, %p151
      %p154 = scmp.ne.s32.totalorder %s137, %s153
      %p155 = scmp.eq.s32.totalorder %s29, 0
      %p156 = por %p154, %p155
      %s157 = ssub.s32 %s32, %s41
      %p158 = scmp.eq.s32.totalorder %s157, 0
      %s160 = sadd.s32 %s159, 1
      %s161 = scalar_select %p158, %s159, %s160
      %p164 = pneg %p158
      %p165 = scmp.eq.s32.totalorder %s23, 1
      %p166 = por %p164, %p165
      %p167 = scmp.ne.s32.totalorder %s159, %s162
      %p168 = scmp.eq.s32.totalorder %s23, 0
      %p169 = por %p167, %p168
      %p170 = scmp.ne.s32.totalorder %s159, %s162
      %p171 = scmp.eq.s32.totalorder %s28, 1
      %p172 = por %p170, %p171
      %p173 = scmp.ne.s32.totalorder %s162, %s163
      %p174 = scmp.eq.s32.totalorder %s28, 0
      %p175 = por %p173, %p174
      %p176 = scmp.ne.s32.totalorder %s162, %s163
      %p177 = scmp.eq.s32.totalorder %s29, 1
      %p178 = por %p176, %p177
      %p180 = scmp.ne.s32.totalorder %s163, %s179
      %p181 = scmp.eq.s32.totalorder %s29, 0
      %p182 = por %p180, %p181
      %s183 = sadd.s32 %s32, %s30
      %s184 = sadd.s32 %s41, %s49
      %s185 = ssub.s32 %s183, %s184
      %p186 = scmp.eq.s32.totalorder %s185, 0
      %s188 = sadd.s32 %s187, 1
      %s189 = scalar_select %p186, %s187, %s188
      %p192 = pneg %p186
      %p193 = scmp.eq.s32.totalorder %s23, 1
      %p194 = por %p192, %p193
      %p195 = scmp.ne.s32.totalorder %s187, %s190
      %p196 = scmp.eq.s32.totalorder %s23, 0
      %p197 = por %p195, %p196
      %p198 = scmp.ne.s32.totalorder %s187, %s190
      %p199 = scmp.eq.s32.totalorder %s28, 1
      %p200 = por %p198, %p199
      %p201 = scmp.ne.s32.totalorder %s190, %s191
      %p202 = scmp.eq.s32.totalorder %s28, 0
      %p203 = por %p201, %p202
      %p204 = scmp.ne.s32.totalorder %s190, %s191
      %p205 = scmp.eq.s32.totalorder %s29, 1
      %p206 = por %p204, %p205
      %p208 = scmp.ne.s32.totalorder %s191, %s207
      %p209 = scmp.eq.s32.totalorder %s29, 0
      %p210 = por %p208, %p209
      %s211 = sadd.s32 %s32, %s30
      %s212 = sadd.s32 %s41, %s49
      %s213 = ssub.s32 %s211, %s212
      %p214 = scmp.eq.s32.totalorder %s213, 0
      %s216 = sadd.s32 %s215, 1
      %s217 = scalar_select %p214, %s215, %s216
      %p220 = pneg %p214
      %p221 = scmp.eq.s32.totalorder %s23, 1
      %p222 = por %p220, %p221
      %p223 = scmp.ne.s32.totalorder %s215, %s218
      %p224 = scmp.eq.s32.totalorder %s23, 0
      %p225 = por %p223, %p224
      %p226 = scmp.ne.s32.totalorder %s215, %s218
      %p227 = scmp.eq.s32.totalorder %s28, 1
      %p228 = por %p226, %p227
      %p229 = scmp.ne.s32.totalorder %s218, %s219
      %p230 = scmp.eq.s32.totalorder %s28, 0
      %p231 = por %p229, %p230
      %p232 = scmp.ne.s32.totalorder %s218, %s219
      %p233 = scmp.eq.s32.totalorder %s29, 1
      %p234 = por %p232, %p233
      %p236 = scmp.ne.s32.totalorder %s219, %s235
      %p237 = scmp.eq.s32.totalorder %s29, 0
      %p238 = por %p236, %p237
      %s240 = sadd.s32 %s239, 1
      %p243 = scmp.eq.s32.totalorder %s23, 1
      %p244 = scmp.ne.s32.totalorder %s239, %s241
      %p245 = scmp.eq.s32.totalorder %s23, 0
      %p246 = por %p244, %p245
      %p247 = scmp.ne.s32.totalorder %s239, %s241
      %p248 = scmp.eq.s32.totalorder %s28, 1
      %p249 = por %p247, %p248
      %p250 = scmp.ne.s32.totalorder %s241, %s242
      %p251 = scmp.eq.s32.totalorder %s28, 0
      %p252 = por %p250, %p251
      %p253 = scmp.ne.s32.totalorder %s241, %s242
      %p254 = scmp.eq.s32.totalorder %s29, 1
      %p255 = por %p253, %p254
      %p257 = scmp.ne.s32.totalorder %s242, %s256
      %p258 = scmp.eq.s32.totalorder %s29, 0
      %p259 = por %p257, %p258
      %s261 = sadd.s32 %s260, 1
      %p264 = scmp.eq.s32.totalorder %s23, 1
      %p265 = scmp.ne.s32.totalorder %s260, %s262
      %p266 = scmp.eq.s32.totalorder %s23, 0
      %p267 = por %p265, %p266
      %p268 = scmp.ne.s32.totalorder %s260, %s262
      %p269 = scmp.eq.s32.totalorder %s28, 1
      %p270 = por %p268, %p269
      %p271 = scmp.ne.s32.totalorder %s262, %s263
      %p272 = scmp.eq.s32.totalorder %s28, 0
      %p273 = por %p271, %p272
      %p274 = scmp.ne.s32.totalorder %s262, %s263
      %p275 = scmp.eq.s32.totalorder %s29, 1
      %p276 = por %p274, %p275
      %p278 = scmp.ne.s32.totalorder %s263, %s277
      %p279 = scmp.eq.s32.totalorder %s29, 0
      %p280 = por %p278, %p279
      %s281 = sadd.s32 %s32, %s30
      %s282 = sadd.s32 %s41, %s49
      %s283 = ssub.s32 %s281, %s282
      %p284 = scmp.eq.s32.totalorder %s283, 0
      %s286 = sadd.s32 %s285, 1
      %s287 = scalar_select %p284, %s285, %s286
      %p290 = pneg %p284
      %p291 = scmp.eq.s32.totalorder %s23, 1
      %p292 = por %p290, %p291
      %p293 = scmp.ne.s32.totalorder %s285, %s288
      %p294 = scmp.eq.s32.totalorder %s23, 0
      %p295 = por %p293, %p294
      %p296 = scmp.ne.s32.totalorder %s285, %s288
      %p297 = scmp.eq.s32.totalorder %s28, 1
      %p298 = por %p296, %p297
      %p299 = scmp.ne.s32.totalorder %s288, %s289
      %p300 = scmp.eq.s32.totalorder %s28, 0
      %p301 = por %p299, %p300
      %p302 = scmp.ne.s32.totalorder %s288, %s289
      %p303 = scmp.eq.s32.totalorder %s29, 1
      %p304 = por %p302, %p303
      %p306 = scmp.ne.s32.totalorder %s289, %s305
      %p307 = scmp.eq.s32.totalorder %s29, 0
      %p308 = por %p306, %p307
      %s309 = sadd.s32 %s32, %s30
      %s310 = sadd.s32 %s41, %s49
      %s311 = ssub.s32 %s309, %s310
      %p312 = scmp.eq.s32.totalorder %s311, 0
      %s314 = sadd.s32 %s313, 1
      %s315 = scalar_select %p312, %s313, %s314
      %p318 = pneg %p312
      %p319 = scmp.eq.s32.totalorder %s23, 1
      %p320 = por %p318, %p319
      %p321 = scmp.ne.s32.totalorder %s313, %s316
      %p322 = scmp.eq.s32.totalorder %s23, 0
      %p323 = por %p321, %p322
      %p324 = scmp.ne.s32.totalorder %s313, %s316
      %p325 = scmp.eq.s32.totalorder %s28, 1
      %p326 = por %p324, %p325
      %p327 = scmp.ne.s32.totalorder %s316, %s317
      %p328 = scmp.eq.s32.totalorder %s28, 0
      %p329 = por %p327, %p328
      %p330 = scmp.ne.s32.totalorder %s316, %s317
      %p331 = scmp.eq.s32.totalorder %s29, 1
      %p332 = por %p330, %p331
      %p334 = scmp.ne.s32.totalorder %s317, %s333
      %p335 = scmp.eq.s32.totalorder %s29, 0
      %p336 = por %p334, %p335
      %s337 = ssub.s32 %s30, %s49
      %p338 = scmp.eq.s32.totalorder %s337, 0
      %s340 = sadd.s32 %s339, 1
      %s341 = scalar_select %p338, %s339, %s340
      %p344 = pneg %p338
      %p345 = scmp.eq.s32.totalorder %s23, 1
      %p346 = por %p344, %p345
      %p347 = scmp.ne.s32.totalorder %s339, %s342
      %p348 = scmp.eq.s32.totalorder %s23, 0
      %p349 = por %p347, %p348
      %p350 = scmp.ne.s32.totalorder %s339, %s342
      %p351 = scmp.eq.s32.totalorder %s28, 1
      %p352 = por %p350, %p351
      %p353 = scmp.ne.s32.totalorder %s342, %s343
      %p354 = scmp.eq.s32.totalorder %s28, 0
      %p355 = por %p353, %p354
      %p356 = scmp.ne.s32.totalorder %s342, %s343
      %p357 = scmp.eq.s32.totalorder %s29, 1
      %p358 = por %p356, %p357
      %p360 = scmp.ne.s32.totalorder %s343, %s359
      %p361 = scmp.eq.s32.totalorder %s29, 0
      %p362 = por %p360, %p361
      %p363 = scmp.le.s32.totalorder 1, %s23
      %p364 = scmp.lt.s32.totalorder %s23, 3
      %p365 = pnand %p363, %p364
      %p366 = pneg %p365
      // Predicated region
      $region9: #{lstm_multiclassifier_forward.1} parent=5 // pred_check
        _
      $region10: #{lstm_multiclassifier_forward.1} parent=5 // pred_check_branch
        %368 = sbr.rel (%p365) target = $region12
      $region11: #{lstm_multiclassifier_forward.1} parent=5 // pred_region
        %s369 = ssub.s32 %s23, 1
        // Predicated region
        $region13: #{lstm_multiclassifier_forward.1} parent=11 // pred_check
          %p370 = pneg %p70
        $region14: #{lstm_multiclassifier_forward.1} parent=11 // pred_check_branch
          %372 = sbr.rel (%p370) target = $region16
        $region15: #{lstm_multiclassifier_forward.1} parent=11 // pred_region
          %s373 = smul.u32 8, %s34
          %p374 = scmp.lt.s32.totalorder %s33, 0
          %s375 = scalar_select %p374, %s33, 0
          %p376 = scmp.lt.s32.totalorder %s373, 7
          %s377 = scalar_select %p376, %s373, 7
          %s378 = smul.addr %s375, 8
          %s379 = sadd.s32 %s377, %s378
          %s380 = smul.addr %s379, 8
          %s381 = scalar_lea.vmem %s0, %s380
          %s382 = smul.u32 8, %s34
        $region16: #{lstm_multiclassifier_forward.1} parent=11 // pred_fallthru
          _
        // Predicated region
        $region17: #{lstm_multiclassifier_forward.1} parent=11 // pred_check
          %p383 = pneg %p91
        $region18: #{lstm_multiclassifier_forward.1} parent=11 // pred_check_branch
          %385 = sbr.rel (%p383) target = $region20
        $region19: #{lstm_multiclassifier_forward.1} parent=11 // pred_region
          %387 = vsyncadd [#allocation7], 0
          %s388 = sshll.u32 %s1, 4
          %s389 = int_to_ptr.hbm [resolvable:$true] %s388
          %s390 = sshll.u32 [#allocation6], 4
          %s391 = int_to_ptr.vmem [resolvable:$true] %s390
          %396 = dma.hbm_to_vmem [thread:$0]  %s389, 2048, %s391, [#allocation7], 512, 512, 32
        $region20: #{lstm_multiclassifier_forward.1} parent=11 // pred_fallthru
          _
        // Predicated region
        $region21: #{lstm_multiclassifier_forward.1} parent=11 // pred_check
          %p397 = pneg %p252
        $region22: #{lstm_multiclassifier_forward.1} parent=11 // pred_check_branch
          %399 = sbr.rel (%p397) target = $region24
        $region23: #{lstm_multiclassifier_forward.1} parent=11 // pred_region
          %401 = vsyncadd [#allocation12], 0
          %s402 = sshll.u32 %s7, 4
          %s403 = int_to_ptr.hbm [resolvable:$true] %s402
          %s404 = sshll.u32 [#allocation11], 4
          %s405 = int_to_ptr.vmem [resolvable:$true] %s404
          %410 = dma.hbm_to_vmem [thread:$0]  %s403, 2048, %s405, [#allocation12], 128, 128, 8
        $region24: #{lstm_multiclassifier_forward.1} parent=11 // pred_fallthru
          _
        // Predicated region
        $region25: #{lstm_multiclassifier_forward.1} parent=11 // pred_check
          %p411 = pneg %p273
        $region26: #{lstm_multiclassifier_forward.1} parent=11 // pred_check_branch
          %413 = sbr.rel (%p411) target = $region28
        $region27: #{lstm_multiclassifier_forward.1} parent=11 // pred_region
          _
        $region28: #{lstm_multiclassifier_forward.1} parent=11 // pred_fallthru
          _
      $region12: #{lstm_multiclassifier_forward.1} parent=5 // pred_fallthru
        _
      %p414 = scmp.lt.s32.totalorder %s23, 2
      // Predicated region
      $region29: #{lstm_multiclassifier_forward.1} parent=5 // pred_check
        %p415 = pneg %p414
      $region30: #{lstm_multiclassifier_forward.1} parent=5 // pred_check_branch
        %417 = sbr.rel (%p415) target = $region32
      $region31: #{lstm_multiclassifier_forward.1} parent=5 // pred_region
        // Predicated region
        $region33: #{lstm_multiclassifier_forward.1} parent=31 // pred_check
          %p418 = pneg %p117
        $region34: #{lstm_multiclassifier_forward.1} parent=31 // pred_check_branch
          %420 = sbr.rel (%p418) target = $region36
        $region35: #{lstm_multiclassifier_forward.1} parent=31 // pred_region
          %s421 = sand.u32 %s23, 1
          %s422 = scalar_lea.sflag [#allocation9], %s421
          %s423 = sand.u32 %s107, 1
          %s424 = smul.addr %s423, 512
          %s425 = scalar_lea.vmem [#allocation8], %s424
          %s426 = ssub.s32 %s32, 1
          %p427 = scmp.gt.s32.totalorder %s426, 0
          %s428 = scalar_select %p427, %s426, 0
          %430 = vsyncadd %s422, 0
          %s431 = smul.addr %s428, 64
          %s432 = smul.addr %s431, 8
          %s433 = scalar_lea.hbm %s2, %s432
          %s434 = sshll.u32 %s433, 4
          %s435 = int_to_ptr.hbm [resolvable:$true] %s434
          %s436 = sshll.u32 %s425, 4
          %s437 = int_to_ptr.vmem [resolvable:$true] %s436
          %442 = dma.hbm_to_vmem [thread:$0]  %s435, 8192, %s437, %s422, 512, 512, 32
        $region36: #{lstm_multiclassifier_forward.1} parent=31 // pred_fallthru
          _
        // Predicated region
        $region37: #{lstm_multiclassifier_forward.1} parent=31 // pred_check
          %p443 = pneg %p143
        $region38: #{lstm_multiclassifier_forward.1} parent=31 // pred_check_branch
          %445 = sbr.rel (%p443) target = $region40
        $region39: #{lstm_multiclassifier_forward.1} parent=31 // pred_region
          %p446 = scmp.lt.s32.totalorder %s32, 1
          %s447 = scalar_select %p446, %s32, 1
          %s448 = smul.addr %s447, 4
          %s449 = scalar_lea.vmem %s3, %s448
        $region40: #{lstm_multiclassifier_forward.1} parent=31 // pred_fallthru
          _
        // Predicated region
        $region41: #{lstm_multiclassifier_forward.1} parent=31 // pred_check
          %p450 = pneg %p169
        $region42: #{lstm_multiclassifier_forward.1} parent=31 // pred_check_branch
          %452 = sbr.rel (%p450) target = $region44
        $region43: #{lstm_multiclassifier_forward.1} parent=31 // pred_region
          %s453 = sand.u32 %s23, 1
          %s454 = scalar_lea.sflag [#allocation9], %s453
          %s455 = sand.u32 %s159, 1
          %s456 = smul.addr %s455, 512
          %s457 = scalar_lea.vmem [#allocation10], %s456
          %459 = vsyncadd %s454, 0
          %s460 = smul.addr %s32, 64
          %s461 = smul.addr %s460, 8
          %s462 = scalar_lea.hbm %s4, %s461
          %s463 = sshll.u32 %s462, 4
          %s464 = int_to_ptr.hbm [resolvable:$true] %s463
          %s465 = sshll.u32 %s457, 4
          %s466 = int_to_ptr.vmem [resolvable:$true] %s465
          %471 = dma.hbm_to_vmem [thread:$0]  %s464, 8192, %s466, %s454, 512, 512, 32
        $region44: #{lstm_multiclassifier_forward.1} parent=31 // pred_fallthru
          _
        // Predicated region
        $region45: #{lstm_multiclassifier_forward.1} parent=31 // pred_check
          %p472 = pneg %p197
        $region46: #{lstm_multiclassifier_forward.1} parent=31 // pred_check_branch
          %474 = sbr.rel (%p472) target = $region48
        $region47: #{lstm_multiclassifier_forward.1} parent=31 // pred_region
          %s475 = sadd.s32 %s32, %s30
          %p476 = scmp.lt.s32.totalorder %s475, 1
          %s477 = scalar_select %p476, %s475, 1
          %s478 = smul.addr %s477, 8
          %s479 = scalar_lea.vmem %s5, %s478
          %s480 = sadd.s32 %s32, %s30
        $region48: #{lstm_multiclassifier_forward.1} parent=31 // pred_fallthru
          _
        // Predicated region
        $region49: #{lstm_multiclassifier_forward.1} parent=31 // pred_check
          %p481 = pneg %p225
        $region50: #{lstm_multiclassifier_forward.1} parent=31 // pred_check_branch
          %483 = sbr.rel (%p481) target = $region52
        $region51: #{lstm_multiclassifier_forward.1} parent=31 // pred_region
          %s484 = sadd.s32 %s32, %s30
          %p485 = scmp.lt.s32.totalorder %s484, 1
          %s486 = scalar_select %p485, %s484, 1
          %s487 = smul.addr %s486, 8
          %s488 = scalar_lea.vmem %s6, %s487
          %s489 = sadd.s32 %s32, %s30
        $region52: #{lstm_multiclassifier_forward.1} parent=31 // pred_fallthru
          _
      $region32: #{lstm_multiclassifier_forward.1} parent=5 // pred_fallthru
        _
      %p490 = scmp.le.s32.totalorder 1, %s23
      %p491 = scmp.lt.s32.totalorder %s23, 3
      %p492 = pnand %p490, %p491
      %p493 = pneg %p492
      // Predicated region
      $region53: #{lstm_multiclassifier_forward.1} parent=5 // pred_check
        _
      $region54: #{lstm_multiclassifier_forward.1} parent=5 // pred_check_branch
        %495 = sbr.rel (%p492) target = $region56
      $region55: #{lstm_multiclassifier_forward.1} parent=5 // pred_region
        %s496 = ssub.s32 %s23, 1
        // Predicated region
        $region57: #{lstm_multiclassifier_forward.1} parent=55 // pred_check
          %p497 = pneg %p91
        $region58: #{lstm_multiclassifier_forward.1} parent=55 // pred_check_branch
          %499 = sbr.rel (%p497) target = $region60
        $region59: #{lstm_multiclassifier_forward.1} parent=55 // pred_region
          %501 = dma.done [#allocation7], 2048
        $region60: #{lstm_multiclassifier_forward.1} parent=55 // pred_fallthru
          _
        %s502 = sand.u32 %s28, 1
        %s503 = scalar_lea.sflag [#allocation9], %s502
        %s504 = sand.u32 %s110, 1
        %s505 = smul.addr %s504, 512
        %s506 = scalar_lea.vmem [#allocation8], %s505
        // Predicated region
        $region61: #{lstm_multiclassifier_forward.1} parent=55 // pred_check
          %p507 = pneg %p123
        $region62: #{lstm_multiclassifier_forward.1} parent=55 // pred_check_branch
          %509 = sbr.rel (%p507) target = $region64
        $region63: #{lstm_multiclassifier_forward.1} parent=55 // pred_region
          %511 = dma.done %s503, 8192
        $region64: #{lstm_multiclassifier_forward.1} parent=55 // pred_fallthru
          _
        %s512 = sand.u32 %s28, 1
        %s513 = scalar_lea.sflag [#allocation9], %s512
        %s514 = sand.u32 %s162, 1
        %s515 = smul.addr %s514, 512
        %s516 = scalar_lea.vmem [#allocation10], %s515
        // Predicated region
        $region65: #{lstm_multiclassifier_forward.1} parent=55 // pred_check
          %p517 = pneg %p175
        $region66: #{lstm_multiclassifier_forward.1} parent=55 // pred_check_branch
          %519 = sbr.rel (%p517) target = $region68
        $region67: #{lstm_multiclassifier_forward.1} parent=55 // pred_region
          %521 = dma.done %s513, 8192
        $region68: #{lstm_multiclassifier_forward.1} parent=55 // pred_fallthru
          _
        // Predicated region
        $region69: #{lstm_multiclassifier_forward.1} parent=55 // pred_check
          %p522 = pneg %p252
        $region70: #{lstm_multiclassifier_forward.1} parent=55 // pred_check_branch
          %524 = sbr.rel (%p522) target = $region72
        $region71: #{lstm_multiclassifier_forward.1} parent=55 // pred_region
          %526 = dma.done [#allocation12], 2048
        $region72: #{lstm_multiclassifier_forward.1} parent=55 // pred_fallthru
          _
        %s527 = smul.u32 8, %s34
        %p528 = scmp.lt.s32.totalorder %s33, 0
        %s529 = scalar_select %p528, %s33, 0
        %p530 = scmp.lt.s32.totalorder %s527, 7
        %s531 = scalar_select %p530, %s527, 7
        %s532 = smul.addr %s529, 8
        %s533 = sadd.s32 %s531, %s532
        %s534 = smul.addr %s533, 8
        %s535 = scalar_lea.vmem %s0, %s534
        %p536 = pneg %p70
        %p537 = pneg %p67
        %p538 = pneg %p91
        %p539 = pneg %p88
        %s540 = sand.u32 %s28, 1
        %s541 = scalar_lea.sflag [#allocation9], %s540
        %s542 = sand.u32 %s110, 1
        %s543 = smul.addr %s542, 512
        %s544 = scalar_lea.vmem [#allocation8], %s543
        %p545 = pneg %p123
        %p546 = pneg %p120
        %p547 = scmp.lt.s32.totalorder %s35, 1
        %s548 = scalar_select %p547, %s35, 1
        %s549 = smul.addr %s548, 4
        %s550 = scalar_lea.vmem %s3, %s549
        %p551 = pneg %p149
        %p552 = pneg %p146
        %s553 = sand.u32 %s28, 1
        %s554 = scalar_lea.sflag [#allocation9], %s553
        %s555 = sand.u32 %s162, 1
        %s556 = smul.addr %s555, 512
        %s557 = scalar_lea.vmem [#allocation10], %s556
        %p558 = pneg %p175
        %p559 = pneg %p172
        %s560 = sadd.s32 %s35, %s33
        %p561 = scmp.lt.s32.totalorder %s560, 1
        %s562 = scalar_select %p561, %s560, 1
        %s563 = smul.addr %s562, 8
        %s564 = scalar_lea.vmem %s5, %s563
        %p565 = pneg %p203
        %p566 = pneg %p200
        %s567 = sadd.s32 %s35, %s33
        %p568 = scmp.lt.s32.totalorder %s567, 1
        %s569 = scalar_select %p568, %s567, 1
        %s570 = smul.addr %s569, 8
        %s571 = scalar_lea.vmem %s6, %s570
        %p572 = pneg %p231
        %p573 = pneg %p228
        %p574 = pneg %p252
        %p575 = pneg %p249
        %p576 = pneg %p273
        %p577 = pneg %p270
        %p578 = pneg %p301
        %p579 = pneg %p298
        %s580 = sadd.s32 %s35, %s33
        %p581 = scmp.lt.s32.totalorder %s580, 1
        %s582 = scalar_select %p581, %s580, 1
        %s583 = smul.addr %s582, 8
        %s584 = scalar_lea.vmem %s9, %s583
        %p585 = pneg %p329
        %p586 = pneg %p326
        %s587 = sadd.s32 %s35, %s33
        %p588 = scmp.lt.s32.totalorder %s587, 1
        %s589 = scalar_select %p588, %s587, 1
        %s590 = smul.addr %s589, 8
        %s591 = scalar_lea.vmem %s10, %s590
        %p592 = pneg %p355
        %p593 = pneg %p352
        %p594 = scmp.lt.s32.totalorder %s33, 0
        %s595 = scalar_select %p594, %s33, 0
        %s596 = smul.addr %s595, 8
        %s597 = scalar_lea.vmem %s11, %s596
        %s598 = smul.u32 8, %s34
        %p599 = scmp.lt.s32.totalorder %s33, 0
        %s600 = scalar_select %p599, %s33, 0
        %p601 = scmp.lt.s32.totalorder %s598, 7
        %s602 = scalar_select %p601, %s598, 7
        %s603 = smul.addr %s600, 8
        %s604 = sadd.s32 %s602, %s603
        %s605 = smul.addr %s604, 8
        %s606 = scalar_lea.vmem %s0, %s605
        %s607 = smul.u32 8, %s34
        %s608 = ssub.s32 %s35, 1
        %p609 = scmp.gt.s32.totalorder %s608, 0
        %s610 = scalar_select %p609, %s608, 0
        %p611 = scmp.lt.s32.totalorder %s35, 1
        %s612 = scalar_select %p611, %s35, 1
        %s613 = smul.addr %s612, 4
        %s614 = scalar_lea.vmem %s3, %s613
        %s615 = sadd.s32 %s35, %s33
        %p616 = scmp.lt.s32.totalorder %s615, 1
        %s617 = scalar_select %p616, %s615, 1
        %s618 = smul.addr %s617, 8
        %s619 = scalar_lea.vmem %s5, %s618
        %s620 = sadd.s32 %s35, %s33
        %s621 = sadd.s32 %s35, %s33
        %p622 = scmp.lt.s32.totalorder %s621, 1
        %s623 = scalar_select %p622, %s621, 1
        %s624 = smul.addr %s623, 8
        %s625 = scalar_lea.vmem %s6, %s624
        %s626 = sadd.s32 %s35, %s33
        %s627 = sadd.s32 %s35, %s33
        %p628 = scmp.lt.s32.totalorder %s627, 1
        %s629 = scalar_select %p628, %s627, 1
        %s630 = smul.addr %s629, 8
        %s631 = scalar_lea.vmem %s9, %s630
        %s632 = sadd.s32 %s35, %s33
        %s633 = sadd.s32 %s35, %s33
        %p634 = scmp.lt.s32.totalorder %s633, 1
        %s635 = scalar_select %p634, %s633, 1
        %s636 = smul.addr %s635, 8
        %s637 = scalar_lea.vmem %s10, %s636
        %s638 = sadd.s32 %s35, %s33
        %p639 = scmp.lt.s32.totalorder %s33, 0
        %s640 = scalar_select %p639, %s33, 0
        %s641 = smul.addr %s640, 8
        %s642 = scalar_lea.vmem %s11, %s641
        %v643 = vld [vmem:[%s614] sm:$0xf]
        %p644 = scmp.eq.s32.totalorder %s35, 0
        // Predicated region
        $region73: #{lstm_multiclassifier_forward.1} parent=55 // pred_check
          %p645 = pneg %p644
        $region74: #{lstm_multiclassifier_forward.1} parent=55 // pred_check_branch
          %647 = sbr.rel (%p645) target = $region76
        $region75: #{lstm_multiclassifier_forward.1} parent=55 // pred_region
          %v648 = vld [vmem:[%s606] sm:$0xff]
          %v649 = vld [vmem:[%s606 + $0x8] sm:$0xff]
          %v650 = vld [vmem:[%s606 + $0x10] sm:$0xff]
          %v651 = vld [vmem:[%s606 + $0x18] sm:$0xff]
          %v652 = vld [vmem:[%s606 + $0x20] sm:$0xff]
          %v653 = vld [vmem:[%s606 + $0x28] sm:$0xff]
          %v654 = vld [vmem:[%s606 + $0x30] sm:$0xff]
          %v655 = vld [vmem:[%s606 + $0x38] sm:$0xff]
          %v656 = vld [vmem:[#allocation6] sm:$0xff]
          %v657 = vld [vmem:[#allocation6 + $0x8] sm:$0xff]
          %v658 = vld [vmem:[#allocation6 + $0x10] sm:$0xff]
          %v659 = vld [vmem:[#allocation6 + $0x18] sm:$0xff]
          %v660 = vld [vmem:[#allocation6 + $0x20] sm:$0xff]
          %v661 = vld [vmem:[#allocation6 + $0x28] sm:$0xff]
          %v662 = vld [vmem:[#allocation6 + $0x30] sm:$0xff]
          %v663 = vld [vmem:[#allocation6 + $0x38] sm:$0xff]
          %v664 = vld [vmem:[#allocation6 + $0x40] sm:$0xff]
          %v665 = vld [vmem:[#allocation6 + $0x48] sm:$0xff]
          %v666 = vld [vmem:[#allocation6 + $0x50] sm:$0xff]
          %v667 = vld [vmem:[#allocation6 + $0x58] sm:$0xff]
          %v668 = vld [vmem:[#allocation6 + $0x60] sm:$0xff]
          %v669 = vld [vmem:[#allocation6 + $0x68] sm:$0xff]
          %v670 = vld [vmem:[#allocation6 + $0x70] sm:$0xff]
          %v671 = vld [vmem:[#allocation6 + $0x78] sm:$0xff]
          %v673 = vperm.slane %v643, 0
          %v674 = vperm.slane %v643, 1
          %v675 = vperm.slane %v643, 2
          %v676 = vperm.slane %v643, 3
          %vm681 = vcmask 261120
          %v683 = vsel %vm681, %v648, 0
          %v686 = vsel %vm681, %v649, 0
          %v689 = vsel %vm681, %v650, 0
          %v692 = vsel %vm681, %v651, 0
          %v695 = vsel %vm681, %v652, 0
          %v698 = vsel %vm681, %v653, 0
          %v701 = vsel %vm681, %v654, 0
          %v704 = vsel %vm681, %v655, 0
          %706 = vmatpush.msra.mxu0 0.0
          %707 = vmatpush.msra.mxu0 0.0
          %708 = vmatpush.msra.mxu0 0.0
          %709 = vmatpush.msra.mxu0 0.0
          %710 = vmatpush.msra.mxu0 0.0
          %711 = vmatpush.msra.mxu0 0.0
          %712 = vmatpush.msra.mxu0 0.0
          %713 = vmatpush.msra.mxu0 0.0
          %714 = vmatpush.msra.mxu0 0.0
          %715 = vmatpush.msra.mxu0 0.0
          %716 = vmatpush.msra.mxu0 0.0
          %717 = vmatpush.msra.mxu0 0.0
          %718 = vmatpush.msra.mxu0 %v668
          %719 = vmatpush.msra.mxu0 %v664
          %720 = vmatpush.msra.mxu0 %v660
          %721 = vmatpush.msra.mxu0 %v656
          %722 = vmatmul.f32.gmra.mxu0 %v683
          %v723 = vpop.f32.mrf.mxu0
          %v724 = vadd.f32 %v673, %v723
          %725 = vmatmul.f32.gmra.mxu0 %v686
          %v726 = vpop.f32.mrf.mxu0
          %v727 = vadd.f32 %v673, %v726
          %728 = vmatmul.f32.gmra.mxu0 %v689
          %v729 = vpop.f32.mrf.mxu0
          %v730 = vadd.f32 %v673, %v729
          %731 = vmatmul.f32.gmra.mxu0 %v692
          %v732 = vpop.f32.mrf.mxu0
          %v733 = vadd.f32 %v673, %v732
          %734 = vmatmul.f32.gmra.mxu0 %v695
          %v735 = vpop.f32.mrf.mxu0
          %v736 = vadd.f32 %v673, %v735
          %737 = vmatmul.f32.gmra.mxu0 %v698
          %v738 = vpop.f32.mrf.mxu0
          %v739 = vadd.f32 %v673, %v738
          %740 = vmatmul.f32.gmra.mxu0 %v701
          %v741 = vpop.f32.mrf.mxu0
          %v742 = vadd.f32 %v673, %v741
          %743 = vmatmul.f32.gmra.mxu0 %v704
          %v744 = vpop.f32.mrf.mxu0
          %v745 = vadd.f32 %v673, %v744
          %746 = vdwg.mxu0
          %747 = vmatpush.msra.mxu0 0.0
          %748 = vmatpush.msra.mxu0 0.0
          %749 = vmatpush.msra.mxu0 0.0
          %750 = vmatpush.msra.mxu0 0.0
          %751 = vmatpush.msra.mxu0 0.0
          %752 = vmatpush.msra.mxu0 0.0
          %753 = vmatpush.msra.mxu0 0.0
          %754 = vmatpush.msra.mxu0 0.0
          %755 = vmatpush.msra.mxu0 0.0
          %756 = vmatpush.msra.mxu0 0.0
          %757 = vmatpush.msra.mxu0 0.0
          %758 = vmatpush.msra.mxu0 0.0
          %759 = vmatpush.msra.mxu0 %v669
          %760 = vmatpush.msra.mxu0 %v665
          %761 = vmatpush.msra.mxu0 %v661
          %762 = vmatpush.msra.mxu0 %v657
          %763 = vmatmul.f32.gmra.mxu0 %v683
          %v764 = vpop.f32.mrf.mxu0
          %v765 = vadd.f32 %v674, %v764
          %766 = vmatmul.f32.gmra.mxu0 %v686
          %v767 = vpop.f32.mrf.mxu0
          %v768 = vadd.f32 %v674, %v767
          %769 = vmatmul.f32.gmra.mxu0 %v689
          %v770 = vpop.f32.mrf.mxu0
          %v771 = vadd.f32 %v674, %v770
          %772 = vmatmul.f32.gmra.mxu0 %v692
          %v773 = vpop.f32.mrf.mxu0
          %v774 = vadd.f32 %v674, %v773
          %775 = vmatmul.f32.gmra.mxu0 %v695
          %v776 = vpop.f32.mrf.mxu0
          %v777 = vadd.f32 %v674, %v776
          %778 = vmatmul.f32.gmra.mxu0 %v698
          %v779 = vpop.f32.mrf.mxu0
          %v780 = vadd.f32 %v674, %v779
          %781 = vmatmul.f32.gmra.mxu0 %v701
          %v782 = vpop.f32.mrf.mxu0
          %v783 = vadd.f32 %v674, %v782
          %784 = vmatmul.f32.gmra.mxu0 %v704
          %v785 = vpop.f32.mrf.mxu0
          %v786 = vadd.f32 %v674, %v785
          %787 = vdwg.mxu0
          %788 = vmatpush.msra.mxu0 0.0
          %789 = vmatpush.msra.mxu0 0.0
          %790 = vmatpush.msra.mxu0 0.0
          %791 = vmatpush.msra.mxu0 0.0
          %792 = vmatpush.msra.mxu0 0.0
          %793 = vmatpush.msra.mxu0 0.0
          %794 = vmatpush.msra.mxu0 0.0
          %795 = vmatpush.msra.mxu0 0.0
          %796 = vmatpush.msra.mxu0 0.0
          %797 = vmatpush.msra.mxu0 0.0
          %798 = vmatpush.msra.mxu0 0.0
          %799 = vmatpush.msra.mxu0 0.0
          %800 = vmatpush.msra.mxu0 %v670
          %801 = vmatpush.msra.mxu0 %v666
          %802 = vmatpush.msra.mxu0 %v662
          %803 = vmatpush.msra.mxu0 %v658
          %804 = vmatmul.f32.gmra.mxu0 %v683
          %v805 = vpop.f32.mrf.mxu0
          %v806 = vadd.f32 %v675, %v805
          %807 = vmatmul.f32.gmra.mxu0 %v686
          %v808 = vpop.f32.mrf.mxu0
          %v809 = vadd.f32 %v675, %v808
          %810 = vmatmul.f32.gmra.mxu0 %v689
          %v811 = vpop.f32.mrf.mxu0
          %v812 = vadd.f32 %v675, %v811
          %813 = vmatmul.f32.gmra.mxu0 %v692
          %v814 = vpop.f32.mrf.mxu0
          %v815 = vadd.f32 %v675, %v814
          %816 = vmatmul.f32.gmra.mxu0 %v695
          %v817 = vpop.f32.mrf.mxu0
          %v818 = vadd.f32 %v675, %v817
          %819 = vmatmul.f32.gmra.mxu0 %v698
          %v820 = vpop.f32.mrf.mxu0
          %v821 = vadd.f32 %v675, %v820
          %822 = vmatmul.f32.gmra.mxu0 %v701
          %v823 = vpop.f32.mrf.mxu0
          %v824 = vadd.f32 %v675, %v823
          %825 = vmatmul.f32.gmra.mxu0 %v704
          %v826 = vpop.f32.mrf.mxu0
          %v827 = vadd.f32 %v675, %v826
          %828 = vdwg.mxu0
          %829 = vmatpush.msra.mxu0 0.0
          %830 = vmatpush.msra.mxu0 0.0
          %831 = vmatpush.msra.mxu0 0.0
          %832 = vmatpush.msra.mxu0 0.0
          %833 = vmatpush.msra.mxu0 0.0
          %834 = vmatpush.msra.mxu0 0.0
          %835 = vmatpush.msra.mxu0 0.0
          %836 = vmatpush.msra.mxu0 0.0
          %837 = vmatpush.msra.mxu0 0.0
          %838 = vmatpush.msra.mxu0 0.0
          %839 = vmatpush.msra.mxu0 0.0
          %840 = vmatpush.msra.mxu0 0.0
          %841 = vmatpush.msra.mxu0 %v671
          %842 = vmatpush.msra.mxu0 %v667
          %843 = vmatpush.msra.mxu0 %v663
          %844 = vmatpush.msra.mxu0 %v659
          %845 = vmatmul.f32.gmra.mxu0 %v683
          %v846 = vpop.f32.mrf.mxu0
          %v847 = vadd.f32 %v676, %v846
          %848 = vmatmul.f32.gmra.mxu0 %v686
          %v849 = vpop.f32.mrf.mxu0
          %v850 = vadd.f32 %v676, %v849
          %851 = vmatmul.f32.gmra.mxu0 %v689
          %v852 = vpop.f32.mrf.mxu0
          %v853 = vadd.f32 %v676, %v852
          %854 = vmatmul.f32.gmra.mxu0 %v692
          %v855 = vpop.f32.mrf.mxu0
          %v856 = vadd.f32 %v676, %v855
          %857 = vmatmul.f32.gmra.mxu0 %v695
          %v858 = vpop.f32.mrf.mxu0
          %v859 = vadd.f32 %v676, %v858
          %860 = vmatmul.f32.gmra.mxu0 %v698
          %v861 = vpop.f32.mrf.mxu0
          %v862 = vadd.f32 %v676, %v861
          %863 = vmatmul.f32.gmra.mxu0 %v701
          %v864 = vpop.f32.mrf.mxu0
          %v865 = vadd.f32 %v676, %v864
          %866 = vmatmul.f32.gmra.mxu0 %v704
          %v867 = vpop.f32.mrf.mxu0
          %v868 = vadd.f32 %v676, %v867
          %869 = vdwg.mxu0
          %870 = vst [vmem:[#allocation2] sm:$0xff] %v724
          %871 = vst [vmem:[#allocation2 + $0x8] sm:$0xff] %v765
          %872 = vst [vmem:[#allocation2 + $0x10] sm:$0xff] %v806
          %873 = vst [vmem:[#allocation2 + $0x18] sm:$0xff] %v847
          %874 = vst [vmem:[#allocation2 + $0x20] sm:$0xff] %v727
          %875 = vst [vmem:[#allocation2 + $0x28] sm:$0xff] %v768
          %876 = vst [vmem:[#allocation2 + $0x30] sm:$0xff] %v809
          %877 = vst [vmem:[#allocation2 + $0x38] sm:$0xff] %v850
          %878 = vst [vmem:[#allocation2 + $0x40] sm:$0xff] %v730
          %879 = vst [vmem:[#allocation2 + $0x48] sm:$0xff] %v771
          %880 = vst [vmem:[#allocation2 + $0x50] sm:$0xff] %v812
          %881 = vst [vmem:[#allocation2 + $0x58] sm:$0xff] %v853
          %882 = vst [vmem:[#allocation2 + $0x60] sm:$0xff] %v733
          %883 = vst [vmem:[#allocation2 + $0x68] sm:$0xff] %v774
          %884 = vst [vmem:[#allocation2 + $0x70] sm:$0xff] %v815
          %885 = vst [vmem:[#allocation2 + $0x78] sm:$0xff] %v856
          %886 = vst [vmem:[#allocation2 + $0x80] sm:$0xff] %v736
          %887 = vst [vmem:[#allocation2 + $0x88] sm:$0xff] %v777
          %888 = vst [vmem:[#allocation2 + $0x90] sm:$0xff] %v818
          %889 = vst [vmem:[#allocation2 + $0x98] sm:$0xff] %v859
          %890 = vst [vmem:[#allocation2 + $0xa0] sm:$0xff] %v739
          %891 = vst [vmem:[#allocation2 + $0xa8] sm:$0xff] %v780
          %892 = vst [vmem:[#allocation2 + $0xb0] sm:$0xff] %v821
          %893 = vst [vmem:[#allocation2 + $0xb8] sm:$0xff] %v862
          %894 = vst [vmem:[#allocation2 + $0xc0] sm:$0xff] %v742
          %895 = vst [vmem:[#allocation2 + $0xc8] sm:$0xff] %v783
          %896 = vst [vmem:[#allocation2 + $0xd0] sm:$0xff] %v824
          %897 = vst [vmem:[#allocation2 + $0xd8] sm:$0xff] %v865
          %898 = vst [vmem:[#allocation2 + $0xe0] sm:$0xff] %v745
          %899 = vst [vmem:[#allocation2 + $0xe8] sm:$0xff] %v786
          %900 = vst [vmem:[#allocation2 + $0xf0] sm:$0xff] %v827
          %901 = vst [vmem:[#allocation2 + $0xf8] sm:$0xff] %v868
        $region76: #{lstm_multiclassifier_forward.1} parent=55 // pred_fallthru
          _
        %p902 = scmp.gt.s32.totalorder %s35, 0
        // Predicated region
        $region77: #{lstm_multiclassifier_forward.1} parent=55 // pred_check
          %p903 = pneg %p902
        $region78: #{lstm_multiclassifier_forward.1} parent=55 // pred_check_branch
          %905 = sbr.rel (%p903) target = $region80
        $region79: #{lstm_multiclassifier_forward.1} parent=55 // pred_region
          %v906 = vld [vmem:[#allocation3] sm:$0xf]
          %v907 = vld [vmem:[#allocation3 + $0x4] sm:$0xf]
          %v908 = vld [vmem:[#allocation3 + $0x8] sm:$0xf]
          %v909 = vld [vmem:[#allocation3 + $0xc] sm:$0xf]
          %v910 = vld [vmem:[#allocation3 + $0x10] sm:$0xf]
          %v911 = vld [vmem:[#allocation3 + $0x14] sm:$0xf]
          %v912 = vld [vmem:[#allocation3 + $0x18] sm:$0xf]
          %v913 = vld [vmem:[#allocation3 + $0x1c] sm:$0xf]
          %v914 = vunpack.c.l.bf16 %v906
          %v915 = vunpack.c.l.bf16 %v907
          %v916 = vunpack.c.l.bf16 %v908
          %v917 = vunpack.c.l.bf16 %v909
          %v918 = vunpack.c.l.bf16 %v910
          %v919 = vunpack.c.l.bf16 %v911
          %v920 = vunpack.c.l.bf16 %v912
          %v921 = vunpack.c.l.bf16 %v913
          %v922 = vld [vmem:[%s506] sm:$0xff]
          %v923 = vld [vmem:[%s506 + $0x8] sm:$0xff]
          %v924 = vld [vmem:[%s506 + $0x10] sm:$0xff]
          %v925 = vld [vmem:[%s506 + $0x18] sm:$0xff]
          %v926 = vld [vmem:[%s506 + $0x20] sm:$0xff]
          %v927 = vld [vmem:[%s506 + $0x28] sm:$0xff]
          %v928 = vld [vmem:[%s506 + $0x30] sm:$0xff]
          %v929 = vld [vmem:[%s506 + $0x38] sm:$0xff]
          %v930 = vld [vmem:[%s506 + $0x40] sm:$0xff]
          %v931 = vld [vmem:[%s506 + $0x48] sm:$0xff]
          %v932 = vld [vmem:[%s506 + $0x50] sm:$0xff]
          %v933 = vld [vmem:[%s506 + $0x58] sm:$0xff]
          %v934 = vld [vmem:[%s506 + $0x60] sm:$0xff]
          %v935 = vld [vmem:[%s506 + $0x68] sm:$0xff]
          %v936 = vld [vmem:[%s506 + $0x70] sm:$0xff]
          %v937 = vld [vmem:[%s506 + $0x78] sm:$0xff]
          %v938 = vld [vmem:[%s506 + $0x80] sm:$0xff]
          %v939 = vld [vmem:[%s506 + $0x88] sm:$0xff]
          %v940 = vld [vmem:[%s506 + $0x90] sm:$0xff]
          %v941 = vld [vmem:[%s506 + $0x98] sm:$0xff]
          %v942 = vld [vmem:[%s506 + $0xa0] sm:$0xff]
          %v943 = vld [vmem:[%s506 + $0xa8] sm:$0xff]
          %v944 = vld [vmem:[%s506 + $0xb0] sm:$0xff]
          %v945 = vld [vmem:[%s506 + $0xb8] sm:$0xff]
          %v946 = vld [vmem:[%s506 + $0xc0] sm:$0xff]
          %v947 = vld [vmem:[%s506 + $0xc8] sm:$0xff]
          %v948 = vld [vmem:[%s506 + $0xd0] sm:$0xff]
          %v949 = vld [vmem:[%s506 + $0xd8] sm:$0xff]
          %v950 = vld [vmem:[%s506 + $0xe0] sm:$0xff]
          %v951 = vld [vmem:[%s506 + $0xe8] sm:$0xff]
          %v952 = vld [vmem:[%s506 + $0xf0] sm:$0xff]
          %v953 = vld [vmem:[%s506 + $0xf8] sm:$0xff]
          %v954 = vld [vmem:[%s506 + $0x100] sm:$0xff]
          %v955 = vld [vmem:[%s506 + $0x108] sm:$0xff]
          %v956 = vld [vmem:[%s506 + $0x110] sm:$0xff]
          %v957 = vld [vmem:[%s506 + $0x118] sm:$0xff]
          %v958 = vld [vmem:[%s506 + $0x120] sm:$0xff]
          %v959 = vld [vmem:[%s506 + $0x128] sm:$0xff]
          %v960 = vld [vmem:[%s506 + $0x130] sm:$0xff]
          %v961 = vld [vmem:[%s506 + $0x138] sm:$0xff]
          %v962 = vld [vmem:[%s506 + $0x140] sm:$0xff]
          %v963 = vld [vmem:[%s506 + $0x148] sm:$0xff]
          %v964 = vld [vmem:[%s506 + $0x150] sm:$0xff]
          %v965 = vld [vmem:[%s506 + $0x158] sm:$0xff]
          %v966 = vld [vmem:[%s506 + $0x160] sm:$0xff]
          %v967 = vld [vmem:[%s506 + $0x168] sm:$0xff]
          %v968 = vld [vmem:[%s506 + $0x170] sm:$0xff]
          %v969 = vld [vmem:[%s506 + $0x178] sm:$0xff]
          %v970 = vld [vmem:[%s506 + $0x180] sm:$0xff]
          %v971 = vld [vmem:[%s506 + $0x188] sm:$0xff]
          %v972 = vld [vmem:[%s506 + $0x190] sm:$0xff]
          %v973 = vld [vmem:[%s506 + $0x198] sm:$0xff]
          %v974 = vld [vmem:[%s506 + $0x1a0] sm:$0xff]
          %v975 = vld [vmem:[%s506 + $0x1a8] sm:$0xff]
          %v976 = vld [vmem:[%s506 + $0x1b0] sm:$0xff]
          %v977 = vld [vmem:[%s506 + $0x1b8] sm:$0xff]
          %v978 = vld [vmem:[%s506 + $0x1c0] sm:$0xff]
          %v979 = vld [vmem:[%s506 + $0x1c8] sm:$0xff]
          %v980 = vld [vmem:[%s506 + $0x1d0] sm:$0xff]
          %v981 = vld [vmem:[%s506 + $0x1d8] sm:$0xff]
          %v982 = vld [vmem:[%s506 + $0x1e0] sm:$0xff]
          %v983 = vld [vmem:[%s506 + $0x1e8] sm:$0xff]
          %v984 = vld [vmem:[%s506 + $0x1f0] sm:$0xff]
          %v985 = vld [vmem:[%s506 + $0x1f8] sm:$0xff]
          %v987 = vperm.slane %v643, 0
          %v988 = vperm.slane %v643, 1
          %v989 = vperm.slane %v643, 2
          %v990 = vperm.slane %v643, 3
          %995 = vmatpush.msra.mxu0 %v982
          %996 = vmatpush.msra.mxu0 %v978
          %997 = vmatpush.msra.mxu0 %v974
          %998 = vmatpush.msra.mxu0 %v970
          %999 = vmatpush.msra.mxu0 %v966
          %1000 = vmatpush.msra.mxu0 %v962
          %1001 = vmatpush.msra.mxu0 %v958
          %1002 = vmatpush.msra.mxu0 %v954
          %1003 = vmatpush.msra.mxu0 %v950
          %1004 = vmatpush.msra.mxu0 %v946
          %1005 = vmatpush.msra.mxu0 %v942
          %1006 = vmatpush.msra.mxu0 %v938
          %1007 = vmatpush.msra.mxu0 %v934
          %1008 = vmatpush.msra.mxu0 %v930
          %1009 = vmatpush.msra.mxu0 %v926
          %1010 = vmatpush.msra.mxu0 %v922
          %1011 = vmatmul.f32.gmra.mxu0 %v914
          %v1012 = vpop.f32.mrf.mxu0
          %v1013 = vadd.f32 %v987, %v1012
          %1014 = vmatmul.f32.gmra.mxu0 %v915
          %v1015 = vpop.f32.mrf.mxu0
          %v1016 = vadd.f32 %v987, %v1015
          %1017 = vmatmul.f32.gmra.mxu0 %v916
          %v1018 = vpop.f32.mrf.mxu0
          %v1019 = vadd.f32 %v987, %v1018
          %1020 = vmatmul.f32.gmra.mxu0 %v917
          %v1021 = vpop.f32.mrf.mxu0
          %v1022 = vadd.f32 %v987, %v1021
          %1023 = vmatmul.f32.gmra.mxu0 %v918
          %v1024 = vpop.f32.mrf.mxu0
          %v1025 = vadd.f32 %v987, %v1024
          %1026 = vmatmul.f32.gmra.mxu0 %v919
          %v1027 = vpop.f32.mrf.mxu0
          %v1028 = vadd.f32 %v987, %v1027
          %1029 = vmatmul.f32.gmra.mxu0 %v920
          %v1030 = vpop.f32.mrf.mxu0
          %v1031 = vadd.f32 %v987, %v1030
          %1032 = vmatmul.f32.gmra.mxu0 %v921
          %v1033 = vpop.f32.mrf.mxu0
          %v1034 = vadd.f32 %v987, %v1033
          %1035 = vdwg.mxu0
          %1036 = vmatpush.msra.mxu0 %v983
          %1037 = vmatpush.msra.mxu0 %v979
          %1038 = vmatpush.msra.mxu0 %v975
          %1039 = vmatpush.msra.mxu0 %v971
          %1040 = vmatpush.msra.mxu0 %v967
          %1041 = vmatpush.msra.mxu0 %v963
          %1042 = vmatpush.msra.mxu0 %v959
          %1043 = vmatpush.msra.mxu0 %v955
          %1044 = vmatpush.msra.mxu0 %v951
          %1045 = vmatpush.msra.mxu0 %v947
          %1046 = vmatpush.msra.mxu0 %v943
          %1047 = vmatpush.msra.mxu0 %v939
          %1048 = vmatpush.msra.mxu0 %v935
          %1049 = vmatpush.msra.mxu0 %v931
          %1050 = vmatpush.msra.mxu0 %v927
          %1051 = vmatpush.msra.mxu0 %v923
          %1052 = vmatmul.f32.gmra.mxu0 %v914
          %v1053 = vpop.f32.mrf.mxu0
          %v1054 = vadd.f32 %v988, %v1053
          %1055 = vmatmul.f32.gmra.mxu0 %v915
          %v1056 = vpop.f32.mrf.mxu0
          %v1057 = vadd.f32 %v988, %v1056
          %1058 = vmatmul.f32.gmra.mxu0 %v916
          %v1059 = vpop.f32.mrf.mxu0
          %v1060 = vadd.f32 %v988, %v1059
          %1061 = vmatmul.f32.gmra.mxu0 %v917
          %v1062 = vpop.f32.mrf.mxu0
          %v1063 = vadd.f32 %v988, %v1062
          %1064 = vmatmul.f32.gmra.mxu0 %v918
          %v1065 = vpop.f32.mrf.mxu0
          %v1066 = vadd.f32 %v988, %v1065
          %1067 = vmatmul.f32.gmra.mxu0 %v919
          %v1068 = vpop.f32.mrf.mxu0
          %v1069 = vadd.f32 %v988, %v1068
          %1070 = vmatmul.f32.gmra.mxu0 %v920
          %v1071 = vpop.f32.mrf.mxu0
          %v1072 = vadd.f32 %v988, %v1071
          %1073 = vmatmul.f32.gmra.mxu0 %v921
          %v1074 = vpop.f32.mrf.mxu0
          %v1075 = vadd.f32 %v988, %v1074
          %1076 = vdwg.mxu0
          %1077 = vmatpush.msra.mxu0 %v984
          %1078 = vmatpush.msra.mxu0 %v980
          %1079 = vmatpush.msra.mxu0 %v976
          %1080 = vmatpush.msra.mxu0 %v972
          %1081 = vmatpush.msra.mxu0 %v968
          %1082 = vmatpush.msra.mxu0 %v964
          %1083 = vmatpush.msra.mxu0 %v960
          %1084 = vmatpush.msra.mxu0 %v956
          %1085 = vmatpush.msra.mxu0 %v952
          %1086 = vmatpush.msra.mxu0 %v948
          %1087 = vmatpush.msra.mxu0 %v944
          %1088 = vmatpush.msra.mxu0 %v940
          %1089 = vmatpush.msra.mxu0 %v936
          %1090 = vmatpush.msra.mxu0 %v932
          %1091 = vmatpush.msra.mxu0 %v928
          %1092 = vmatpush.msra.mxu0 %v924
          %1093 = vmatmul.f32.gmra.mxu0 %v914
          %v1094 = vpop.f32.mrf.mxu0
          %v1095 = vadd.f32 %v989, %v1094
          %1096 = vmatmul.f32.gmra.mxu0 %v915
          %v1097 = vpop.f32.mrf.mxu0
          %v1098 = vadd.f32 %v989, %v1097
          %1099 = vmatmul.f32.gmra.mxu0 %v916
          %v1100 = vpop.f32.mrf.mxu0
          %v1101 = vadd.f32 %v989, %v1100
          %1102 = vmatmul.f32.gmra.mxu0 %v917
          %v1103 = vpop.f32.mrf.mxu0
          %v1104 = vadd.f32 %v989, %v1103
          %1105 = vmatmul.f32.gmra.mxu0 %v918
          %v1106 = vpop.f32.mrf.mxu0
          %v1107 = vadd.f32 %v989, %v1106
          %1108 = vmatmul.f32.gmra.mxu0 %v919
          %v1109 = vpop.f32.mrf.mxu0
          %v1110 = vadd.f32 %v989, %v1109
          %1111 = vmatmul.f32.gmra.mxu0 %v920
          %v1112 = vpop.f32.mrf.mxu0
          %v1113 = vadd.f32 %v989, %v1112
          %1114 = vmatmul.f32.gmra.mxu0 %v921
          %v1115 = vpop.f32.mrf.mxu0
          %v1116 = vadd.f32 %v989, %v1115
          %1117 = vdwg.mxu0
          %1118 = vmatpush.msra.mxu0 %v985
          %1119 = vmatpush.msra.mxu0 %v981
          %1120 = vmatpush.msra.mxu0 %v977
          %1121 = vmatpush.msra.mxu0 %v973
          %1122 = vmatpush.msra.mxu0 %v969
          %1123 = vmatpush.msra.mxu0 %v965
          %1124 = vmatpush.msra.mxu0 %v961
          %1125 = vmatpush.msra.mxu0 %v957
          %1126 = vmatpush.msra.mxu0 %v953
          %1127 = vmatpush.msra.mxu0 %v949
          %1128 = vmatpush.msra.mxu0 %v945
          %1129 = vmatpush.msra.mxu0 %v941
          %1130 = vmatpush.msra.mxu0 %v937
          %1131 = vmatpush.msra.mxu0 %v933
          %1132 = vmatpush.msra.mxu0 %v929
          %1133 = vmatpush.msra.mxu0 %v925
          %1134 = vmatmul.f32.gmra.mxu0 %v914
          %v1135 = vpop.f32.mrf.mxu0
          %v1136 = vadd.f32 %v990, %v1135
          %1137 = vmatmul.f32.gmra.mxu0 %v915
          %v1138 = vpop.f32.mrf.mxu0
          %v1139 = vadd.f32 %v990, %v1138
          %1140 = vmatmul.f32.gmra.mxu0 %v916
          %v1141 = vpop.f32.mrf.mxu0
          %v1142 = vadd.f32 %v990, %v1141
          %1143 = vmatmul.f32.gmra.mxu0 %v917
          %v1144 = vpop.f32.mrf.mxu0
          %v1145 = vadd.f32 %v990, %v1144
          %1146 = vmatmul.f32.gmra.mxu0 %v918
          %v1147 = vpop.f32.mrf.mxu0
          %v1148 = vadd.f32 %v990, %v1147
          %1149 = vmatmul.f32.gmra.mxu0 %v919
          %v1150 = vpop.f32.mrf.mxu0
          %v1151 = vadd.f32 %v990, %v1150
          %1152 = vmatmul.f32.gmra.mxu0 %v920
          %v1153 = vpop.f32.mrf.mxu0
          %v1154 = vadd.f32 %v990, %v1153
          %1155 = vmatmul.f32.gmra.mxu0 %v921
          %v1156 = vpop.f32.mrf.mxu0
          %v1157 = vadd.f32 %v990, %v1156
          %1158 = vdwg.mxu0
          %1159 = vst [vmem:[#allocation2] sm:$0xff] %v1013
          %1160 = vst [vmem:[#allocation2 + $0x8] sm:$0xff] %v1054
          %1161 = vst [vmem:[#allocation2 + $0x10] sm:$0xff] %v1095
          %1162 = vst [vmem:[#allocation2 + $0x18] sm:$0xff] %v1136
          %1163 = vst [vmem:[#allocation2 + $0x20] sm:$0xff] %v1016
          %1164 = vst [vmem:[#allocation2 + $0x28] sm:$0xff] %v1057
          %1165 = vst [vmem:[#allocation2 + $0x30] sm:$0xff] %v1098
          %1166 = vst [vmem:[#allocation2 + $0x38] sm:$0xff] %v1139
          %1167 = vst [vmem:[#allocation2 + $0x40] sm:$0xff] %v1019
          %1168 = vst [vmem:[#allocation2 + $0x48] sm:$0xff] %v1060
          %1169 = vst [vmem:[#allocation2 + $0x50] sm:$0xff] %v1101
          %1170 = vst [vmem:[#allocation2 + $0x58] sm:$0xff] %v1142
          %1171 = vst [vmem:[#allocation2 + $0x60] sm:$0xff] %v1022
          %1172 = vst [vmem:[#allocation2 + $0x68] sm:$0xff] %v1063
          %1173 = vst [vmem:[#allocation2 + $0x70] sm:$0xff] %v1104
          %1174 = vst [vmem:[#allocation2 + $0x78] sm:$0xff] %v1145
          %1175 = vst [vmem:[#allocation2 + $0x80] sm:$0xff] %v1025
          %1176 = vst [vmem:[#allocation2 + $0x88] sm:$0xff] %v1066
          %1177 = vst [vmem:[#allocation2 + $0x90] sm:$0xff] %v1107
          %1178 = vst [vmem:[#allocation2 + $0x98] sm:$0xff] %v1148
          %1179 = vst [vmem:[#allocation2 + $0xa0] sm:$0xff] %v1028
          %1180 = vst [vmem:[#allocation2 + $0xa8] sm:$0xff] %v1069
          %1181 = vst [vmem:[#allocation2 + $0xb0] sm:$0xff] %v1110
          %1182 = vst [vmem:[#allocation2 + $0xb8] sm:$0xff] %v1151
          %1183 = vst [vmem:[#allocation2 + $0xc0] sm:$0xff] %v1031
          %1184 = vst [vmem:[#allocation2 + $0xc8] sm:$0xff] %v1072
          %1185 = vst [vmem:[#allocation2 + $0xd0] sm:$0xff] %v1113
          %1186 = vst [vmem:[#allocation2 + $0xd8] sm:$0xff] %v1154
          %1187 = vst [vmem:[#allocation2 + $0xe0] sm:$0xff] %v1034
          %1188 = vst [vmem:[#allocation2 + $0xe8] sm:$0xff] %v1075
          %1189 = vst [vmem:[#allocation2 + $0xf0] sm:$0xff] %v1116
          %1190 = vst [vmem:[#allocation2 + $0xf8] sm:$0xff] %v1157
        $region80: #{lstm_multiclassifier_forward.1} parent=55 // pred_fallthru
          _
        %p1191 = scmp.eq.s32.totalorder %s34, 0
        // Predicated region
        $region81: #{lstm_multiclassifier_forward.1} parent=55 // pred_check
          %p1192 = pneg %p1191
        $region82: #{lstm_multiclassifier_forward.1} parent=55 // pred_check_branch
          %1194 = sbr.rel (%p1192) target = $region84
        $region83: #{lstm_multiclassifier_forward.1} parent=55 // pred_region
          %v1195 = vld [vmem:[%s619] sm:$0xff]
          %s1196 = smul.u32 %s35, 8
          %s1197 = scalar_lea.vmem [#allocation4], %s1196
          %1198 = vst [vmem:[%s1197] sm:$0xff] %v1195
          %v1199 = vld [vmem:[%s625] sm:$0xff]
          %s1200 = scalar_lea.vmem [#allocation5], %s1196
          %1201 = vst [vmem:[%s1200] sm:$0xff] %v1199
        $region84: #{lstm_multiclassifier_forward.1} parent=55 // pred_fallthru
          _
        %v1202 = vld [vmem:[%s516] sm:$0xff]
        %v1203 = vld [vmem:[%s516 + $0x8] sm:$0xff]
        %v1204 = vld [vmem:[%s516 + $0x10] sm:$0xff]
        %v1205 = vld [vmem:[%s516 + $0x18] sm:$0xff]
        %v1206 = vld [vmem:[%s516 + $0x20] sm:$0xff]
        %v1207 = vld [vmem:[%s516 + $0x28] sm:$0xff]
        %v1208 = vld [vmem:[%s516 + $0x30] sm:$0xff]
        %v1209 = vld [vmem:[%s516 + $0x38] sm:$0xff]
        %v1210 = vld [vmem:[%s516 + $0x40] sm:$0xff]
        %v1211 = vld [vmem:[%s516 + $0x48] sm:$0xff]
        %v1212 = vld [vmem:[%s516 + $0x50] sm:$0xff]
        %v1213 = vld [vmem:[%s516 + $0x58] sm:$0xff]
        %v1214 = vld [vmem:[%s516 + $0x60] sm:$0xff]
        %v1215 = vld [vmem:[%s516 + $0x68] sm:$0xff]
        %v1216 = vld [vmem:[%s516 + $0x70] sm:$0xff]
        %v1217 = vld [vmem:[%s516 + $0x78] sm:$0xff]
        %v1218 = vld [vmem:[%s516 + $0x80] sm:$0xff]
        %v1219 = vld [vmem:[%s516 + $0x88] sm:$0xff]
        %v1220 = vld [vmem:[%s516 + $0x90] sm:$0xff]
        %v1221 = vld [vmem:[%s516 + $0x98] sm:$0xff]
        %v1222 = vld [vmem:[%s516 + $0xa0] sm:$0xff]
        %v1223 = vld [vmem:[%s516 + $0xa8] sm:$0xff]
        %v1224 = vld [vmem:[%s516 + $0xb0] sm:$0xff]
        %v1225 = vld [vmem:[%s516 + $0xb8] sm:$0xff]
        %v1226 = vld [vmem:[%s516 + $0xc0] sm:$0xff]
        %v1227 = vld [vmem:[%s516 + $0xc8] sm:$0xff]
        %v1228 = vld [vmem:[%s516 + $0xd0] sm:$0xff]
        %v1229 = vld [vmem:[%s516 + $0xd8] sm:$0xff]
        %v1230 = vld [vmem:[%s516 + $0xe0] sm:$0xff]
        %v1231 = vld [vmem:[%s516 + $0xe8] sm:$0xff]
        %v1232 = vld [vmem:[%s516 + $0xf0] sm:$0xff]
        %v1233 = vld [vmem:[%s516 + $0xf8] sm:$0xff]
        %v1234 = vld [vmem:[%s516 + $0x100] sm:$0xff]
        %v1235 = vld [vmem:[%s516 + $0x108] sm:$0xff]
        %v1236 = vld [vmem:[%s516 + $0x110] sm:$0xff]
        %v1237 = vld [vmem:[%s516 + $0x118] sm:$0xff]
        %v1238 = vld [vmem:[%s516 + $0x120] sm:$0xff]
        %v1239 = vld [vmem:[%s516 + $0x128] sm:$0xff]
        %v1240 = vld [vmem:[%s516 + $0x130] sm:$0xff]
        %v1241 = vld [vmem:[%s516 + $0x138] sm:$0xff]
        %v1242 = vld [vmem:[%s516 + $0x140] sm:$0xff]
        %v1243 = vld [vmem:[%s516 + $0x148] sm:$0xff]
        %v1244 = vld [vmem:[%s516 + $0x150] sm:$0xff]
        %v1245 = vld [vmem:[%s516 + $0x158] sm:$0xff]
        %v1246 = vld [vmem:[%s516 + $0x160] sm:$0xff]
        %v1247 = vld [vmem:[%s516 + $0x168] sm:$0xff]
        %v1248 = vld [vmem:[%s516 + $0x170] sm:$0xff]
        %v1249 = vld [vmem:[%s516 + $0x178] sm:$0xff]
        %v1250 = vld [vmem:[%s516 + $0x180] sm:$0xff]
        %v1251 = vld [vmem:[%s516 + $0x188] sm:$0xff]
        %v1252 = vld [vmem:[%s516 + $0x190] sm:$0xff]
        %v1253 = vld [vmem:[%s516 + $0x198] sm:$0xff]
        %v1254 = vld [vmem:[%s516 + $0x1a0] sm:$0xff]
        %v1255 = vld [vmem:[%s516 + $0x1a8] sm:$0xff]
        %v1256 = vld [vmem:[%s516 + $0x1b0] sm:$0xff]
        %v1257 = vld [vmem:[%s516 + $0x1b8] sm:$0xff]
        %v1258 = vld [vmem:[%s516 + $0x1c0] sm:$0xff]
        %v1259 = vld [vmem:[%s516 + $0x1c8] sm:$0xff]
        %v1260 = vld [vmem:[%s516 + $0x1d0] sm:$0xff]
        %v1261 = vld [vmem:[%s516 + $0x1d8] sm:$0xff]
        %v1262 = vld [vmem:[%s516 + $0x1e0] sm:$0xff]
        %v1263 = vld [vmem:[%s516 + $0x1e8] sm:$0xff]
        %v1264 = vld [vmem:[%s516 + $0x1f0] sm:$0xff]
        %v1265 = vld [vmem:[%s516 + $0x1f8] sm:$0xff]
        %s1266 = smul.u32 %s35, 8
        %s1267 = scalar_lea.vmem [#allocation4], %s1266
        %v1268 = vld [vmem:[%s1267] sm:$0xff]
        %s1269 = scalar_lea.vmem [#allocation5], %s1266
        %v1270 = vld [vmem:[%s1269] sm:$0xff]
        %s1271 = smul.u32 0, 4
        %s1272 = smul.addr %s1271, 8
        %s1273 = scalar_lea.vmem [#allocation2], %s1272
        %v1274 = vld [vmem:[%s1273] sm:$0xff]
        %v1275 = vld [vmem:[%s1273 + $0x8] sm:$0xff]
        %v1276 = vld [vmem:[%s1273 + $0x10] sm:$0xff]
        %v1277 = vld [vmem:[%s1273 + $0x18] sm:$0xff]
        %1278 = vmatpush.msra.mxu0 %v1262
        %1279 = vmatpush.msra.mxu0 %v1258
        %1280 = vmatpush.msra.mxu0 %v1254
        %1281 = vmatpush.msra.mxu0 %v1250
        %1282 = vmatpush.msra.mxu0 %v1246
        %1283 = vmatpush.msra.mxu0 %v1242
        %1284 = vmatpush.msra.mxu0 %v1238
        %1285 = vmatpush.msra.mxu0 %v1234
        %1286 = vmatpush.msra.mxu0 %v1230
        %1287 = vmatpush.msra.mxu0 %v1226
        %1288 = vmatpush.msra.mxu0 %v1222
        %1289 = vmatpush.msra.mxu0 %v1218
        %1290 = vmatpush.msra.mxu0 %v1214
        %1291 = vmatpush.msra.mxu0 %v1210
        %1292 = vmatpush.msra.mxu0 %v1206
        %1293 = vmatpush.msra.mxu0 %v1202
        %1294 = vmatmul.f32.gmra.mxu0 %v1268
        %v1295 = vpop.f32.mrf.mxu0
        %v1296 = vadd.f32 0.0, %v1295
        %1297 = vdwg.mxu0
        %1298 = vmatpush.msra.mxu0 %v1263
        %1299 = vmatpush.msra.mxu0 %v1259
        %1300 = vmatpush.msra.mxu0 %v1255
        %1301 = vmatpush.msra.mxu0 %v1251
        %1302 = vmatpush.msra.mxu0 %v1247
        %1303 = vmatpush.msra.mxu0 %v1243
        %1304 = vmatpush.msra.mxu0 %v1239
        %1305 = vmatpush.msra.mxu0 %v1235
        %1306 = vmatpush.msra.mxu0 %v1231
        %1307 = vmatpush.msra.mxu0 %v1227
        %1308 = vmatpush.msra.mxu0 %v1223
        %1309 = vmatpush.msra.mxu0 %v1219
        %1310 = vmatpush.msra.mxu0 %v1215
        %1311 = vmatpush.msra.mxu0 %v1211
        %1312 = vmatpush.msra.mxu0 %v1207
        %1313 = vmatpush.msra.mxu0 %v1203
        %1314 = vmatmul.f32.gmra.mxu0 %v1268
        %v1315 = vpop.f32.mrf.mxu0
        %v1316 = vadd.f32 0.0, %v1315
        %1317 = vdwg.mxu0
        %1318 = vmatpush.msra.mxu0 %v1264
        %1319 = vmatpush.msra.mxu0 %v1260
        %1320 = vmatpush.msra.mxu0 %v1256
        %1321 = vmatpush.msra.mxu0 %v1252
        %1322 = vmatpush.msra.mxu0 %v1248
        %1323 = vmatpush.msra.mxu0 %v1244
        %1324 = vmatpush.msra.mxu0 %v1240
        %1325 = vmatpush.msra.mxu0 %v1236
        %1326 = vmatpush.msra.mxu0 %v1232
        %1327 = vmatpush.msra.mxu0 %v1228
        %1328 = vmatpush.msra.mxu0 %v1224
        %1329 = vmatpush.msra.mxu0 %v1220
        %1330 = vmatpush.msra.mxu0 %v1216
        %1331 = vmatpush.msra.mxu0 %v1212
        %1332 = vmatpush.msra.mxu0 %v1208
        %1333 = vmatpush.msra.mxu0 %v1204
        %1334 = vmatmul.f32.gmra.mxu0 %v1268
        %v1335 = vpop.f32.mrf.mxu0
        %v1336 = vadd.f32 0.0, %v1335
        %1337 = vdwg.mxu0
        %1338 = vmatpush.msra.mxu0 %v1265
        %1339 = vmatpush.msra.mxu0 %v1261
        %1340 = vmatpush.msra.mxu0 %v1257
        %1341 = vmatpush.msra.mxu0 %v1253
        %1342 = vmatpush.msra.mxu0 %v1249
        %1343 = vmatpush.msra.mxu0 %v1245
        %1344 = vmatpush.msra.mxu0 %v1241
        %1345 = vmatpush.msra.mxu0 %v1237
        %1346 = vmatpush.msra.mxu0 %v1233
        %1347 = vmatpush.msra.mxu0 %v1229
        %1348 = vmatpush.msra.mxu0 %v1225
        %1349 = vmatpush.msra.mxu0 %v1221
        %1350 = vmatpush.msra.mxu0 %v1217
        %1351 = vmatpush.msra.mxu0 %v1213
        %1352 = vmatpush.msra.mxu0 %v1209
        %1353 = vmatpush.msra.mxu0 %v1205
        %1354 = vmatmul.f32.gmra.mxu0 %v1268
        %v1355 = vpop.f32.mrf.mxu0
        %v1356 = vadd.f32 0.0, %v1355
        %1357 = vdwg.mxu0
        %v1358 = vadd.f32 %v1274, %v1296
        %v1359 = vadd.f32 %v1275, %v1316
        %v1360 = vadd.f32 %v1276, %v1336
        %v1361 = vadd.f32 %v1277, %v1356
        %v1362 = vxor.u32 %v1358, 2147483648
        %v1363 = vxor.u32 %v1359, 2147483648
        %v1364 = vxor.u32 %v1360, 2147483648
        %v1365 = vmul.f32 %v1362, 1.442695
        %v1366 = vpow.pop %v1365
        %v1367 = vmul.f32 %v1363, 1.442695
        %v1368 = vpow.pop %v1367
        %v1369 = vmul.f32 %v1364, 1.442695
        %v1370 = vpow.pop %v1369
        %v1371 = vadd.f32 %v1366, 1.0
        %v1372 = vadd.f32 %v1368, 1.0
        %v1373 = vadd.f32 %v1370, 1.0
        %v1374 = vrcp.pop %v1371
        %v1375 = vmul.f32 %v1371, %v1374
        %v1376 = vsub.f32 1.0, %v1375
        %v1377 = vmul.f32 %v1374, %v1376
        %v1378 = vadd.f32 %v1374, %v1377
        %vm1379 = vweird.f32 %v1371
        %vm1380 = vweird.f32 %v1374
        %vm1381 = vmor %vm1379, %vm1380
        %v1382 = vsel %vm1381, %v1374, %v1378
        %v1383 = vand.u32 2147483647, %v1371
        %vm1384 = vcmp.eq.f32.partialorder %v1383, 8.507059e+37
        %v1385 = vand.u32 %v1371, 2147483648
        %v1386 = vor.u32 1.1754944e-38, %v1385
        %v1387 = vsel %vm1384, %v1386, %v1382
        %v1388 = vmul.f32 1.0, %v1387
        %v1389 = vrcp.pop %v1372
        %v1390 = vmul.f32 %v1372, %v1389
        %v1391 = vsub.f32 1.0, %v1390
        %v1392 = vmul.f32 %v1389, %v1391
        %v1393 = vadd.f32 %v1389, %v1392
        %vm1394 = vweird.f32 %v1372
        %vm1395 = vweird.f32 %v1389
        %vm1396 = vmor %vm1394, %vm1395
        %v1397 = vsel %vm1396, %v1389, %v1393
        %v1398 = vand.u32 2147483647, %v1372
        %vm1399 = vcmp.eq.f32.partialorder %v1398, 8.507059e+37
        %v1400 = vand.u32 %v1372, 2147483648
        %v1401 = vor.u32 1.1754944e-38, %v1400
        %v1402 = vsel %vm1399, %v1401, %v1397
        %v1403 = vmul.f32 1.0, %v1402
        %v1404 = vrcp.pop %v1373
        %v1405 = vmul.f32 %v1373, %v1404
        %v1406 = vsub.f32 1.0, %v1405
        %v1407 = vmul.f32 %v1404, %v1406
        %v1408 = vadd.f32 %v1404, %v1407
        %vm1409 = vweird.f32 %v1373
        %vm1410 = vweird.f32 %v1404
        %vm1411 = vmor %vm1409, %vm1410
        %v1412 = vsel %vm1411, %v1404, %v1408
        %v1413 = vand.u32 2147483647, %v1373
        %vm1414 = vcmp.eq.f32.partialorder %v1413, 8.507059e+37
        %v1415 = vand.u32 %v1373, 2147483648
        %v1416 = vor.u32 1.1754944e-38, %v1415
        %v1417 = vsel %vm1414, %v1416, %v1412
        %v1418 = vmul.f32 1.0, %v1417
        %v1419 = vtanh.pop %v1361
        %v1420 = vmul.f32 %v1403, %v1270
        %v1421 = vmul.f32 %v1388, %v1419
        %v1422 = vadd.f32 %v1420, %v1421
        %v1423 = vtanh.pop %v1422
        %v1424 = vmul.f32 %v1418, %v1423
        %v1425 = vpack.c.bf16 %v1424, %v1424
        %1426 = vst [vmem:[#allocation3] sm:$0xf] %v1425
        %s1427 = smul.u32 1, 4
        %s1428 = smul.addr %s1427, 8
        %s1429 = scalar_lea.vmem [#allocation2], %s1428
        %v1430 = vld [vmem:[%s1429] sm:$0xff]
        %v1431 = vld [vmem:[%s1429 + $0x8] sm:$0xff]
        %v1432 = vld [vmem:[%s1429 + $0x10] sm:$0xff]
        %v1433 = vld [vmem:[%s1429 + $0x18] sm:$0xff]
        %1434 = vmatpush.msra.mxu0 %v1262
        %1435 = vmatpush.msra.mxu0 %v1258
        %1436 = vmatpush.msra.mxu0 %v1254
        %1437 = vmatpush.msra.mxu0 %v1250
        %1438 = vmatpush.msra.mxu0 %v1246
        %1439 = vmatpush.msra.mxu0 %v1242
        %1440 = vmatpush.msra.mxu0 %v1238
        %1441 = vmatpush.msra.mxu0 %v1234
        %1442 = vmatpush.msra.mxu0 %v1230
        %1443 = vmatpush.msra.mxu0 %v1226
        %1444 = vmatpush.msra.mxu0 %v1222
        %1445 = vmatpush.msra.mxu0 %v1218
        %1446 = vmatpush.msra.mxu0 %v1214
        %1447 = vmatpush.msra.mxu0 %v1210
        %1448 = vmatpush.msra.mxu0 %v1206
        %1449 = vmatpush.msra.mxu0 %v1202
        %1450 = vmatmul.f32.gmra.mxu0 %v1424
        %v1451 = vpop.f32.mrf.mxu0
        %v1452 = vadd.f32 0.0, %v1451
        %1453 = vdwg.mxu0
        %1454 = vmatpush.msra.mxu0 %v1263
        %1455 = vmatpush.msra.mxu0 %v1259
        %1456 = vmatpush.msra.mxu0 %v1255
        %1457 = vmatpush.msra.mxu0 %v1251
        %1458 = vmatpush.msra.mxu0 %v1247
        %1459 = vmatpush.msra.mxu0 %v1243
        %1460 = vmatpush.msra.mxu0 %v1239
        %1461 = vmatpush.msra.mxu0 %v1235
        %1462 = vmatpush.msra.mxu0 %v1231
        %1463 = vmatpush.msra.mxu0 %v1227
        %1464 = vmatpush.msra.mxu0 %v1223
        %1465 = vmatpush.msra.mxu0 %v1219
        %1466 = vmatpush.msra.mxu0 %v1215
        %1467 = vmatpush.msra.mxu0 %v1211
        %1468 = vmatpush.msra.mxu0 %v1207
        %1469 = vmatpush.msra.mxu0 %v1203
        %1470 = vmatmul.f32.gmra.mxu0 %v1424
        %v1471 = vpop.f32.mrf.mxu0
        %v1472 = vadd.f32 0.0, %v1471
        %1473 = vdwg.mxu0
        %1474 = vmatpush.msra.mxu0 %v1264
        %1475 = vmatpush.msra.mxu0 %v1260
        %1476 = vmatpush.msra.mxu0 %v1256
        %1477 = vmatpush.msra.mxu0 %v1252
        %1478 = vmatpush.msra.mxu0 %v1248
        %1479 = vmatpush.msra.mxu0 %v1244
        %1480 = vmatpush.msra.mxu0 %v1240
        %1481 = vmatpush.msra.mxu0 %v1236
        %1482 = vmatpush.msra.mxu0 %v1232
        %1483 = vmatpush.msra.mxu0 %v1228
        %1484 = vmatpush.msra.mxu0 %v1224
        %1485 = vmatpush.msra.mxu0 %v1220
        %1486 = vmatpush.msra.mxu0 %v1216
        %1487 = vmatpush.msra.mxu0 %v1212
        %1488 = vmatpush.msra.mxu0 %v1208
        %1489 = vmatpush.msra.mxu0 %v1204
        %1490 = vmatmul.f32.gmra.mxu0 %v1424
        %v1491 = vpop.f32.mrf.mxu0
        %v1492 = vadd.f32 0.0, %v1491
        %1493 = vdwg.mxu0
        %1494 = vmatpush.msra.mxu0 %v1265
        %1495 = vmatpush.msra.mxu0 %v1261
        %1496 = vmatpush.msra.mxu0 %v1257
        %1497 = vmatpush.msra.mxu0 %v1253
        %1498 = vmatpush.msra.mxu0 %v1249
        %1499 = vmatpush.msra.mxu0 %v1245
        %1500 = vmatpush.msra.mxu0 %v1241
        %1501 = vmatpush.msra.mxu0 %v1237
        %1502 = vmatpush.msra.mxu0 %v1233
        %1503 = vmatpush.msra.mxu0 %v1229
        %1504 = vmatpush.msra.mxu0 %v1225
        %1505 = vmatpush.msra.mxu0 %v1221
        %1506 = vmatpush.msra.mxu0 %v1217
        %1507 = vmatpush.msra.mxu0 %v1213
        %1508 = vmatpush.msra.mxu0 %v1209
        %1509 = vmatpush.msra.mxu0 %v1205
        %1510 = vmatmul.f32.gmra.mxu0 %v1424
        %v1511 = vpop.f32.mrf.mxu0
        %v1512 = vadd.f32 0.0, %v1511
        %1513 = vdwg.mxu0
        %v1514 = vadd.f32 %v1430, %v1452
        %v1515 = vadd.f32 %v1431, %v1472
        %v1516 = vadd.f32 %v1432, %v1492
        %v1517 = vadd.f32 %v1433, %v1512
        %v1518 = vxor.u32 %v1514, 2147483648
        %v1519 = vxor.u32 %v1515, 2147483648
        %v1520 = vxor.u32 %v1516, 2147483648
        %v1521 = vmul.f32 %v1518, 1.442695
        %v1522 = vpow.pop %v1521
        %v1523 = vmul.f32 %v1519, 1.442695
        %v1524 = vpow.pop %v1523
        %v1525 = vmul.f32 %v1520, 1.442695
        %v1526 = vpow.pop %v1525
        %v1527 = vadd.f32 %v1522, 1.0
        %v1528 = vadd.f32 %v1524, 1.0
        %v1529 = vadd.f32 %v1526, 1.0
        %v1530 = vrcp.pop %v1527
        %v1531 = vmul.f32 %v1527, %v1530
        %v1532 = vsub.f32 1.0, %v1531
        %v1533 = vmul.f32 %v1530, %v1532
        %v1534 = vadd.f32 %v1530, %v1533
        %vm1535 = vweird.f32 %v1527
        %vm1536 = vweird.f32 %v1530
        %vm1537 = vmor %vm1535, %vm1536
        %v1538 = vsel %vm1537, %v1530, %v1534
        %v1539 = vand.u32 2147483647, %v1527
        %vm1540 = vcmp.eq.f32.partialorder %v1539, 8.507059e+37
        %v1541 = vand.u32 %v1527, 2147483648
        %v1542 = vor.u32 1.1754944e-38, %v1541
        %v1543 = vsel %vm1540, %v1542, %v1538
        %v1544 = vmul.f32 1.0, %v1543
        %v1545 = vrcp.pop %v1528
        %v1546 = vmul.f32 %v1528, %v1545
        %v1547 = vsub.f32 1.0, %v1546
        %v1548 = vmul.f32 %v1545, %v1547
        %v1549 = vadd.f32 %v1545, %v1548
        %vm1550 = vweird.f32 %v1528
        %vm1551 = vweird.f32 %v1545
        %vm1552 = vmor %vm1550, %vm1551
        %v1553 = vsel %vm1552, %v1545, %v1549
        %v1554 = vand.u32 2147483647, %v1528
        %vm1555 = vcmp.eq.f32.partialorder %v1554, 8.507059e+37
        %v1556 = vand.u32 %v1528, 2147483648
        %v1557 = vor.u32 1.1754944e-38, %v1556
        %v1558 = vsel %vm1555, %v1557, %v1553
        %v1559 = vmul.f32 1.0, %v1558
        %v1560 = vrcp.pop %v1529
        %v1561 = vmul.f32 %v1529, %v1560
        %v1562 = vsub.f32 1.0, %v1561
        %v1563 = vmul.f32 %v1560, %v1562
        %v1564 = vadd.f32 %v1560, %v1563
        %vm1565 = vweird.f32 %v1529
        %vm1566 = vweird.f32 %v1560
        %vm1567 = vmor %vm1565, %vm1566
        %v1568 = vsel %vm1567, %v1560, %v1564
        %v1569 = vand.u32 2147483647, %v1529
        %vm1570 = vcmp.eq.f32.partialorder %v1569, 8.507059e+37
        %v1571 = vand.u32 %v1529, 2147483648
        %v1572 = vor.u32 1.1754944e-38, %v1571
        %v1573 = vsel %vm1570, %v1572, %v1568
        %v1574 = vmul.f32 1.0, %v1573
        %v1575 = vtanh.pop %v1517
        %v1576 = vmul.f32 %v1559, %v1422
        %v1577 = vmul.f32 %v1544, %v1575
        %v1578 = vadd.f32 %v1576, %v1577
        %v1579 = vtanh.pop %v1578
        %v1580 = vmul.f32 %v1574, %v1579
        %v1581 = vpack.c.bf16 %v1580, %v1580
        %s1582 = scalar_lea.vmem [#allocation3], 4
        %1583 = vst [vmem:[%s1582] sm:$0xf] %v1581
        %s1584 = smul.u32 2, 4
        %s1585 = smul.addr %s1584, 8
        %s1586 = scalar_lea.vmem [#allocation2], %s1585
        %v1587 = vld [vmem:[%s1586] sm:$0xff]
        %v1588 = vld [vmem:[%s1586 + $0x8] sm:$0xff]
        %v1589 = vld [vmem:[%s1586 + $0x10] sm:$0xff]
        %v1590 = vld [vmem:[%s1586 + $0x18] sm:$0xff]
        %1591 = vmatpush.msra.mxu0 %v1262
        %1592 = vmatpush.msra.mxu0 %v1258
        %1593 = vmatpush.msra.mxu0 %v1254
        %1594 = vmatpush.msra.mxu0 %v1250
        %1595 = vmatpush.msra.mxu0 %v1246
        %1596 = vmatpush.msra.mxu0 %v1242
        %1597 = vmatpush.msra.mxu0 %v1238
        %1598 = vmatpush.msra.mxu0 %v1234
        %1599 = vmatpush.msra.mxu0 %v1230
        %1600 = vmatpush.msra.mxu0 %v1226
        %1601 = vmatpush.msra.mxu0 %v1222
        %1602 = vmatpush.msra.mxu0 %v1218
        %1603 = vmatpush.msra.mxu0 %v1214
        %1604 = vmatpush.msra.mxu0 %v1210
        %1605 = vmatpush.msra.mxu0 %v1206
        %1606 = vmatpush.msra.mxu0 %v1202
        %1607 = vmatmul.f32.gmra.mxu0 %v1580
        %v1608 = vpop.f32.mrf.mxu0
        %v1609 = vadd.f32 0.0, %v1608
        %1610 = vdwg.mxu0
        %1611 = vmatpush.msra.mxu0 %v1263
        %1612 = vmatpush.msra.mxu0 %v1259
        %1613 = vmatpush.msra.mxu0 %v1255
        %1614 = vmatpush.msra.mxu0 %v1251
        %1615 = vmatpush.msra.mxu0 %v1247
        %1616 = vmatpush.msra.mxu0 %v1243
        %1617 = vmatpush.msra.mxu0 %v1239
        %1618 = vmatpush.msra.mxu0 %v1235
        %1619 = vmatpush.msra.mxu0 %v1231
        %1620 = vmatpush.msra.mxu0 %v1227
        %1621 = vmatpush.msra.mxu0 %v1223
        %1622 = vmatpush.msra.mxu0 %v1219
        %1623 = vmatpush.msra.mxu0 %v1215
        %1624 = vmatpush.msra.mxu0 %v1211
        %1625 = vmatpush.msra.mxu0 %v1207
        %1626 = vmatpush.msra.mxu0 %v1203
        %1627 = vmatmul.f32.gmra.mxu0 %v1580
        %v1628 = vpop.f32.mrf.mxu0
        %v1629 = vadd.f32 0.0, %v1628
        %1630 = vdwg.mxu0
        %1631 = vmatpush.msra.mxu0 %v1264
        %1632 = vmatpush.msra.mxu0 %v1260
        %1633 = vmatpush.msra.mxu0 %v1256
        %1634 = vmatpush.msra.mxu0 %v1252
        %1635 = vmatpush.msra.mxu0 %v1248
        %1636 = vmatpush.msra.mxu0 %v1244
        %1637 = vmatpush.msra.mxu0 %v1240
        %1638 = vmatpush.msra.mxu0 %v1236
        %1639 = vmatpush.msra.mxu0 %v1232
        %1640 = vmatpush.msra.mxu0 %v1228
        %1641 = vmatpush.msra.mxu0 %v1224
        %1642 = vmatpush.msra.mxu0 %v1220
        %1643 = vmatpush.msra.mxu0 %v1216
        %1644 = vmatpush.msra.mxu0 %v1212
        %1645 = vmatpush.msra.mxu0 %v1208
        %1646 = vmatpush.msra.mxu0 %v1204
        %1647 = vmatmul.f32.gmra.mxu0 %v1580
        %v1648 = vpop.f32.mrf.mxu0
        %v1649 = vadd.f32 0.0, %v1648
        %1650 = vdwg.mxu0
        %1651 = vmatpush.msra.mxu0 %v1265
        %1652 = vmatpush.msra.mxu0 %v1261
        %1653 = vmatpush.msra.mxu0 %v1257
        %1654 = vmatpush.msra.mxu0 %v1253
        %1655 = vmatpush.msra.mxu0 %v1249
        %1656 = vmatpush.msra.mxu0 %v1245
        %1657 = vmatpush.msra.mxu0 %v1241
        %1658 = vmatpush.msra.mxu0 %v1237
        %1659 = vmatpush.msra.mxu0 %v1233
        %1660 = vmatpush.msra.mxu0 %v1229
        %1661 = vmatpush.msra.mxu0 %v1225
        %1662 = vmatpush.msra.mxu0 %v1221
        %1663 = vmatpush.msra.mxu0 %v1217
        %1664 = vmatpush.msra.mxu0 %v1213
        %1665 = vmatpush.msra.mxu0 %v1209
        %1666 = vmatpush.msra.mxu0 %v1205
        %1667 = vmatmul.f32.gmra.mxu0 %v1580
        %v1668 = vpop.f32.mrf.mxu0
        %v1669 = vadd.f32 0.0, %v1668
        %1670 = vdwg.mxu0
        %v1671 = vadd.f32 %v1587, %v1609
        %v1672 = vadd.f32 %v1588, %v1629
        %v1673 = vadd.f32 %v1589, %v1649
        %v1674 = vadd.f32 %v1590, %v1669
        %v1675 = vxor.u32 %v1671, 2147483648
        %v1676 = vxor.u32 %v1672, 2147483648
        %v1677 = vxor.u32 %v1673, 2147483648
        %v1678 = vmul.f32 %v1675, 1.442695
        %v1679 = vpow.pop %v1678
        %v1680 = vmul.f32 %v1676, 1.442695
        %v1681 = vpow.pop %v1680
        %v1682 = vmul.f32 %v1677, 1.442695
        %v1683 = vpow.pop %v1682
        %v1684 = vadd.f32 %v1679, 1.0
        %v1685 = vadd.f32 %v1681, 1.0
        %v1686 = vadd.f32 %v1683, 1.0
        %v1687 = vrcp.pop %v1684
        %v1688 = vmul.f32 %v1684, %v1687
        %v1689 = vsub.f32 1.0, %v1688
        %v1690 = vmul.f32 %v1687, %v1689
        %v1691 = vadd.f32 %v1687, %v1690
        %vm1692 = vweird.f32 %v1684
        %vm1693 = vweird.f32 %v1687
        %vm1694 = vmor %vm1692, %vm1693
        %v1695 = vsel %vm1694, %v1687, %v1691
        %v1696 = vand.u32 2147483647, %v1684
        %vm1697 = vcmp.eq.f32.partialorder %v1696, 8.507059e+37
        %v1698 = vand.u32 %v1684, 2147483648
        %v1699 = vor.u32 1.1754944e-38, %v1698
        %v1700 = vsel %vm1697, %v1699, %v1695
        %v1701 = vmul.f32 1.0, %v1700
        %v1702 = vrcp.pop %v1685
        %v1703 = vmul.f32 %v1685, %v1702
        %v1704 = vsub.f32 1.0, %v1703
        %v1705 = vmul.f32 %v1702, %v1704
        %v1706 = vadd.f32 %v1702, %v1705
        %vm1707 = vweird.f32 %v1685
        %vm1708 = vweird.f32 %v1702
        %vm1709 = vmor %vm1707, %vm1708
        %v1710 = vsel %vm1709, %v1702, %v1706
        %v1711 = vand.u32 2147483647, %v1685
        %vm1712 = vcmp.eq.f32.partialorder %v1711, 8.507059e+37
        %v1713 = vand.u32 %v1685, 2147483648
        %v1714 = vor.u32 1.1754944e-38, %v1713
        %v1715 = vsel %vm1712, %v1714, %v1710
        %v1716 = vmul.f32 1.0, %v1715
        %v1717 = vrcp.pop %v1686
        %v1718 = vmul.f32 %v1686, %v1717
        %v1719 = vsub.f32 1.0, %v1718
        %v1720 = vmul.f32 %v1717, %v1719
        %v1721 = vadd.f32 %v1717, %v1720
        %vm1722 = vweird.f32 %v1686
        %vm1723 = vweird.f32 %v1717
        %vm1724 = vmor %vm1722, %vm1723
        %v1725 = vsel %vm1724, %v1717, %v1721
        %v1726 = vand.u32 2147483647, %v1686
        %vm1727 = vcmp.eq.f32.partialorder %v1726, 8.507059e+37
        %v1728 = vand.u32 %v1686, 2147483648
        %v1729 = vor.u32 1.1754944e-38, %v1728
        %v1730 = vsel %vm1727, %v1729, %v1725
        %v1731 = vmul.f32 1.0, %v1730
        %v1732 = vtanh.pop %v1674
        %v1733 = vmul.f32 %v1716, %v1578
        %v1734 = vmul.f32 %v1701, %v1732
        %v1735 = vadd.f32 %v1733, %v1734
        %v1736 = vtanh.pop %v1735
        %v1737 = vmul.f32 %v1731, %v1736
        %v1738 = vpack.c.bf16 %v1737, %v1737
        %s1739 = scalar_lea.vmem [#allocation3], 8
        %1740 = vst [vmem:[%s1739] sm:$0xf] %v1738
        %s1741 = smul.u32 3, 4
        %s1742 = smul.addr %s1741, 8
        %s1743 = scalar_lea.vmem [#allocation2], %s1742
        %v1744 = vld [vmem:[%s1743] sm:$0xff]
        %v1745 = vld [vmem:[%s1743 + $0x8] sm:$0xff]
        %v1746 = vld [vmem:[%s1743 + $0x10] sm:$0xff]
        %v1747 = vld [vmem:[%s1743 + $0x18] sm:$0xff]
        %1748 = vmatpush.msra.mxu0 %v1262
        %1749 = vmatpush.msra.mxu0 %v1258
        %1750 = vmatpush.msra.mxu0 %v1254
        %1751 = vmatpush.msra.mxu0 %v1250
        %1752 = vmatpush.msra.mxu0 %v1246
        %1753 = vmatpush.msra.mxu0 %v1242
        %1754 = vmatpush.msra.mxu0 %v1238
        %1755 = vmatpush.msra.mxu0 %v1234
        %1756 = vmatpush.msra.mxu0 %v1230
        %1757 = vmatpush.msra.mxu0 %v1226
        %1758 = vmatpush.msra.mxu0 %v1222
        %1759 = vmatpush.msra.mxu0 %v1218
        %1760 = vmatpush.msra.mxu0 %v1214
        %1761 = vmatpush.msra.mxu0 %v1210
        %1762 = vmatpush.msra.mxu0 %v1206
        %1763 = vmatpush.msra.mxu0 %v1202
        %1764 = vmatmul.f32.gmra.mxu0 %v1737
        %v1765 = vpop.f32.mrf.mxu0
        %v1766 = vadd.f32 0.0, %v1765
        %1767 = vdwg.mxu0
        %1768 = vmatpush.msra.mxu0 %v1263
        %1769 = vmatpush.msra.mxu0 %v1259
        %1770 = vmatpush.msra.mxu0 %v1255
        %1771 = vmatpush.msra.mxu0 %v1251
        %1772 = vmatpush.msra.mxu0 %v1247
        %1773 = vmatpush.msra.mxu0 %v1243
        %1774 = vmatpush.msra.mxu0 %v1239
        %1775 = vmatpush.msra.mxu0 %v1235
        %1776 = vmatpush.msra.mxu0 %v1231
        %1777 = vmatpush.msra.mxu0 %v1227
        %1778 = vmatpush.msra.mxu0 %v1223
        %1779 = vmatpush.msra.mxu0 %v1219
        %1780 = vmatpush.msra.mxu0 %v1215
        %1781 = vmatpush.msra.mxu0 %v1211
        %1782 = vmatpush.msra.mxu0 %v1207
        %1783 = vmatpush.msra.mxu0 %v1203
        %1784 = vmatmul.f32.gmra.mxu0 %v1737
        %v1785 = vpop.f32.mrf.mxu0
        %v1786 = vadd.f32 0.0, %v1785
        %1787 = vdwg.mxu0
        %1788 = vmatpush.msra.mxu0 %v1264
        %1789 = vmatpush.msra.mxu0 %v1260
        %1790 = vmatpush.msra.mxu0 %v1256
        %1791 = vmatpush.msra.mxu0 %v1252
        %1792 = vmatpush.msra.mxu0 %v1248
        %1793 = vmatpush.msra.mxu0 %v1244
        %1794 = vmatpush.msra.mxu0 %v1240
        %1795 = vmatpush.msra.mxu0 %v1236
        %1796 = vmatpush.msra.mxu0 %v1232
        %1797 = vmatpush.msra.mxu0 %v1228
        %1798 = vmatpush.msra.mxu0 %v1224
        %1799 = vmatpush.msra.mxu0 %v1220
        %1800 = vmatpush.msra.mxu0 %v1216
        %1801 = vmatpush.msra.mxu0 %v1212
        %1802 = vmatpush.msra.mxu0 %v1208
        %1803 = vmatpush.msra.mxu0 %v1204
        %1804 = vmatmul.f32.gmra.mxu0 %v1737
        %v1805 = vpop.f32.mrf.mxu0
        %v1806 = vadd.f32 0.0, %v1805
        %1807 = vdwg.mxu0
        %1808 = vmatpush.msra.mxu0 %v1265
        %1809 = vmatpush.msra.mxu0 %v1261
        %1810 = vmatpush.msra.mxu0 %v1257
        %1811 = vmatpush.msra.mxu0 %v1253
        %1812 = vmatpush.msra.mxu0 %v1249
        %1813 = vmatpush.msra.mxu0 %v1245
        %1814 = vmatpush.msra.mxu0 %v1241
        %1815 = vmatpush.msra.mxu0 %v1237
        %1816 = vmatpush.msra.mxu0 %v1233
        %1817 = vmatpush.msra.mxu0 %v1229
        %1818 = vmatpush.msra.mxu0 %v1225
        %1819 = vmatpush.msra.mxu0 %v1221
        %1820 = vmatpush.msra.mxu0 %v1217
        %1821 = vmatpush.msra.mxu0 %v1213
        %1822 = vmatpush.msra.mxu0 %v1209
        %1823 = vmatpush.msra.mxu0 %v1205
        %1824 = vmatmul.f32.gmra.mxu0 %v1737
        %v1825 = vpop.f32.mrf.mxu0
        %v1826 = vadd.f32 0.0, %v1825
        %1827 = vdwg.mxu0
        %v1828 = vadd.f32 %v1744, %v1766
        %v1829 = vadd.f32 %v1745, %v1786
        %v1830 = vadd.f32 %v1746, %v1806
        %v1831 = vadd.f32 %v1747, %v1826
        %v1832 = vxor.u32 %v1828, 2147483648
        %v1833 = vxor.u32 %v1829, 2147483648
        %v1834 = vxor.u32 %v1830, 2147483648
        %v1835 = vmul.f32 %v1832, 1.442695
        %v1836 = vpow.pop %v1835
        %v1837 = vmul.f32 %v1833, 1.442695
        %v1838 = vpow.pop %v1837
        %v1839 = vmul.f32 %v1834, 1.442695
        %v1840 = vpow.pop %v1839
        %v1841 = vadd.f32 %v1836, 1.0
        %v1842 = vadd.f32 %v1838, 1.0
        %v1843 = vadd.f32 %v1840, 1.0
        %v1844 = vrcp.pop %v1841
        %v1845 = vmul.f32 %v1841, %v1844
        %v1846 = vsub.f32 1.0, %v1845
        %v1847 = vmul.f32 %v1844, %v1846
        %v1848 = vadd.f32 %v1844, %v1847
        %vm1849 = vweird.f32 %v1841
        %vm1850 = vweird.f32 %v1844
        %vm1851 = vmor %vm1849, %vm1850
        %v1852 = vsel %vm1851, %v1844, %v1848
        %v1853 = vand.u32 2147483647, %v1841
        %vm1854 = vcmp.eq.f32.partialorder %v1853, 8.507059e+37
        %v1855 = vand.u32 %v1841, 2147483648
        %v1856 = vor.u32 1.1754944e-38, %v1855
        %v1857 = vsel %vm1854, %v1856, %v1852
        %v1858 = vmul.f32 1.0, %v1857
        %v1859 = vrcp.pop %v1842
        %v1860 = vmul.f32 %v1842, %v1859
        %v1861 = vsub.f32 1.0, %v1860
        %v1862 = vmul.f32 %v1859, %v1861
        %v1863 = vadd.f32 %v1859, %v1862
        %vm1864 = vweird.f32 %v1842
        %vm1865 = vweird.f32 %v1859
        %vm1866 = vmor %vm1864, %vm1865
        %v1867 = vsel %vm1866, %v1859, %v1863
        %v1868 = vand.u32 2147483647, %v1842
        %vm1869 = vcmp.eq.f32.partialorder %v1868, 8.507059e+37
        %v1870 = vand.u32 %v1842, 2147483648
        %v1871 = vor.u32 1.1754944e-38, %v1870
        %v1872 = vsel %vm1869, %v1871, %v1867
        %v1873 = vmul.f32 1.0, %v1872
        %v1874 = vrcp.pop %v1843
        %v1875 = vmul.f32 %v1843, %v1874
        %v1876 = vsub.f32 1.0, %v1875
        %v1877 = vmul.f32 %v1874, %v1876
        %v1878 = vadd.f32 %v1874, %v1877
        %vm1879 = vweird.f32 %v1843
        %vm1880 = vweird.f32 %v1874
        %vm1881 = vmor %vm1879, %vm1880
        %v1882 = vsel %vm1881, %v1874, %v1878
        %v1883 = vand.u32 2147483647, %v1843
        %vm1884 = vcmp.eq.f32.partialorder %v1883, 8.507059e+37
        %v1885 = vand.u32 %v1843, 2147483648
        %v1886 = vor.u32 1.1754944e-38, %v1885
        %v1887 = vsel %vm1884, %v1886, %v1882
        %v1888 = vmul.f32 1.0, %v1887
        %v1889 = vtanh.pop %v1831
        %v1890 = vmul.f32 %v1873, %v1735
        %v1891 = vmul.f32 %v1858, %v1889
        %v1892 = vadd.f32 %v1890, %v1891
        %v1893 = vtanh.pop %v1892
        %v1894 = vmul.f32 %v1888, %v1893
        %v1895 = vpack.c.bf16 %v1894, %v1894
        %s1896 = scalar_lea.vmem [#allocation3], 12
        %1897 = vst [vmem:[%s1896] sm:$0xf] %v1895
        %s1898 = smul.u32 4, 4
        %s1899 = smul.addr %s1898, 8
        %s1900 = scalar_lea.vmem [#allocation2], %s1899
        %v1901 = vld [vmem:[%s1900] sm:$0xff]
        %v1902 = vld [vmem:[%s1900 + $0x8] sm:$0xff]
        %v1903 = vld [vmem:[%s1900 + $0x10] sm:$0xff]
        %v1904 = vld [vmem:[%s1900 + $0x18] sm:$0xff]
        %1905 = vmatpush.msra.mxu0 %v1262
        %1906 = vmatpush.msra.mxu0 %v1258
        %1907 = vmatpush.msra.mxu0 %v1254
        %1908 = vmatpush.msra.mxu0 %v1250
        %1909 = vmatpush.msra.mxu0 %v1246
        %1910 = vmatpush.msra.mxu0 %v1242
        %1911 = vmatpush.msra.mxu0 %v1238
        %1912 = vmatpush.msra.mxu0 %v1234
        %1913 = vmatpush.msra.mxu0 %v1230
        %1914 = vmatpush.msra.mxu0 %v1226
        %1915 = vmatpush.msra.mxu0 %v1222
        %1916 = vmatpush.msra.mxu0 %v1218
        %1917 = vmatpush.msra.mxu0 %v1214
        %1918 = vmatpush.msra.mxu0 %v1210
        %1919 = vmatpush.msra.mxu0 %v1206
        %1920 = vmatpush.msra.mxu0 %v1202
        %1921 = vmatmul.f32.gmra.mxu0 %v1894
        %v1922 = vpop.f32.mrf.mxu0
        %v1923 = vadd.f32 0.0, %v1922
        %1924 = vdwg.mxu0
        %1925 = vmatpush.msra.mxu0 %v1263
        %1926 = vmatpush.msra.mxu0 %v1259
        %1927 = vmatpush.msra.mxu0 %v1255
        %1928 = vmatpush.msra.mxu0 %v1251
        %1929 = vmatpush.msra.mxu0 %v1247
        %1930 = vmatpush.msra.mxu0 %v1243
        %1931 = vmatpush.msra.mxu0 %v1239
        %1932 = vmatpush.msra.mxu0 %v1235
        %1933 = vmatpush.msra.mxu0 %v1231
        %1934 = vmatpush.msra.mxu0 %v1227
        %1935 = vmatpush.msra.mxu0 %v1223
        %1936 = vmatpush.msra.mxu0 %v1219
        %1937 = vmatpush.msra.mxu0 %v1215
        %1938 = vmatpush.msra.mxu0 %v1211
        %1939 = vmatpush.msra.mxu0 %v1207
        %1940 = vmatpush.msra.mxu0 %v1203
        %1941 = vmatmul.f32.gmra.mxu0 %v1894
        %v1942 = vpop.f32.mrf.mxu0
        %v1943 = vadd.f32 0.0, %v1942
        %1944 = vdwg.mxu0
        %1945 = vmatpush.msra.mxu0 %v1264
        %1946 = vmatpush.msra.mxu0 %v1260
        %1947 = vmatpush.msra.mxu0 %v1256
        %1948 = vmatpush.msra.mxu0 %v1252
        %1949 = vmatpush.msra.mxu0 %v1248
        %1950 = vmatpush.msra.mxu0 %v1244
        %1951 = vmatpush.msra.mxu0 %v1240
        %1952 = vmatpush.msra.mxu0 %v1236
        %1953 = vmatpush.msra.mxu0 %v1232
        %1954 = vmatpush.msra.mxu0 %v1228
        %1955 = vmatpush.msra.mxu0 %v1224
        %1956 = vmatpush.msra.mxu0 %v1220
        %1957 = vmatpush.msra.mxu0 %v1216
        %1958 = vmatpush.msra.mxu0 %v1212
        %1959 = vmatpush.msra.mxu0 %v1208
        %1960 = vmatpush.msra.mxu0 %v1204
        %1961 = vmatmul.f32.gmra.mxu0 %v1894
        %v1962 = vpop.f32.mrf.mxu0
        %v1963 = vadd.f32 0.0, %v1962
        %1964 = vdwg.mxu0
        %1965 = vmatpush.msra.mxu0 %v1265
        %1966 = vmatpush.msra.mxu0 %v1261
        %1967 = vmatpush.msra.mxu0 %v1257
        %1968 = vmatpush.msra.mxu0 %v1253
        %1969 = vmatpush.msra.mxu0 %v1249
        %1970 = vmatpush.msra.mxu0 %v1245
        %1971 = vmatpush.msra.mxu0 %v1241
        %1972 = vmatpush.msra.mxu0 %v1237
        %1973 = vmatpush.msra.mxu0 %v1233
        %1974 = vmatpush.msra.mxu0 %v1229
        %1975 = vmatpush.msra.mxu0 %v1225
        %1976 = vmatpush.msra.mxu0 %v1221
        %1977 = vmatpush.msra.mxu0 %v1217
        %1978 = vmatpush.msra.mxu0 %v1213
        %1979 = vmatpush.msra.mxu0 %v1209
        %1980 = vmatpush.msra.mxu0 %v1205
        %1981 = vmatmul.f32.gmra.mxu0 %v1894
        %v1982 = vpop.f32.mrf.mxu0
        %v1983 = vadd.f32 0.0, %v1982
        %1984 = vdwg.mxu0
        %v1985 = vadd.f32 %v1901, %v1923
        %v1986 = vadd.f32 %v1902, %v1943
        %v1987 = vadd.f32 %v1903, %v1963
        %v1988 = vadd.f32 %v1904, %v1983
        %v1989 = vxor.u32 %v1985, 2147483648
        %v1990 = vxor.u32 %v1986, 2147483648
        %v1991 = vxor.u32 %v1987, 2147483648
        %v1992 = vmul.f32 %v1989, 1.442695
        %v1993 = vpow.pop %v1992
        %v1994 = vmul.f32 %v1990, 1.442695
        %v1995 = vpow.pop %v1994
        %v1996 = vmul.f32 %v1991, 1.442695
        %v1997 = vpow.pop %v1996
        %v1998 = vadd.f32 %v1993, 1.0
        %v1999 = vadd.f32 %v1995, 1.0
        %v2000 = vadd.f32 %v1997, 1.0
        %v2001 = vrcp.pop %v1998
        %v2002 = vmul.f32 %v1998, %v2001
        %v2003 = vsub.f32 1.0, %v2002
        %v2004 = vmul.f32 %v2001, %v2003
        %v2005 = vadd.f32 %v2001, %v2004
        %vm2006 = vweird.f32 %v1998
        %vm2007 = vweird.f32 %v2001
        %vm2008 = vmor %vm2006, %vm2007
        %v2009 = vsel %vm2008, %v2001, %v2005
        %v2010 = vand.u32 2147483647, %v1998
        %vm2011 = vcmp.eq.f32.partialorder %v2010, 8.507059e+37
        %v2012 = vand.u32 %v1998, 2147483648
        %v2013 = vor.u32 1.1754944e-38, %v2012
        %v2014 = vsel %vm2011, %v2013, %v2009
        %v2015 = vmul.f32 1.0, %v2014
        %v2016 = vrcp.pop %v1999
        %v2017 = vmul.f32 %v1999, %v2016
        %v2018 = vsub.f32 1.0, %v2017
        %v2019 = vmul.f32 %v2016, %v2018
        %v2020 = vadd.f32 %v2016, %v2019
        %vm2021 = vweird.f32 %v1999
        %vm2022 = vweird.f32 %v2016
        %vm2023 = vmor %vm2021, %vm2022
        %v2024 = vsel %vm2023, %v2016, %v2020
        %v2025 = vand.u32 2147483647, %v1999
        %vm2026 = vcmp.eq.f32.partialorder %v2025, 8.507059e+37
        %v2027 = vand.u32 %v1999, 2147483648
        %v2028 = vor.u32 1.1754944e-38, %v2027
        %v2029 = vsel %vm2026, %v2028, %v2024
        %v2030 = vmul.f32 1.0, %v2029
        %v2031 = vrcp.pop %v2000
        %v2032 = vmul.f32 %v2000, %v2031
        %v2033 = vsub.f32 1.0, %v2032
        %v2034 = vmul.f32 %v2031, %v2033
        %v2035 = vadd.f32 %v2031, %v2034
        %vm2036 = vweird.f32 %v2000
        %vm2037 = vweird.f32 %v2031
        %vm2038 = vmor %vm2036, %vm2037
        %v2039 = vsel %vm2038, %v2031, %v2035
        %v2040 = vand.u32 2147483647, %v2000
        %vm2041 = vcmp.eq.f32.partialorder %v2040, 8.507059e+37
        %v2042 = vand.u32 %v2000, 2147483648
        %v2043 = vor.u32 1.1754944e-38, %v2042
        %v2044 = vsel %vm2041, %v2043, %v2039
        %v2045 = vmul.f32 1.0, %v2044
        %v2046 = vtanh.pop %v1988
        %v2047 = vmul.f32 %v2030, %v1892
        %v2048 = vmul.f32 %v2015, %v2046
        %v2049 = vadd.f32 %v2047, %v2048
        %v2050 = vtanh.pop %v2049
        %v2051 = vmul.f32 %v2045, %v2050
        %v2052 = vpack.c.bf16 %v2051, %v2051
        %s2053 = scalar_lea.vmem [#allocation3], 16
        %2054 = vst [vmem:[%s2053] sm:$0xf] %v2052
        %s2055 = smul.u32 5, 4
        %s2056 = smul.addr %s2055, 8
        %s2057 = scalar_lea.vmem [#allocation2], %s2056
        %v2058 = vld [vmem:[%s2057] sm:$0xff]
        %v2059 = vld [vmem:[%s2057 + $0x8] sm:$0xff]
        %v2060 = vld [vmem:[%s2057 + $0x10] sm:$0xff]
        %v2061 = vld [vmem:[%s2057 + $0x18] sm:$0xff]
        %2062 = vmatpush.msra.mxu0 %v1262
        %2063 = vmatpush.msra.mxu0 %v1258
        %2064 = vmatpush.msra.mxu0 %v1254
        %2065 = vmatpush.msra.mxu0 %v1250
        %2066 = vmatpush.msra.mxu0 %v1246
        %2067 = vmatpush.msra.mxu0 %v1242
        %2068 = vmatpush.msra.mxu0 %v1238
        %2069 = vmatpush.msra.mxu0 %v1234
        %2070 = vmatpush.msra.mxu0 %v1230
        %2071 = vmatpush.msra.mxu0 %v1226
        %2072 = vmatpush.msra.mxu0 %v1222
        %2073 = vmatpush.msra.mxu0 %v1218
        %2074 = vmatpush.msra.mxu0 %v1214
        %2075 = vmatpush.msra.mxu0 %v1210
        %2076 = vmatpush.msra.mxu0 %v1206
        %2077 = vmatpush.msra.mxu0 %v1202
        %2078 = vmatmul.f32.gmra.mxu0 %v2051
        %v2079 = vpop.f32.mrf.mxu0
        %v2080 = vadd.f32 0.0, %v2079
        %2081 = vdwg.mxu0
        %2082 = vmatpush.msra.mxu0 %v1263
        %2083 = vmatpush.msra.mxu0 %v1259
        %2084 = vmatpush.msra.mxu0 %v1255
        %2085 = vmatpush.msra.mxu0 %v1251
        %2086 = vmatpush.msra.mxu0 %v1247
        %2087 = vmatpush.msra.mxu0 %v1243
        %2088 = vmatpush.msra.mxu0 %v1239
        %2089 = vmatpush.msra.mxu0 %v1235
        %2090 = vmatpush.msra.mxu0 %v1231
        %2091 = vmatpush.msra.mxu0 %v1227
        %2092 = vmatpush.msra.mxu0 %v1223
        %2093 = vmatpush.msra.mxu0 %v1219
        %2094 = vmatpush.msra.mxu0 %v1215
        %2095 = vmatpush.msra.mxu0 %v1211
        %2096 = vmatpush.msra.mxu0 %v1207
        %2097 = vmatpush.msra.mxu0 %v1203
        %2098 = vmatmul.f32.gmra.mxu0 %v2051
        %v2099 = vpop.f32.mrf.mxu0
        %v2100 = vadd.f32 0.0, %v2099
        %2101 = vdwg.mxu0
        %2102 = vmatpush.msra.mxu0 %v1264
        %2103 = vmatpush.msra.mxu0 %v1260
        %2104 = vmatpush.msra.mxu0 %v1256
        %2105 = vmatpush.msra.mxu0 %v1252
        %2106 = vmatpush.msra.mxu0 %v1248
        %2107 = vmatpush.msra.mxu0 %v1244
        %2108 = vmatpush.msra.mxu0 %v1240
        %2109 = vmatpush.msra.mxu0 %v1236
        %2110 = vmatpush.msra.mxu0 %v1232
        %2111 = vmatpush.msra.mxu0 %v1228
        %2112 = vmatpush.msra.mxu0 %v1224
        %2113 = vmatpush.msra.mxu0 %v1220
        %2114 = vmatpush.msra.mxu0 %v1216
        %2115 = vmatpush.msra.mxu0 %v1212
        %2116 = vmatpush.msra.mxu0 %v1208
        %2117 = vmatpush.msra.mxu0 %v1204
        %2118 = vmatmul.f32.gmra.mxu0 %v2051
        %v2119 = vpop.f32.mrf.mxu0
        %v2120 = vadd.f32 0.0, %v2119
        %2121 = vdwg.mxu0
        %2122 = vmatpush.msra.mxu0 %v1265
        %2123 = vmatpush.msra.mxu0 %v1261
        %2124 = vmatpush.msra.mxu0 %v1257
        %2125 = vmatpush.msra.mxu0 %v1253
        %2126 = vmatpush.msra.mxu0 %v1249
        %2127 = vmatpush.msra.mxu0 %v1245
        %2128 = vmatpush.msra.mxu0 %v1241
        %2129 = vmatpush.msra.mxu0 %v1237
        %2130 = vmatpush.msra.mxu0 %v1233
        %2131 = vmatpush.msra.mxu0 %v1229
        %2132 = vmatpush.msra.mxu0 %v1225
        %2133 = vmatpush.msra.mxu0 %v1221
        %2134 = vmatpush.msra.mxu0 %v1217
        %2135 = vmatpush.msra.mxu0 %v1213
        %2136 = vmatpush.msra.mxu0 %v1209
        %2137 = vmatpush.msra.mxu0 %v1205
        %2138 = vmatmul.f32.gmra.mxu0 %v2051
        %v2139 = vpop.f32.mrf.mxu0
        %v2140 = vadd.f32 0.0, %v2139
        %2141 = vdwg.mxu0
        %v2142 = vadd.f32 %v2058, %v2080
        %v2143 = vadd.f32 %v2059, %v2100
        %v2144 = vadd.f32 %v2060, %v2120
        %v2145 = vadd.f32 %v2061, %v2140
        %v2146 = vxor.u32 %v2142, 2147483648
        %v2147 = vxor.u32 %v2143, 2147483648
        %v2148 = vxor.u32 %v2144, 2147483648
        %v2149 = vmul.f32 %v2146, 1.442695
        %v2150 = vpow.pop %v2149
        %v2151 = vmul.f32 %v2147, 1.442695
        %v2152 = vpow.pop %v2151
        %v2153 = vmul.f32 %v2148, 1.442695
        %v2154 = vpow.pop %v2153
        %v2155 = vadd.f32 %v2150, 1.0
        %v2156 = vadd.f32 %v2152, 1.0
        %v2157 = vadd.f32 %v2154, 1.0
        %v2158 = vrcp.pop %v2155
        %v2159 = vmul.f32 %v2155, %v2158
        %v2160 = vsub.f32 1.0, %v2159
        %v2161 = vmul.f32 %v2158, %v2160
        %v2162 = vadd.f32 %v2158, %v2161
        %vm2163 = vweird.f32 %v2155
        %vm2164 = vweird.f32 %v2158
        %vm2165 = vmor %vm2163, %vm2164
        %v2166 = vsel %vm2165, %v2158, %v2162
        %v2167 = vand.u32 2147483647, %v2155
        %vm2168 = vcmp.eq.f32.partialorder %v2167, 8.507059e+37
        %v2169 = vand.u32 %v2155, 2147483648
        %v2170 = vor.u32 1.1754944e-38, %v2169
        %v2171 = vsel %vm2168, %v2170, %v2166
        %v2172 = vmul.f32 1.0, %v2171
        %v2173 = vrcp.pop %v2156
        %v2174 = vmul.f32 %v2156, %v2173
        %v2175 = vsub.f32 1.0, %v2174
        %v2176 = vmul.f32 %v2173, %v2175
        %v2177 = vadd.f32 %v2173, %v2176
        %vm2178 = vweird.f32 %v2156
        %vm2179 = vweird.f32 %v2173
        %vm2180 = vmor %vm2178, %vm2179
        %v2181 = vsel %vm2180, %v2173, %v2177
        %v2182 = vand.u32 2147483647, %v2156
        %vm2183 = vcmp.eq.f32.partialorder %v2182, 8.507059e+37
        %v2184 = vand.u32 %v2156, 2147483648
        %v2185 = vor.u32 1.1754944e-38, %v2184
        %v2186 = vsel %vm2183, %v2185, %v2181
        %v2187 = vmul.f32 1.0, %v2186
        %v2188 = vrcp.pop %v2157
        %v2189 = vmul.f32 %v2157, %v2188
        %v2190 = vsub.f32 1.0, %v2189
        %v2191 = vmul.f32 %v2188, %v2190
        %v2192 = vadd.f32 %v2188, %v2191
        %vm2193 = vweird.f32 %v2157
        %vm2194 = vweird.f32 %v2188
        %vm2195 = vmor %vm2193, %vm2194
        %v2196 = vsel %vm2195, %v2188, %v2192
        %v2197 = vand.u32 2147483647, %v2157
        %vm2198 = vcmp.eq.f32.partialorder %v2197, 8.507059e+37
        %v2199 = vand.u32 %v2157, 2147483648
        %v2200 = vor.u32 1.1754944e-38, %v2199
        %v2201 = vsel %vm2198, %v2200, %v2196
        %v2202 = vmul.f32 1.0, %v2201
        %v2203 = vtanh.pop %v2145
        %v2204 = vmul.f32 %v2187, %v2049
        %v2205 = vmul.f32 %v2172, %v2203
        %v2206 = vadd.f32 %v2204, %v2205
        %v2207 = vtanh.pop %v2206
        %v2208 = vmul.f32 %v2202, %v2207
        %v2209 = vpack.c.bf16 %v2208, %v2208
        %s2210 = scalar_lea.vmem [#allocation3], 20
        %2211 = vst [vmem:[%s2210] sm:$0xf] %v2209
        %s2212 = smul.u32 6, 4
        %s2213 = smul.addr %s2212, 8
        %s2214 = scalar_lea.vmem [#allocation2], %s2213
        %v2215 = vld [vmem:[%s2214] sm:$0xff]
        %v2216 = vld [vmem:[%s2214 + $0x8] sm:$0xff]
        %v2217 = vld [vmem:[%s2214 + $0x10] sm:$0xff]
        %v2218 = vld [vmem:[%s2214 + $0x18] sm:$0xff]
        %2219 = vmatpush.msra.mxu0 %v1262
        %2220 = vmatpush.msra.mxu0 %v1258
        %2221 = vmatpush.msra.mxu0 %v1254
        %2222 = vmatpush.msra.mxu0 %v1250
        %2223 = vmatpush.msra.mxu0 %v1246
        %2224 = vmatpush.msra.mxu0 %v1242
        %2225 = vmatpush.msra.mxu0 %v1238
        %2226 = vmatpush.msra.mxu0 %v1234
        %2227 = vmatpush.msra.mxu0 %v1230
        %2228 = vmatpush.msra.mxu0 %v1226
        %2229 = vmatpush.msra.mxu0 %v1222
        %2230 = vmatpush.msra.mxu0 %v1218
        %2231 = vmatpush.msra.mxu0 %v1214
        %2232 = vmatpush.msra.mxu0 %v1210
        %2233 = vmatpush.msra.mxu0 %v1206
        %2234 = vmatpush.msra.mxu0 %v1202
        %2235 = vmatmul.f32.gmra.mxu0 %v2208
        %v2236 = vpop.f32.mrf.mxu0
        %v2237 = vadd.f32 0.0, %v2236
        %2238 = vdwg.mxu0
        %2239 = vmatpush.msra.mxu0 %v1263
        %2240 = vmatpush.msra.mxu0 %v1259
        %2241 = vmatpush.msra.mxu0 %v1255
        %2242 = vmatpush.msra.mxu0 %v1251
        %2243 = vmatpush.msra.mxu0 %v1247
        %2244 = vmatpush.msra.mxu0 %v1243
        %2245 = vmatpush.msra.mxu0 %v1239
        %2246 = vmatpush.msra.mxu0 %v1235
        %2247 = vmatpush.msra.mxu0 %v1231
        %2248 = vmatpush.msra.mxu0 %v1227
        %2249 = vmatpush.msra.mxu0 %v1223
        %2250 = vmatpush.msra.mxu0 %v1219
        %2251 = vmatpush.msra.mxu0 %v1215
        %2252 = vmatpush.msra.mxu0 %v1211
        %2253 = vmatpush.msra.mxu0 %v1207
        %2254 = vmatpush.msra.mxu0 %v1203
        %2255 = vmatmul.f32.gmra.mxu0 %v2208
        %v2256 = vpop.f32.mrf.mxu0
        %v2257 = vadd.f32 0.0, %v2256
        %2258 = vdwg.mxu0
        %2259 = vmatpush.msra.mxu0 %v1264
        %2260 = vmatpush.msra.mxu0 %v1260
        %2261 = vmatpush.msra.mxu0 %v1256
        %2262 = vmatpush.msra.mxu0 %v1252
        %2263 = vmatpush.msra.mxu0 %v1248
        %2264 = vmatpush.msra.mxu0 %v1244
        %2265 = vmatpush.msra.mxu0 %v1240
        %2266 = vmatpush.msra.mxu0 %v1236
        %2267 = vmatpush.msra.mxu0 %v1232
        %2268 = vmatpush.msra.mxu0 %v1228
        %2269 = vmatpush.msra.mxu0 %v1224
        %2270 = vmatpush.msra.mxu0 %v1220
        %2271 = vmatpush.msra.mxu0 %v1216
        %2272 = vmatpush.msra.mxu0 %v1212
        %2273 = vmatpush.msra.mxu0 %v1208
        %2274 = vmatpush.msra.mxu0 %v1204
        %2275 = vmatmul.f32.gmra.mxu0 %v2208
        %v2276 = vpop.f32.mrf.mxu0
        %v2277 = vadd.f32 0.0, %v2276
        %2278 = vdwg.mxu0
        %2279 = vmatpush.msra.mxu0 %v1265
        %2280 = vmatpush.msra.mxu0 %v1261
        %2281 = vmatpush.msra.mxu0 %v1257
        %2282 = vmatpush.msra.mxu0 %v1253
        %2283 = vmatpush.msra.mxu0 %v1249
        %2284 = vmatpush.msra.mxu0 %v1245
        %2285 = vmatpush.msra.mxu0 %v1241
        %2286 = vmatpush.msra.mxu0 %v1237
        %2287 = vmatpush.msra.mxu0 %v1233
        %2288 = vmatpush.msra.mxu0 %v1229
        %2289 = vmatpush.msra.mxu0 %v1225
        %2290 = vmatpush.msra.mxu0 %v1221
        %2291 = vmatpush.msra.mxu0 %v1217
        %2292 = vmatpush.msra.mxu0 %v1213
        %2293 = vmatpush.msra.mxu0 %v1209
        %2294 = vmatpush.msra.mxu0 %v1205
        %2295 = vmatmul.f32.gmra.mxu0 %v2208
        %v2296 = vpop.f32.mrf.mxu0
        %v2297 = vadd.f32 0.0, %v2296
        %2298 = vdwg.mxu0
        %v2299 = vadd.f32 %v2215, %v2237
        %v2300 = vadd.f32 %v2216, %v2257
        %v2301 = vadd.f32 %v2217, %v2277
        %v2302 = vadd.f32 %v2218, %v2297
        %v2303 = vxor.u32 %v2299, 2147483648
        %v2304 = vxor.u32 %v2300, 2147483648
        %v2305 = vxor.u32 %v2301, 2147483648
        %v2306 = vmul.f32 %v2303, 1.442695
        %v2307 = vpow.pop %v2306
        %v2308 = vmul.f32 %v2304, 1.442695
        %v2309 = vpow.pop %v2308
        %v2310 = vmul.f32 %v2305, 1.442695
        %v2311 = vpow.pop %v2310
        %v2312 = vadd.f32 %v2307, 1.0
        %v2313 = vadd.f32 %v2309, 1.0
        %v2314 = vadd.f32 %v2311, 1.0
        %v2315 = vrcp.pop %v2312
        %v2316 = vmul.f32 %v2312, %v2315
        %v2317 = vsub.f32 1.0, %v2316
        %v2318 = vmul.f32 %v2315, %v2317
        %v2319 = vadd.f32 %v2315, %v2318
        %vm2320 = vweird.f32 %v2312
        %vm2321 = vweird.f32 %v2315
        %vm2322 = vmor %vm2320, %vm2321
        %v2323 = vsel %vm2322, %v2315, %v2319
        %v2324 = vand.u32 2147483647, %v2312
        %vm2325 = vcmp.eq.f32.partialorder %v2324, 8.507059e+37
        %v2326 = vand.u32 %v2312, 2147483648
        %v2327 = vor.u32 1.1754944e-38, %v2326
        %v2328 = vsel %vm2325, %v2327, %v2323
        %v2329 = vmul.f32 1.0, %v2328
        %v2330 = vrcp.pop %v2313
        %v2331 = vmul.f32 %v2313, %v2330
        %v2332 = vsub.f32 1.0, %v2331
        %v2333 = vmul.f32 %v2330, %v2332
        %v2334 = vadd.f32 %v2330, %v2333
        %vm2335 = vweird.f32 %v2313
        %vm2336 = vweird.f32 %v2330
        %vm2337 = vmor %vm2335, %vm2336
        %v2338 = vsel %vm2337, %v2330, %v2334
        %v2339 = vand.u32 2147483647, %v2313
        %vm2340 = vcmp.eq.f32.partialorder %v2339, 8.507059e+37
        %v2341 = vand.u32 %v2313, 2147483648
        %v2342 = vor.u32 1.1754944e-38, %v2341
        %v2343 = vsel %vm2340, %v2342, %v2338
        %v2344 = vmul.f32 1.0, %v2343
        %v2345 = vrcp.pop %v2314
        %v2346 = vmul.f32 %v2314, %v2345
        %v2347 = vsub.f32 1.0, %v2346
        %v2348 = vmul.f32 %v2345, %v2347
        %v2349 = vadd.f32 %v2345, %v2348
        %vm2350 = vweird.f32 %v2314
        %vm2351 = vweird.f32 %v2345
        %vm2352 = vmor %vm2350, %vm2351
        %v2353 = vsel %vm2352, %v2345, %v2349
        %v2354 = vand.u32 2147483647, %v2314
        %vm2355 = vcmp.eq.f32.partialorder %v2354, 8.507059e+37
        %v2356 = vand.u32 %v2314, 2147483648
        %v2357 = vor.u32 1.1754944e-38, %v2356
        %v2358 = vsel %vm2355, %v2357, %v2353
        %v2359 = vmul.f32 1.0, %v2358
        %v2360 = vtanh.pop %v2302
        %v2361 = vmul.f32 %v2344, %v2206
        %v2362 = vmul.f32 %v2329, %v2360
        %v2363 = vadd.f32 %v2361, %v2362
        %v2364 = vtanh.pop %v2363
        %v2365 = vmul.f32 %v2359, %v2364
        %v2366 = vpack.c.bf16 %v2365, %v2365
        %s2367 = scalar_lea.vmem [#allocation3], 24
        %2368 = vst [vmem:[%s2367] sm:$0xf] %v2366
        %s2369 = smul.u32 7, 4
        %s2370 = smul.addr %s2369, 8
        %s2371 = scalar_lea.vmem [#allocation2], %s2370
        %v2372 = vld [vmem:[%s2371] sm:$0xff]
        %v2373 = vld [vmem:[%s2371 + $0x8] sm:$0xff]
        %v2374 = vld [vmem:[%s2371 + $0x10] sm:$0xff]
        %v2375 = vld [vmem:[%s2371 + $0x18] sm:$0xff]
        %2376 = vmatpush.msra.mxu0 %v1262
        %2377 = vmatpush.msra.mxu0 %v1258
        %2378 = vmatpush.msra.mxu0 %v1254
        %2379 = vmatpush.msra.mxu0 %v1250
        %2380 = vmatpush.msra.mxu0 %v1246
        %2381 = vmatpush.msra.mxu0 %v1242
        %2382 = vmatpush.msra.mxu0 %v1238
        %2383 = vmatpush.msra.mxu0 %v1234
        %2384 = vmatpush.msra.mxu0 %v1230
        %2385 = vmatpush.msra.mxu0 %v1226
        %2386 = vmatpush.msra.mxu0 %v1222
        %2387 = vmatpush.msra.mxu0 %v1218
        %2388 = vmatpush.msra.mxu0 %v1214
        %2389 = vmatpush.msra.mxu0 %v1210
        %2390 = vmatpush.msra.mxu0 %v1206
        %2391 = vmatpush.msra.mxu0 %v1202
        %2392 = vmatmul.f32.gmra.mxu0 %v2365
        %v2393 = vpop.f32.mrf.mxu0
        %v2394 = vadd.f32 0.0, %v2393
        %2395 = vdwg.mxu0
        %2396 = vmatpush.msra.mxu0 %v1263
        %2397 = vmatpush.msra.mxu0 %v1259
        %2398 = vmatpush.msra.mxu0 %v1255
        %2399 = vmatpush.msra.mxu0 %v1251
        %2400 = vmatpush.msra.mxu0 %v1247
        %2401 = vmatpush.msra.mxu0 %v1243
        %2402 = vmatpush.msra.mxu0 %v1239
        %2403 = vmatpush.msra.mxu0 %v1235
        %2404 = vmatpush.msra.mxu0 %v1231
        %2405 = vmatpush.msra.mxu0 %v1227
        %2406 = vmatpush.msra.mxu0 %v1223
        %2407 = vmatpush.msra.mxu0 %v1219
        %2408 = vmatpush.msra.mxu0 %v1215
        %2409 = vmatpush.msra.mxu0 %v1211
        %2410 = vmatpush.msra.mxu0 %v1207
        %2411 = vmatpush.msra.mxu0 %v1203
        %2412 = vmatmul.f32.gmra.mxu0 %v2365
        %v2413 = vpop.f32.mrf.mxu0
        %v2414 = vadd.f32 0.0, %v2413
        %2415 = vdwg.mxu0
        %2416 = vmatpush.msra.mxu0 %v1264
        %2417 = vmatpush.msra.mxu0 %v1260
        %2418 = vmatpush.msra.mxu0 %v1256
        %2419 = vmatpush.msra.mxu0 %v1252
        %2420 = vmatpush.msra.mxu0 %v1248
        %2421 = vmatpush.msra.mxu0 %v1244
        %2422 = vmatpush.msra.mxu0 %v1240
        %2423 = vmatpush.msra.mxu0 %v1236
        %2424 = vmatpush.msra.mxu0 %v1232
        %2425 = vmatpush.msra.mxu0 %v1228
        %2426 = vmatpush.msra.mxu0 %v1224
        %2427 = vmatpush.msra.mxu0 %v1220
        %2428 = vmatpush.msra.mxu0 %v1216
        %2429 = vmatpush.msra.mxu0 %v1212
        %2430 = vmatpush.msra.mxu0 %v1208
        %2431 = vmatpush.msra.mxu0 %v1204
        %2432 = vmatmul.f32.gmra.mxu0 %v2365
        %v2433 = vpop.f32.mrf.mxu0
        %v2434 = vadd.f32 0.0, %v2433
        %2435 = vdwg.mxu0
        %2436 = vmatpush.msra.mxu0 %v1265
        %2437 = vmatpush.msra.mxu0 %v1261
        %2438 = vmatpush.msra.mxu0 %v1257
        %2439 = vmatpush.msra.mxu0 %v1253
        %2440 = vmatpush.msra.mxu0 %v1249
        %2441 = vmatpush.msra.mxu0 %v1245
        %2442 = vmatpush.msra.mxu0 %v1241
        %2443 = vmatpush.msra.mxu0 %v1237
        %2444 = vmatpush.msra.mxu0 %v1233
        %2445 = vmatpush.msra.mxu0 %v1229
        %2446 = vmatpush.msra.mxu0 %v1225
        %2447 = vmatpush.msra.mxu0 %v1221
        %2448 = vmatpush.msra.mxu0 %v1217
        %2449 = vmatpush.msra.mxu0 %v1213
        %2450 = vmatpush.msra.mxu0 %v1209
        %2451 = vmatpush.msra.mxu0 %v1205
        %2452 = vmatmul.f32.gmra.mxu0 %v2365
        %v2453 = vpop.f32.mrf.mxu0
        %v2454 = vadd.f32 0.0, %v2453
        %2455 = vdwg.mxu0
        %v2456 = vadd.f32 %v2372, %v2394
        %v2457 = vadd.f32 %v2373, %v2414
        %v2458 = vadd.f32 %v2374, %v2434
        %v2459 = vadd.f32 %v2375, %v2454
        %v2460 = vxor.u32 %v2456, 2147483648
        %v2461 = vxor.u32 %v2457, 2147483648
        %v2462 = vxor.u32 %v2458, 2147483648
        %v2463 = vmul.f32 %v2460, 1.442695
        %v2464 = vpow.pop %v2463
        %v2465 = vmul.f32 %v2461, 1.442695
        %v2466 = vpow.pop %v2465
        %v2467 = vmul.f32 %v2462, 1.442695
        %v2468 = vpow.pop %v2467
        %v2469 = vadd.f32 %v2464, 1.0
        %v2470 = vadd.f32 %v2466, 1.0
        %v2471 = vadd.f32 %v2468, 1.0
        %v2472 = vrcp.pop %v2469
        %v2473 = vmul.f32 %v2469, %v2472
        %v2474 = vsub.f32 1.0, %v2473
        %v2475 = vmul.f32 %v2472, %v2474
        %v2476 = vadd.f32 %v2472, %v2475
        %vm2477 = vweird.f32 %v2469
        %vm2478 = vweird.f32 %v2472
        %vm2479 = vmor %vm2477, %vm2478
        %v2480 = vsel %vm2479, %v2472, %v2476
        %v2481 = vand.u32 2147483647, %v2469
        %vm2482 = vcmp.eq.f32.partialorder %v2481, 8.507059e+37
        %v2483 = vand.u32 %v2469, 2147483648
        %v2484 = vor.u32 1.1754944e-38, %v2483
        %v2485 = vsel %vm2482, %v2484, %v2480
        %v2486 = vmul.f32 1.0, %v2485
        %v2487 = vrcp.pop %v2470
        %v2488 = vmul.f32 %v2470, %v2487
        %v2489 = vsub.f32 1.0, %v2488
        %v2490 = vmul.f32 %v2487, %v2489
        %v2491 = vadd.f32 %v2487, %v2490
        %vm2492 = vweird.f32 %v2470
        %vm2493 = vweird.f32 %v2487
        %vm2494 = vmor %vm2492, %vm2493
        %v2495 = vsel %vm2494, %v2487, %v2491
        %v2496 = vand.u32 2147483647, %v2470
        %vm2497 = vcmp.eq.f32.partialorder %v2496, 8.507059e+37
        %v2498 = vand.u32 %v2470, 2147483648
        %v2499 = vor.u32 1.1754944e-38, %v2498
        %v2500 = vsel %vm2497, %v2499, %v2495
        %v2501 = vmul.f32 1.0, %v2500
        %v2502 = vrcp.pop %v2471
        %v2503 = vmul.f32 %v2471, %v2502
        %v2504 = vsub.f32 1.0, %v2503
        %v2505 = vmul.f32 %v2502, %v2504
        %v2506 = vadd.f32 %v2502, %v2505
        %vm2507 = vweird.f32 %v2471
        %vm2508 = vweird.f32 %v2502
        %vm2509 = vmor %vm2507, %vm2508
        %v2510 = vsel %vm2509, %v2502, %v2506
        %v2511 = vand.u32 2147483647, %v2471
        %vm2512 = vcmp.eq.f32.partialorder %v2511, 8.507059e+37
        %v2513 = vand.u32 %v2471, 2147483648
        %v2514 = vor.u32 1.1754944e-38, %v2513
        %v2515 = vsel %vm2512, %v2514, %v2510
        %v2516 = vmul.f32 1.0, %v2515
        %v2517 = vtanh.pop %v2459
        %v2518 = vmul.f32 %v2501, %v2363
        %v2519 = vmul.f32 %v2486, %v2517
        %v2520 = vadd.f32 %v2518, %v2519
        %v2521 = vtanh.pop %v2520
        %v2522 = vmul.f32 %v2516, %v2521
        %v2523 = vpack.c.bf16 %v2522, %v2522
        %s2524 = scalar_lea.vmem [#allocation3], 28
        %2525 = vst [vmem:[%s2524] sm:$0xf] %v2523
        %2526 = vst [vmem:[%s1267] sm:$0xff] %v2522
        %2527 = vst [vmem:[%s1269] sm:$0xff] %v2520
        %2528 = vst [vmem:[%s631] sm:$0xff] %v2522
        %2529 = vst [vmem:[%s637] sm:$0xff] %v2520
        %p2530 = scmp.eq.s32.totalorder %s35, 1
        %p2531 = pnand %p1191, %p2530
        %p2532 = pneg %p2531
        // Predicated region
        $region85: #{lstm_multiclassifier_forward.1} parent=55 // pred_check
          _
        $region86: #{lstm_multiclassifier_forward.1} parent=55 // pred_check_branch
          %2534 = sbr.rel (%p2531) target = $region88
        $region87: #{lstm_multiclassifier_forward.1} parent=55 // pred_region
          %v2535 = vld [vmem:[#allocation11] sm:$0xff]
          %v2536 = vld [vmem:[#allocation11 + $0x8] sm:$0xff]
          %v2537 = vld [vmem:[#allocation11 + $0x10] sm:$0xff]
          %v2538 = vld [vmem:[#allocation11 + $0x18] sm:$0xff]
          %v2539 = vld [vmem:[#allocation11 + $0x20] sm:$0xff]
          %v2540 = vld [vmem:[#allocation11 + $0x28] sm:$0xff]
          %v2541 = vld [vmem:[#allocation11 + $0x30] sm:$0xff]
          %v2542 = vld [vmem:[#allocation11 + $0x38] sm:$0xff]
          %v2543 = vld [vmem:[#allocation11 + $0x40] sm:$0xff]
          %v2544 = vld [vmem:[#allocation11 + $0x48] sm:$0xff]
          %v2545 = vld [vmem:[#allocation11 + $0x50] sm:$0xff]
          %v2546 = vld [vmem:[#allocation11 + $0x58] sm:$0xff]
          %v2547 = vld [vmem:[#allocation11 + $0x60] sm:$0xff]
          %v2548 = vld [vmem:[#allocation11 + $0x68] sm:$0xff]
          %v2549 = vld [vmem:[#allocation11 + $0x70] sm:$0xff]
          %v2550 = vld [vmem:[#allocation11 + $0x78] sm:$0xff]
          %v2551 = vld [vmem:[%s8] sm:$0x1]
          %v2553 = vperm.slane %v2551, 0
          %2555 = vmatpush.msra.mxu0 %v2550
          %2556 = vmatpush.msra.mxu0 %v2549
          %2557 = vmatpush.msra.mxu0 %v2548
          %2558 = vmatpush.msra.mxu0 %v2547
          %2559 = vmatpush.msra.mxu0 %v2546
          %2560 = vmatpush.msra.mxu0 %v2545
          %2561 = vmatpush.msra.mxu0 %v2544
          %2562 = vmatpush.msra.mxu0 %v2543
          %2563 = vmatpush.msra.mxu0 %v2542
          %2564 = vmatpush.msra.mxu0 %v2541
          %2565 = vmatpush.msra.mxu0 %v2540
          %2566 = vmatpush.msra.mxu0 %v2539
          %2567 = vmatpush.msra.mxu0 %v2538
          %2568 = vmatpush.msra.mxu0 %v2537
          %2569 = vmatpush.msra.mxu0 %v2536
          %2570 = vmatpush.msra.mxu0 %v2535
          %2571 = vmatmul.f32.gmra.mxu0 %v2522
          %v2572 = vpop.f32.mrf.mxu0
          %v2573 = vadd.f32 %v2553, %v2572
          %2574 = vdwg.mxu0
          %2575 = vst [vmem:[%s642] sm:$0xff] %v2573
        $region88: #{lstm_multiclassifier_forward.1} parent=55 // pred_fallthru
          _
        %s2576 = sadd.s32 %s35, %s33
        %p2577 = scmp.lt.s32.totalorder %s2576, 1
        %s2578 = scalar_select %p2577, %s2576, 1
        %s2579 = smul.addr %s2578, 8
        %s2580 = scalar_lea.vmem %s9, %s2579
        %s2581 = sadd.s32 %s35, %s33
        %p2582 = scmp.lt.s32.totalorder %s2581, 1
        %s2583 = scalar_select %p2582, %s2581, 1
        %s2584 = smul.addr %s2583, 8
        %s2585 = scalar_lea.vmem %s10, %s2584
        %p2586 = scmp.lt.s32.totalorder %s33, 0
        %s2587 = scalar_select %p2586, %s33, 0
        %s2588 = smul.addr %s2587, 8
        %s2589 = scalar_lea.vmem %s11, %s2588
        // Predicated region
        $region89: #{lstm_multiclassifier_forward.1} parent=55 // pred_check
          %p2590 = pneg %p298
        $region90: #{lstm_multiclassifier_forward.1} parent=55 // pred_check_branch
          %2592 = sbr.rel (%p2590) target = $region92
        $region91: #{lstm_multiclassifier_forward.1} parent=55 // pred_region
          %s2593 = sadd.s32 %s35, %s33
        $region92: #{lstm_multiclassifier_forward.1} parent=55 // pred_fallthru
          _
        // Predicated region
        $region93: #{lstm_multiclassifier_forward.1} parent=55 // pred_check
          %p2594 = pneg %p326
        $region94: #{lstm_multiclassifier_forward.1} parent=55 // pred_check_branch
          %2596 = sbr.rel (%p2594) target = $region96
        $region95: #{lstm_multiclassifier_forward.1} parent=55 // pred_region
          %s2597 = sadd.s32 %s35, %s33
        $region96: #{lstm_multiclassifier_forward.1} parent=55 // pred_fallthru
          _
        // Predicated region
        $region97: #{lstm_multiclassifier_forward.1} parent=55 // pred_check
          %p2598 = pneg %p352
        $region98: #{lstm_multiclassifier_forward.1} parent=55 // pred_check_branch
          %2600 = sbr.rel (%p2598) target = $region100
        $region99: #{lstm_multiclassifier_forward.1} parent=55 // pred_region
          _
        $region100: #{lstm_multiclassifier_forward.1} parent=55 // pred_fallthru
          _
        // Predicated region
        $region101: #{lstm_multiclassifier_forward.1} parent=55 // pred_check
          %p2601 = pneg %p352
        $region102: #{lstm_multiclassifier_forward.1} parent=55 // pred_check_branch
          %2603 = sbr.rel (%p2601) target = $region104
        $region103: #{lstm_multiclassifier_forward.1} parent=55 // pred_region
          %p2604 = scmp.lt.s32.totalorder %s33, 0
          %s2605 = scalar_select %p2604, %s33, 0
          %s2606 = smul.addr %s2605, 8
          %s2607 = scalar_lea.vmem %s11, %s2606
        $region104: #{lstm_multiclassifier_forward.1} parent=55 // pred_fallthru
          _
      $region56: #{lstm_multiclassifier_forward.1} parent=5 // pred_fallthru
        _
      %p2608 = scmp.le.s32.totalorder 2, %s23
      // Predicated region
      $region105: #{lstm_multiclassifier_forward.1} parent=5 // pred_check
        %p2609 = pneg %p2608
      $region106: #{lstm_multiclassifier_forward.1} parent=5 // pred_check_branch
        %2611 = sbr.rel (%p2609) target = $region108
      $region107: #{lstm_multiclassifier_forward.1} parent=5 // pred_region
        %s2612 = ssub.s32 %s23, 2
        // Predicated region
        $region109: #{lstm_multiclassifier_forward.1} parent=107 // pred_check
          %p2613 = pneg %p304
        $region110: #{lstm_multiclassifier_forward.1} parent=107 // pred_check_branch
          %2615 = sbr.rel (%p2613) target = $region112
        $region111: #{lstm_multiclassifier_forward.1} parent=107 // pred_region
          %s2616 = sadd.s32 %s38, %s36
          %p2617 = scmp.lt.s32.totalorder %s2616, 1
          %s2618 = scalar_select %p2617, %s2616, 1
          %s2619 = smul.addr %s2618, 8
          %s2620 = scalar_lea.vmem %s9, %s2619
        $region112: #{lstm_multiclassifier_forward.1} parent=107 // pred_fallthru
          _
        // Predicated region
        $region113: #{lstm_multiclassifier_forward.1} parent=107 // pred_check
          %p2621 = pneg %p332
        $region114: #{lstm_multiclassifier_forward.1} parent=107 // pred_check_branch
          %2623 = sbr.rel (%p2621) target = $region116
        $region115: #{lstm_multiclassifier_forward.1} parent=107 // pred_region
          %s2624 = sadd.s32 %s38, %s36
          %p2625 = scmp.lt.s32.totalorder %s2624, 1
          %s2626 = scalar_select %p2625, %s2624, 1
          %s2627 = smul.addr %s2626, 8
          %s2628 = scalar_lea.vmem %s10, %s2627
        $region116: #{lstm_multiclassifier_forward.1} parent=107 // pred_fallthru
          _
      $region108: #{lstm_multiclassifier_forward.1} parent=5 // pred_fallthru
        _
    $region6: #{lstm_multiclassifier_forward.1} parent=1 // loop_footer
      %s27 = sadd.s32 1, %s23
    $region7: #{lstm_multiclassifier_forward.1} parent=1 // loop_footer_branch
      %22 = sbr.rel target = $region3
    $region8: #{lstm_multiclassifier_forward.1} parent=1 // loop_exit
      _
    %2629 = vsyncpa [#allocation7], 1
    %s2630 = scalar_lea.sflag [#allocation7], 1
    %2631 = vsyncpa %s2630, 1
    %2632 = vsyncpa [#allocation9], 1
    %s2633 = scalar_lea.sflag [#allocation9], 1
    %2634 = vsyncpa %s2633, 1
    %2635 = vsyncpa [#allocation12], 1

</llo_original>
